<compile_context>
chip_gen: v7x
topology: tpu7x:2x2x1
jax: 0.10.0
libtpu: 0.0.40
codegen_flags: <defaults>
</compile_context>

<pallas_src>
import functools

import jax
import jax.numpy as jnp
from jax.experimental import pallas as pl
from jax.experimental.pallas import tpu as pltpu

EPS = 1e-5
LANE = 128


def _round_up(x, m):
    return (x + m - 1) // m * m


def _pick_row_tile(H, W, C_p, N, itemsize):
    """Largest divisor of H whose per-step im2col slab stays small (<= 4 MiB) while the
    grid keeps >= 8 steps so the auto-pipeline has something to overlap."""
    slab_cap = 4 * 1024 * 1024
    best = 1
    for d in range(1, H + 1):
        if H % d:
            continue
        if d * W * 9 * C_p * itemsize > slab_cap:
            continue
        if N * (H // d) >= 8 or d == 1:
            best = d
    return best


def _vmem_limit_bytes():
    """Generation-aware VMEM limit: ~capacity - 16 MiB headroom, clamped to [32, 100] MiB."""
    try:
        cap = int(pltpu.get_tpu_info().vmem_capacity_bytes)
    except Exception:
        cap = 64 * 1024 * 1024
    return max(32 * 1024 * 1024, min(cap - 16 * 1024 * 1024, 100 * 1024 * 1024))


def _affine_conv3x3_stats_kernel(x_ref, w_ref, scale_ref, shift_ref,
                                 y_ref, stats_ref, xpad_ref,
                                 *, rt, apply_act):
    """[previous BN folded affine + ReLU] -> 3x3 'same' conv -> raw out + BN partial stats.

    Grid = (N, H // rt).  The image block is resident across the row-tile axis; the padded
    (and, for conv2, activated) image is written into VMEM scratch once per image at r == 0.

    x_ref:     (1, H, W, Cin_p)   one image, compute dtype (bf16), resident across r
    w_ref:     (9*Cin_p, Cout_p)  tap-major concatenated 3x3 weights (bf16), resident
    scale_ref: (1, Cin_p) f32     previous BN folded scale (ignored when apply_act=False)
    shift_ref: (1, Cin_p) f32
    y_ref:     (1, rt, W, Cout_p) raw (pre-BN) conv output rows, compute dtype
    stats_ref: (1, 1, 2, Cout_p)  f32 per-tile [sum, sum_of_squares] over rt*W positions
    xpad_ref:  VMEM scratch (H+2, W+2, Cin_p) f32
    """
    _, H, W, Cin_p = x_ref.shape
    Cout_p = y_ref.shape[-1]
    r = pl.program_id(1)

    @pl.when(r == 0)
    def _fill_padded():
        x = x_ref[0].astype(jnp.float32)                     # (H, W, Cin_p)
        if apply_act:
            # Previous conv's BatchNorm folded into a per-channel affine, then ReLU (f32 VPU).
            x = jnp.maximum(x * scale_ref[...] + shift_ref[...], 0.0)
        # Zero only the 1-pixel border strips, once per image (not per row tile).
        zrow = jnp.zeros((1, W + 2, Cin_p), jnp.float32)
        zcol = jnp.zeros((H, 1, Cin_p), jnp.float32)
        xpad_ref[0:1, :, :] = zrow
        xpad_ref[H + 1:H + 2, :, :] = zrow
        xpad_ref[1:H + 1, 0:1, :] = zcol
        xpad_ref[1:H + 1, W + 1:W + 2, :] = zcol
        xpad_ref[1:H + 1, 1:W + 1, :] = x

    # Output rows [r*rt, r*rt+rt) need padded rows [r*rt, r*rt+rt+2).
    r0 = pl.multiple_of(r * rt, rt)
    xw = xpad_ref[pl.ds(r0, rt + 2), :, :].astype(w_ref.dtype)   # cast BEFORE im2col

    # im2col slab (lane-axis concat of the 9 shifted windows, bf16), then ONE MXU matmul
    # with K = 9*Cin_p (accumulation stays inside the MXU).
    cols = [xw[dy:dy + rt, dx:dx + W, :] for dy in range(3) for dx in range(3)]
    patch = jnp.concatenate(cols, axis=-1).reshape(rt * W, 9 * Cin_p)
    y = jnp.dot(patch, w_ref[...], preferred_element_type=jnp.float32)  # (rt*W, Cout_p) f32

    y_ref[...] = y.reshape(1, rt, W, Cout_p).astype(y_ref.dtype)

    # Single-pass BatchNorm partial statistics while y is live (f32).
    s = jnp.sum(y, axis=0, keepdims=True)                    # (1, Cout_p)
    ss = jnp.sum(y * y, axis=0, keepdims=True)               # (1, Cout_p)
    stats_ref[...] = jnp.concatenate([s, ss], axis=0).reshape(1, 1, 2, Cout_p)


def _conv3x3_stats(x, w_cat, scale, shift, *, apply_act, rt):
    N, H, W, Cin_p = x.shape
    Cout_p = w_cat.shape[-1]
    R = H // rt
    dt = x.dtype
    kernel = functools.partial(_affine_conv3x3_stats_kernel, rt=rt, apply_act=apply_act)
    itemsize = jnp.dtype(dt).itemsize
    cost = pl.CostEstimate(
        flops=int(2 * N * H * W * 9 * Cin_p * Cout_p),
        transcendentals=0,
        bytes_accessed=int(x.size * itemsize + w_cat.size * itemsize
                           + N * H * W * Cout_p * itemsize + N * R * 2 * Cout_p * 4),
    )
    y, stats = pl.pallas_call(
        kernel,
        grid=(N, R),
        in_specs=[
            pl.BlockSpec((1, H, W, Cin_p), lambda n, r: (n, 0, 0, 0)),  # resident across r
            pl.BlockSpec(w_cat.shape, lambda n, r: (0, 0)),             # weights resident
            pl.BlockSpec((1, Cin_p), lambda n, r: (0, 0)),
            pl.BlockSpec((1, Cin_p), lambda n, r: (0, 0)),
        ],
        out_specs=[
            pl.BlockSpec((1, rt, W, Cout_p), lambda n, r: (n, r, 0, 0)),
            pl.BlockSpec((1, 1, 2, Cout_p), lambda n, r: (n, r, 0, 0)),
        ],
        out_shape=[
            jax.ShapeDtypeStruct((N, H, W, Cout_p), dt),        # bf16 intermediate
            jax.ShapeDtypeStruct((N, R, 2, Cout_p), jnp.float32),
        ],
        scratch_shapes=[pltpu.VMEM((H + 2, W + 2, Cin_p), jnp.float32)],
        compiler_params=pltpu.CompilerParams(
            dimension_semantics=("parallel", "arbitrary"),   # r-axis ordered (scratch fill at r==0)
            vmem_limit_bytes=_vmem_limit_bytes()),
        cost_estimate=cost,
    )(x, w_cat, scale, shift)
    return y, stats


def _stats_to_affine(stats, gamma_p, beta_p, count):
    # Tiny (N, R, 2, Cp) -> (Cp,) finalize: mean/var from the single-pass sums, then the
    # BN fold scale = gamma*rsqrt(var+eps), shift = beta - mean*scale.  Plain XLA.
    s = jnp.sum(stats[:, :, 0, :], axis=(0, 1))
    ss = jnp.sum(stats[:, :, 1, :], axis=(0, 1))
    mean = s / count
    var = jnp.maximum(ss / count - mean * mean, 0.0)   # biased variance; clamp fp rounding
    inv = jax.lax.rsqrt(var + EPS)
    scale = gamma_p * inv
    shift = beta_p - mean * scale
    c = scale.shape[0]
    return scale.reshape(1, c), shift.reshape(1, c)


def init_params(key, ch_in, ch_out):
    """Deterministic parameter init mirroring the module's shapes."""
    k1, k2, k3, k4 = jax.random.split(key, 4)
    return {
        # PyTorch Conv2d weight layout: (Cout, Cin, kH, kW)
        "w1": 0.1 * jax.random.normal(k1, (ch_out, ch_in, 3, 3), jnp.float32),
        "b1": 0.1 * jax.random.normal(k2, (ch_out,), jnp.float32),
        "g1": jnp.ones((ch_out,), jnp.float32),    # BN gamma (default init)
        "be1": jnp.zeros((ch_out,), jnp.float32),  # BN beta  (default init)
        "w2": 0.1 * jax.random.normal(k3, (ch_out, ch_out, 3, 3), jnp.float32),
        "b2": 0.1 * jax.random.normal(k4, (ch_out,), jnp.float32),
        "g2": jnp.ones((ch_out,), jnp.float32),
        "be2": jnp.zeros((ch_out,), jnp.float32),
    }


def conv_block_forward(x_nchw, params, *, compute_dtype=jnp.bfloat16):
    """conv_block forward with training-mode (batch-statistics) BatchNorm.

    compute_dtype is the MXU / HBM-intermediate dtype (bf16 recommended on all TPU
    generations; pass jnp.float32 for closer-to-f32 numerics).  BN statistics and all
    elementwise BN/ReLU math are always f32.
    """
    N, Cin, H, W = x_nchw.shape
    Cout = params["w1"].shape[0]
    Cin_p = _round_up(max(Cin, LANE), LANE)    # lane-dense channel axis
    Cout_p = _round_up(max(Cout, LANE), LANE)
    itemsize = jnp.dtype(compute_dtype).itemsize
    rt = _pick_row_tile(H, W, max(Cin_p, Cout_p), N, itemsize)

    # Perf note: for tiny channel counts (4/8) a joint (W, C) lane packing would avoid the
    # 16-32x channel zero-padding inflation entirely; kept the simpler lane-dense-C layout.

    # Glue: NCHW -> NHWC, zero-pad channels to the 128-lane width, cast to compute dtype.
    x = jnp.transpose(x_nchw, (0, 2, 3, 1)).astype(jnp.float32)
    x = jnp.pad(x, ((0, 0), (0, 0), (0, 0), (0, Cin_p - Cin))).astype(compute_dtype)

    def prep_w(w, cin, cin_p, cout, cout_p):
        # (Cout, Cin, 3, 3) -> (3, 3, Cin, Cout) -> (9, Cin, Cout) -> pad -> (9*Cin_p, Cout_p)
        wt = jnp.transpose(w.astype(jnp.float32), (2, 3, 1, 0)).reshape(9, cin, cout)
        wt = jnp.pad(wt, ((0, 0), (0, cin_p - cin), (0, cout_p - cout)))
        return wt.reshape(9 * cin_p, cout_p).astype(compute_dtype)

    w1 = prep_w(params["w1"], Cin, Cin_p, Cout, Cout_p)
    w2 = prep_w(params["w2"], Cout, Cout_p, Cout, Cout_p)

    # NOTE: conv biases b1/b2 are intentionally NOT used — with batch-statistics BN a
    # per-channel constant added before the mean subtraction cancels exactly.
    # TODO(synk): eval-mode / running-statistics BatchNorm would need the biases restored
    # and a running mean/var update path.
    g1 = jnp.pad(params["g1"].astype(jnp.float32), (0, Cout_p - Cout))
    be1 = jnp.pad(params["be1"].astype(jnp.float32), (0, Cout_p - Cout))
    g2 = jnp.pad(params["g2"].astype(jnp.float32), (0, Cout_p - Cout))
    be2 = jnp.pad(params["be2"].astype(jnp.float32), (0, Cout_p - Cout))

    ident = jnp.zeros((1, Cin_p), jnp.float32)
    count = float(N * H * W)

    # conv1 + single-pass partial BN1 stats (y1 stored in compute dtype)
    y1, s1 = _conv3x3_stats(x, w1, ident, ident, apply_act=False, rt=rt)
    scale1, shift1 = _stats_to_affine(s1, g1, be1, count)

    # BN1 + ReLU fused into conv2's prologue; conv2 + partial BN2 stats
    y2, s2 = _conv3x3_stats(y1, w2, scale1, shift1, apply_act=True, rt=rt)
    scale2, shift2 = _stats_to_affine(s2, g2, be2, count)

    # BN2 + ReLU fused (by XLA) with the channel un-pad slice and NHWC -> NCHW transpose:
    # the padded channels are never written back to HBM.
    out = jnp.maximum(y2[..., :Cout].astype(jnp.float32) * scale2[:, :Cout]
                      + shift2[:, :Cout], 0.0)
    return jnp.transpose(out, (0, 3, 1, 2))


def _reference_forward(x, params):
    """Plain-XLA reference matching the PyTorch module (training-mode BatchNorm)."""
    def conv(x, w, b):
        y = jax.lax.conv_general_dilated(
            x, w, window_strides=(1, 1), padding=((1, 1), (1, 1)),
            dimension_numbers=("NCHW", "OIHW", "NCHW"))
        return y + b.reshape(1, -1, 1, 1)

    def bn_relu(y, g, be):
        mean = jnp.mean(y, axis=(0, 2, 3), keepdims=True)
        var = jnp.mean(jnp.square(y - mean), axis=(0, 2, 3), keepdims=True)
        yn = (y - mean) * jax.lax.rsqrt(var + EPS)
        return jnp.maximum(yn * g.reshape(1, -1, 1, 1) + be.reshape(1, -1, 1, 1), 0.0)

    y = bn_relu(conv(x, params["w1"], params["b1"]), params["g1"], params["be1"])
    y = bn_relu(conv(y, params["w2"], params["b2"]), params["g2"], params["be2"])
    return y


if __name__ == "__main__":
    key = jax.random.PRNGKey(0)
    kx, kp = jax.random.split(key)

    N, Cin, H, W = 2, 4, 16, 16
    Cout = 8

    x = jax.random.normal(kx, (N, Cin, H, W), dtype=jnp.float32)
    params = init_params(kp, Cin, Cout)

    y = jax.block_until_ready(jax.jit(conv_block_forward)(x, params))

    assert y.shape == (N, Cout, H, W)
    assert bool(jnp.all(y >= 0.0))  # ReLU output

    # Tolerance check against the plain-XLA reference (bf16 MXU path -> not bit-exact).
    ref = jax.block_until_ready(jax.jit(_reference_forward)(x, params))
    max_err = float(jnp.max(jnp.abs(y - ref)))
    assert max_err < 0.1, f"max abs error {max_err} too large"

    print("KERNEL_OK")
</pallas_src>

<mosaic_0001>
module attributes {stable_mosaic.version = 11 : i64} {
  func.func @_affine_conv3x3_stats_kernel(%arg0: i32, %arg1: i32, %arg2: memref<1x16x16x128xbf16, #tpu.memory_space<vmem>>, %arg3: memref<1152x128xbf16, #tpu.memory_space<vmem>>, %arg4: memref<1x128xf32, #tpu.memory_space<vmem>>, %arg5: memref<1x128xf32, #tpu.memory_space<vmem>>, %arg6: memref<1x4x16x128xbf16, #tpu.memory_space<vmem>>, %arg7: memref<1x1x2x128xf32, #tpu.memory_space<vmem>>, %arg8: memref<18x18x128xf32, #tpu.memory_space<vmem>>) attributes {dimension_semantics = [#tpu.dimension_semantics<parallel>, #tpu.dimension_semantics<arbitrary>], iteration_bounds = array<i64: 2, 4>, scalar_prefetch = 0 : i64, scratch_operands = 1 : i64, tpu.core_type = #tpu.core_type<tc>, window_params = [{transform_indices = @transform_0, window_bounds = array<i64: 1, 16, 16, 128>}, {pipeline_mode = #tpu.pipeline_mode<synchronous>, transform_indices = @transform_1, window_bounds = array<i64: 1152, 128>}, {pipeline_mode = #tpu.pipeline_mode<synchronous>, transform_indices = @transform_2, window_bounds = array<i64: 1, 128>}, {pipeline_mode = #tpu.pipeline_mode<synchronous>, transform_indices = @transform_3, window_bounds = array<i64: 1, 128>}, {transform_indices = @transform_4, window_bounds = array<i64: 1, 4, 16, 128>}, {transform_indices = @transform_5, window_bounds = array<i64: 1, 1, 2, 128>}]} {
    %c0_i32 = arith.constant 0 : i32
    %0 = arith.cmpi eq, %arg1, %c0_i32 : i32
    %1 = arith.extui %0 : i1 to i32
    %c0_i32_0 = arith.constant 0 : i32
    %2 = arith.cmpi ne, %1, %c0_i32_0 : i32
    scf.if %2 {
      %c0_14 = arith.constant 0 : index
      %c0_15 = arith.constant 0 : index
      %c0_16 = arith.constant 0 : index
      %c0_17 = arith.constant 0 : index
      %32 = vector.load %arg2[%c0_14, %c0_15, %c0_16, %c0_17] : memref<1x16x16x128xbf16, #tpu.memory_space<vmem>>, vector<1x16x16x128xbf16>
      %33 = vector.shape_cast %32 : vector<1x16x16x128xbf16> to vector<16x16x128xbf16>
      %34 = arith.extf %33 : vector<16x16x128xbf16> to vector<16x16x128xf32>
      %cst_18 = arith.constant 0.000000e+00 : f32
      %35 = vector.broadcast %cst_18 : f32 to vector<1x18x128xf32>
      %cst_19 = arith.constant 0.000000e+00 : f32
      %36 = vector.broadcast %cst_19 : f32 to vector<16x1x128xf32>
      %c0_20 = arith.constant 0 : index
      %c0_21 = arith.constant 0 : index
      %c0_22 = arith.constant 0 : index
      %37 = vector.load %arg8[%c0_20, %c0_21, %c0_22] : memref<18x18x128xf32, #tpu.memory_space<vmem>>, vector<1x18x128xf32>
      tpu.vector_store %arg8[%c0_20, %c0_21, %c0_22], %35 {strides = array<i32>} : memref<18x18x128xf32, #tpu.memory_space<vmem>>, vector<1x18x128xf32>,
      %c17 = arith.constant 17 : index
      %c0_23 = arith.constant 0 : index
      %c0_24 = arith.constant 0 : index
      %38 = vector.load %arg8[%c17, %c0_23, %c0_24] : memref<18x18x128xf32, #tpu.memory_space<vmem>>, vector<1x18x128xf32>
      tpu.vector_store %arg8[%c17, %c0_23, %c0_24], %35 {strides = array<i32>} : memref<18x18x128xf32, #tpu.memory_space<vmem>>, vector<1x18x128xf32>,
      %c1 = arith.constant 1 : index
      %c0_25 = arith.constant 0 : index
      %c0_26 = arith.constant 0 : index
      %39 = vector.load %arg8[%c1, %c0_25, %c0_26] : memref<18x18x128xf32, #tpu.memory_space<vmem>>, vector<16x1x128xf32>
      tpu.vector_store %arg8[%c1, %c0_25, %c0_26], %36 {strides = array<i32>} : memref<18x18x128xf32, #tpu.memory_space<vmem>>, vector<16x1x128xf32>,
      %c1_27 = arith.constant 1 : index
      %c17_28 = arith.constant 17 : index
      %c0_29 = arith.constant 0 : index
      %40 = vector.load %arg8[%c1_27, %c17_28, %c0_29] : memref<18x18x128xf32, #tpu.memory_space<vmem>>, vector<16x1x128xf32>
      tpu.vector_store %arg8[%c1_27, %c17_28, %c0_29], %36 {strides = array<i32>} : memref<18x18x128xf32, #tpu.memory_space<vmem>>, vector<16x1x128xf32>,
      %c1_30 = arith.constant 1 : index
      %c1_31 = arith.constant 1 : index
      %c0_32 = arith.constant 0 : index
      %41 = vector.load %arg8[%c1_30, %c1_31, %c0_32] : memref<18x18x128xf32, #tpu.memory_space<vmem>>, vector<16x16x128xf32>
      tpu.vector_store %arg8[%c1_30, %c1_31, %c0_32], %34 {strides = array<i32>} : memref<18x18x128xf32, #tpu.memory_space<vmem>>, vector<16x16x128xf32>,
    } else {
    }
    %c4_i32 = arith.constant 4 : i32
    %3 = arith.muli %arg1, %c4_i32 : i32
    %4 = tpu.assume_multiple %3, 4 : i32
    %5 = arith.index_cast %4 : i32 to index
    %c0 = arith.constant 0 : index
    %c0_1 = arith.constant 0 : index
    %6 = vector.load %arg8[%5, %c0, %c0_1] : memref<18x18x128xf32, #tpu.memory_space<vmem>>, vector<6x18x128xf32>
    %7 = arith.truncf %6 : vector<6x18x128xf32> to vector<6x18x128xbf16>
    %8 = vector.extract_strided_slice %7 {offsets = [0, 0, 0], sizes = [4, 16, 128], strides = [1, 1, 1]} : vector<6x18x128xbf16> to vector<4x16x128xbf16>
    %9 = vector.extract_strided_slice %7 {offsets = [0, 1, 0], sizes = [4, 16, 128], strides = [1, 1, 1]} : vector<6x18x128xbf16> to vector<4x16x128xbf16>
    %10 = vector.extract_strided_slice %7 {offsets = [0, 2, 0], sizes = [4, 16, 128], strides = [1, 1, 1]} : vector<6x18x128xbf16> to vector<4x16x128xbf16>
    %11 = vector.extract_strided_slice %7 {offsets = [1, 0, 0], sizes = [4, 16, 128], strides = [1, 1, 1]} : vector<6x18x128xbf16> to vector<4x16x128xbf16>
    %12 = vector.extract_strided_slice %7 {offsets = [1, 1, 0], sizes = [4, 16, 128], strides = [1, 1, 1]} : vector<6x18x128xbf16> to vector<4x16x128xbf16>
    %13 = vector.extract_strided_slice %7 {offsets = [1, 2, 0], sizes = [4, 16, 128], strides = [1, 1, 1]} : vector<6x18x128xbf16> to vector<4x16x128xbf16>
    %14 = vector.extract_strided_slice %7 {offsets = [2, 0, 0], sizes = [4, 16, 128], strides = [1, 1, 1]} : vector<6x18x128xbf16> to vector<4x16x128xbf16>
    %15 = vector.extract_strided_slice %7 {offsets = [2, 1, 0], sizes = [4, 16, 128], strides = [1, 1, 1]} : vector<6x18x128xbf16> to vector<4x16x128xbf16>
    %16 = vector.extract_strided_slice %7 {offsets = [2, 2, 0], sizes = [4, 16, 128], strides = [1, 1, 1]} : vector<6x18x128xbf16> to vector<4x16x128xbf16>
    %17 = tpu.concatenate %8, %9, %10, %11, %12, %13, %14, %15, %16 in 2 : vector<4x16x128xbf16>, vector<4x16x128xbf16>, vector<4x16x128xbf16>, vector<4x16x128xbf16>, vector<4x16x128xbf16>, vector<4x16x128xbf16>, vector<4x16x128xbf16>, vector<4x16x128xbf16>, vector<4x16x128xbf16> -> vector<4x16x1152xbf16>
    %18 = vector.shape_cast %17 : vector<4x16x1152xbf16> to vector<64x1152xbf16>
    %c0_2 = arith.constant 0 : index
    %c0_3 = arith.constant 0 : index
    %19 = vector.load %arg3[%c0_2, %c0_3] : memref<1152x128xbf16, #tpu.memory_space<vmem>>, vector<1152x128xbf16>
    %cst = arith.constant dense<0.000000e+00> : vector<64x128xf32>
    %20 = tpu.matmul %18, %19, %cst {dimension_numbers = #tpu.dot_dimension_numbers<[1], [0], [0], [1], [0, 0, 1, 1], [], []>} : vector<64x1152xbf16>, vector<1152x128xbf16>, vector<64x128xf32> -> vector<64x128xf32>
    %21 = vector.shape_cast %20 : vector<64x128xf32> to vector<1x4x16x128xf32>
    %22 = arith.truncf %21 : vector<1x4x16x128xf32> to vector<1x4x16x128xbf16>
    %c0_4 = arith.constant 0 : index
    %c0_5 = arith.constant 0 : index
    %c0_6 = arith.constant 0 : index
    %c0_7 = arith.constant 0 : index
    %23 = vector.load %arg6[%c0_4, %c0_5, %c0_6, %c0_7] : memref<1x4x16x128xbf16, #tpu.memory_space<vmem>>, vector<1x4x16x128xbf16>
    tpu.vector_store %arg6[%c0_4, %c0_5, %c0_6, %c0_7], %22 {strides = array<i32>} : memref<1x4x16x128xbf16, #tpu.memory_space<vmem>>, vector<1x4x16x128xbf16>,
    %cst_8 = arith.constant dense<0.000000e+00> : vector<128xf32>
    %24 = vector.multi_reduction <add>, %20, %cst_8 [0] : vector<64x128xf32> to vector<128xf32>
    %25 = vector.shape_cast %24 : vector<128xf32> to vector<1x128xf32>
    %26 = arith.mulf %20, %20 : vector<64x128xf32>
    %cst_9 = arith.constant dense<0.000000e+00> : vector<128xf32>
    %27 = vector.multi_reduction <add>, %26, %cst_9 [0] : vector<64x128xf32> to vector<128xf32>
    %28 = vector.shape_cast %27 : vector<128xf32> to vector<1x128xf32>
    %29 = tpu.concatenate %25, %28 in 0 : vector<1x128xf32>, vector<1x128xf32> -> vector<2x128xf32>
    %30 = vector.shape_cast %29 : vector<2x128xf32> to vector<1x1x2x128xf32>
    %c0_10 = arith.constant 0 : index
    %c0_11 = arith.constant 0 : index
    %c0_12 = arith.constant 0 : index
    %c0_13 = arith.constant 0 : index
    %31 = vector.load %arg7[%c0_10, %c0_11, %c0_12, %c0_13] : memref<1x1x2x128xf32, #tpu.memory_space<vmem>>, vector<1x1x2x128xf32>
    tpu.vector_store %arg7[%c0_10, %c0_11, %c0_12, %c0_13], %30 {strides = array<i32>} : memref<1x1x2x128xf32, #tpu.memory_space<vmem>>, vector<1x1x2x128xf32>,
    return
  }
  func.func @transform_0(%arg0: i32, %arg1: i32) -> (i32, i32, i32, i32) {
    %c0_i32 = arith.constant 0 : i32
    %c0_i32_0 = arith.constant 0 : i32
    %c0_i32_1 = arith.constant 0 : i32
    %c0_i32_2 = arith.constant 0 : i32
    return %arg0, %c0_i32, %c0_i32_0, %c0_i32_1 : i32, i32, i32, i32
  }
  func.func @transform_1(%arg0: i32, %arg1: i32) -> (i32, i32) {
    %c0_i32 = arith.constant 0 : i32
    %c0_i32_0 = arith.constant 0 : i32
    %c0_i32_1 = arith.constant 0 : i32
    return %c0_i32, %c0_i32_0 : i32, i32
  }
  func.func @transform_2(%arg0: i32, %arg1: i32) -> (i32, i32) {
    %c0_i32 = arith.constant 0 : i32
    %c0_i32_0 = arith.constant 0 : i32
    %c0_i32_1 = arith.constant 0 : i32
    return %c0_i32, %c0_i32_0 : i32, i32
  }
  func.func @transform_3(%arg0: i32, %arg1: i32) -> (i32, i32) {
    %c0_i32 = arith.constant 0 : i32
    %c0_i32_0 = arith.constant 0 : i32
    %c0_i32_1 = arith.constant 0 : i32
    return %c0_i32, %c0_i32_0 : i32, i32
  }
  func.func @transform_4(%arg0: i32, %arg1: i32) -> (i32, i32, i32, i32) {
    %c0_i32 = arith.constant 0 : i32
    %c0_i32_0 = arith.constant 0 : i32
    %c0_i32_1 = arith.constant 0 : i32
    return %arg0, %arg1, %c0_i32, %c0_i32_0 : i32, i32, i32, i32
  }
  func.func @transform_5(%arg0: i32, %arg1: i32) -> (i32, i32, i32, i32) {
    %c0_i32 = arith.constant 0 : i32
    %c0_i32_0 = arith.constant 0 : i32
    %c0_i32_1 = arith.constant 0 : i32
    return %arg0, %arg1, %c0_i32, %c0_i32_0 : i32, i32, i32, i32
  }
}

module attributes {stable_mosaic.version = 11 : i64} {
  func.func @_affine_conv3x3_stats_kernel(%arg0: i32, %arg1: i32, %arg2: memref<1x16x16x128xbf16, #tpu.memory_space<vmem>>, %arg3: memref<1152x128xbf16, #tpu.memory_space<vmem>>, %arg4: memref<1x128xf32, #tpu.memory_space<vmem>>, %arg5: memref<1x128xf32, #tpu.memory_space<vmem>>, %arg6: memref<1x4x16x128xbf16, #tpu.memory_space<vmem>>, %arg7: memref<1x1x2x128xf32, #tpu.memory_space<vmem>>, %arg8: memref<18x18x128xf32, #tpu.memory_space<vmem>>) attributes {dimension_semantics = [#tpu.dimension_semantics<parallel>, #tpu.dimension_semantics<arbitrary>], iteration_bounds = array<i64: 2, 4>, scalar_prefetch = 0 : i64, scratch_operands = 1 : i64, tpu.core_type = #tpu.core_type<tc>, window_params = [{transform_indices = @transform_0, window_bounds = array<i64: 1, 16, 16, 128>}, {pipeline_mode = #tpu.pipeline_mode<synchronous>, transform_indices = @transform_1, window_bounds = array<i64: 1152, 128>}, {pipeline_mode = #tpu.pipeline_mode<synchronous>, transform_indices = @transform_2, window_bounds = array<i64: 1, 128>}, {pipeline_mode = #tpu.pipeline_mode<synchronous>, transform_indices = @transform_3, window_bounds = array<i64: 1, 128>}, {transform_indices = @transform_4, window_bounds = array<i64: 1, 4, 16, 128>}, {transform_indices = @transform_5, window_bounds = array<i64: 1, 1, 2, 128>}]} {
    %c0_i32 = arith.constant 0 : i32
    %0 = arith.cmpi eq, %arg1, %c0_i32 : i32
    %1 = arith.extui %0 : i1 to i32
    %c0_i32_0 = arith.constant 0 : i32
    %2 = arith.cmpi ne, %1, %c0_i32_0 : i32
    scf.if %2 {
      %c0_14 = arith.constant 0 : index
      %c0_15 = arith.constant 0 : index
      %c0_16 = arith.constant 0 : index
      %c0_17 = arith.constant 0 : index
      %32 = vector.load %arg2[%c0_14, %c0_15, %c0_16, %c0_17] : memref<1x16x16x128xbf16, #tpu.memory_space<vmem>>, vector<1x16x16x128xbf16>
      %33 = vector.shape_cast %32 : vector<1x16x16x128xbf16> to vector<16x16x128xbf16>
      %34 = arith.extf %33 : vector<16x16x128xbf16> to vector<16x16x128xf32>
      %c0_18 = arith.constant 0 : index
      %c0_19 = arith.constant 0 : index
      %35 = vector.load %arg4[%c0_18, %c0_19] : memref<1x128xf32, #tpu.memory_space<vmem>>, vector<1x128xf32>
      %36 = vector.shape_cast %35 : vector<1x128xf32> to vector<1x1x128xf32>
      %37 = vector.broadcast %36 : vector<1x1x128xf32> to vector<16x16x128xf32>
      %38 = arith.mulf %34, %37 : vector<16x16x128xf32>
      %c0_20 = arith.constant 0 : index
      %c0_21 = arith.constant 0 : index
      %39 = vector.load %arg5[%c0_20, %c0_21] : memref<1x128xf32, #tpu.memory_space<vmem>>, vector<1x128xf32>
      %40 = vector.shape_cast %39 : vector<1x128xf32> to vector<1x1x128xf32>
      %41 = vector.broadcast %40 : vector<1x1x128xf32> to vector<16x16x128xf32>
      %42 = arith.addf %38, %41 : vector<16x16x128xf32>
      %cst_22 = arith.constant 0.000000e+00 : f32
      %43 = vector.broadcast %cst_22 : f32 to vector<16x16x128xf32>
      %44 = arith.maximumf %42, %43 : vector<16x16x128xf32>
      %cst_23 = arith.constant 0.000000e+00 : f32
      %45 = vector.broadcast %cst_23 : f32 to vector<1x18x128xf32>
      %cst_24 = arith.constant 0.000000e+00 : f32
      %46 = vector.broadcast %cst_24 : f32 to vector<16x1x128xf32>
      %c0_25 = arith.constant 0 : index
      %c0_26 = arith.constant 0 : index
      %c0_27 = arith.constant 0 : index
      %47 = vector.load %arg8[%c0_25, %c0_26, %c0_27] : memref<18x18x128xf32, #tpu.memory_space<vmem>>, vector<1x18x128xf32>
      tpu.vector_store %arg8[%c0_25, %c0_26, %c0_27], %45 {strides = array<i32>} : memref<18x18x128xf32, #tpu.memory_space<vmem>>, vector<1x18x128xf32>,
      %c17 = arith.constant 17 : index
      %c0_28 = arith.constant 0 : index
      %c0_29 = arith.constant 0 : index
      %48 = vector.load %arg8[%c17, %c0_28, %c0_29] : memref<18x18x128xf32, #tpu.memory_space<vmem>>, vector<1x18x128xf32>
      tpu.vector_store %arg8[%c17, %c0_28, %c0_29], %45 {strides = array<i32>} : memref<18x18x128xf32, #tpu.memory_space<vmem>>, vector<1x18x128xf32>,
      %c1 = arith.constant 1 : index
      %c0_30 = arith.constant 0 : index
      %c0_31 = arith.constant 0 : index
      %49 = vector.load %arg8[%c1, %c0_30, %c0_31] : memref<18x18x128xf32, #tpu.memory_space<vmem>>, vector<16x1x128xf32>
      tpu.vector_store %arg8[%c1, %c0_30, %c0_31], %46 {strides = array<i32>} : memref<18x18x128xf32, #tpu.memory_space<vmem>>, vector<16x1x128xf32>,
      %c1_32 = arith.constant 1 : index
      %c17_33 = arith.constant 17 : index
      %c0_34 = arith.constant 0 : index
      %50 = vector.load %arg8[%c1_32, %c17_33, %c0_34] : memref<18x18x128xf32, #tpu.memory_space<vmem>>, vector<16x1x128xf32>
      tpu.vector_store %arg8[%c1_32, %c17_33, %c0_34], %46 {strides = array<i32>} : memref<18x18x128xf32, #tpu.memory_space<vmem>>, vector<16x1x128xf32>,
      %c1_35 = arith.constant 1 : index
      %c1_36 = arith.constant 1 : index
      %c0_37 = arith.constant 0 : index
      %51 = vector.load %arg8[%c1_35, %c1_36, %c0_37] : memref<18x18x128xf32, #tpu.memory_space<vmem>>, vector<16x16x128xf32>
      tpu.vector_store %arg8[%c1_35, %c1_36, %c0_37], %44 {strides = array<i32>} : memref<18x18x128xf32, #tpu.memory_space<vmem>>, vector<16x16x128xf32>,
    } else {
    }
    %c4_i32 = arith.constant 4 : i32
    %3 = arith.muli %arg1, %c4_i32 : i32
    %4 = tpu.assume_multiple %3, 4 : i32
    %5 = arith.index_cast %4 : i32 to index
    %c0 = arith.constant 0 : index
    %c0_1 = arith.constant 0 : index
    %6 = vector.load %arg8[%5, %c0, %c0_1] : memref<18x18x128xf32, #tpu.memory_space<vmem>>, vector<6x18x128xf32>
    %7 = arith.truncf %6 : vector<6x18x128xf32> to vector<6x18x128xbf16>
    %8 = vector.extract_strided_slice %7 {offsets = [0, 0, 0], sizes = [4, 16, 128], strides = [1, 1, 1]} : vector<6x18x128xbf16> to vector<4x16x128xbf16>
    %9 = vector.extract_strided_slice %7 {offsets = [0, 1, 0], sizes = [4, 16, 128], strides = [1, 1, 1]} : vector<6x18x128xbf16> to vector<4x16x128xbf16>
    %10 = vector.extract_strided_slice %7 {offsets = [0, 2, 0], sizes = [4, 16, 128], strides = [1, 1, 1]} : vector<6x18x128xbf16> to vector<4x16x128xbf16>
    %11 = vector.extract_strided_slice %7 {offsets = [1, 0, 0], sizes = [4, 16, 128], strides = [1, 1, 1]} : vector<6x18x128xbf16> to vector<4x16x128xbf16>
    %12 = vector.extract_strided_slice %7 {offsets = [1, 1, 0], sizes = [4, 16, 128], strides = [1, 1, 1]} : vector<6x18x128xbf16> to vector<4x16x128xbf16>
    %13 = vector.extract_strided_slice %7 {offsets = [1, 2, 0], sizes = [4, 16, 128], strides = [1, 1, 1]} : vector<6x18x128xbf16> to vector<4x16x128xbf16>
    %14 = vector.extract_strided_slice %7 {offsets = [2, 0, 0], sizes = [4, 16, 128], strides = [1, 1, 1]} : vector<6x18x128xbf16> to vector<4x16x128xbf16>
    %15 = vector.extract_strided_slice %7 {offsets = [2, 1, 0], sizes = [4, 16, 128], strides = [1, 1, 1]} : vector<6x18x128xbf16> to vector<4x16x128xbf16>
    %16 = vector.extract_strided_slice %7 {offsets = [2, 2, 0], sizes = [4, 16, 128], strides = [1, 1, 1]} : vector<6x18x128xbf16> to vector<4x16x128xbf16>
    %17 = tpu.concatenate %8, %9, %10, %11, %12, %13, %14, %15, %16 in 2 : vector<4x16x128xbf16>, vector<4x16x128xbf16>, vector<4x16x128xbf16>, vector<4x16x128xbf16>, vector<4x16x128xbf16>, vector<4x16x128xbf16>, vector<4x16x128xbf16>, vector<4x16x128xbf16>, vector<4x16x128xbf16> -> vector<4x16x1152xbf16>
    %18 = vector.shape_cast %17 : vector<4x16x1152xbf16> to vector<64x1152xbf16>
    %c0_2 = arith.constant 0 : index
    %c0_3 = arith.constant 0 : index
    %19 = vector.load %arg3[%c0_2, %c0_3] : memref<1152x128xbf16, #tpu.memory_space<vmem>>, vector<1152x128xbf16>
    %cst = arith.constant dense<0.000000e+00> : vector<64x128xf32>
    %20 = tpu.matmul %18, %19, %cst {dimension_numbers = #tpu.dot_dimension_numbers<[1], [0], [0], [1], [0, 0, 1, 1], [], []>} : vector<64x1152xbf16>, vector<1152x128xbf16>, vector<64x128xf32> -> vector<64x128xf32>
    %21 = vector.shape_cast %20 : vector<64x128xf32> to vector<1x4x16x128xf32>
    %22 = arith.truncf %21 : vector<1x4x16x128xf32> to vector<1x4x16x128xbf16>
    %c0_4 = arith.constant 0 : index
    %c0_5 = arith.constant 0 : index
    %c0_6 = arith.constant 0 : index
    %c0_7 = arith.constant 0 : index
    %23 = vector.load %arg6[%c0_4, %c0_5, %c0_6, %c0_7] : memref<1x4x16x128xbf16, #tpu.memory_space<vmem>>, vector<1x4x16x128xbf16>
    tpu.vector_store %arg6[%c0_4, %c0_5, %c0_6, %c0_7], %22 {strides = array<i32>} : memref<1x4x16x128xbf16, #tpu.memory_space<vmem>>, vector<1x4x16x128xbf16>,
    %cst_8 = arith.constant dense<0.000000e+00> : vector<128xf32>
    %24 = vector.multi_reduction <add>, %20, %cst_8 [0] : vector<64x128xf32> to vector<128xf32>
    %25 = vector.shape_cast %24 : vector<128xf32> to vector<1x128xf32>
    %26 = arith.mulf %20, %20 : vector<64x128xf32>
    %cst_9 = arith.constant dense<0.000000e+00> : vector<128xf32>
    %27 = vector.multi_reduction <add>, %26, %cst_9 [0] : vector<64x128xf32> to vector<128xf32>
    %28 = vector.shape_cast %27 : vector<128xf32> to vector<1x128xf32>
    %29 = tpu.concatenate %25, %28 in 0 : vector<1x128xf32>, vector<1x128xf32> -> vector<2x128xf32>
    %30 = vector.shape_cast %29 : vector<2x128xf32> to vector<1x1x2x128xf32>
    %c0_10 = arith.constant 0 : index
    %c0_11 = arith.constant 0 : index
    %c0_12 = arith.constant 0 : index
    %c0_13 = arith.constant 0 : index
    %31 = vector.load %arg7[%c0_10, %c0_11, %c0_12, %c0_13] : memref<1x1x2x128xf32, #tpu.memory_space<vmem>>, vector<1x1x2x128xf32>
    tpu.vector_store %arg7[%c0_10, %c0_11, %c0_12, %c0_13], %30 {strides = array<i32>} : memref<1x1x2x128xf32, #tpu.memory_space<vmem>>, vector<1x1x2x128xf32>,
    return
  }
  func.func @transform_0(%arg0: i32, %arg1: i32) -> (i32, i32, i32, i32) {
    %c0_i32 = arith.constant 0 : i32
    %c0_i32_0 = arith.constant 0 : i32
    %c0_i32_1 = arith.constant 0 : i32
    %c0_i32_2 = arith.constant 0 : i32
    return %arg0, %c0_i32, %c0_i32_0, %c0_i32_1 : i32, i32, i32, i32
  }
  func.func @transform_1(%arg0: i32, %arg1: i32) -> (i32, i32) {
    %c0_i32 = arith.constant 0 : i32
    %c0_i32_0 = arith.constant 0 : i32
    %c0_i32_1 = arith.constant 0 : i32
    return %c0_i32, %c0_i32_0 : i32, i32
  }
  func.func @transform_2(%arg0: i32, %arg1: i32) -> (i32, i32) {
    %c0_i32 = arith.constant 0 : i32
    %c0_i32_0 = arith.constant 0 : i32
    %c0_i32_1 = arith.constant 0 : i32
    return %c0_i32, %c0_i32_0 : i32, i32
  }
  func.func @transform_3(%arg0: i32, %arg1: i32) -> (i32, i32) {
    %c0_i32 = arith.constant 0 : i32
    %c0_i32_0 = arith.constant 0 : i32
    %c0_i32_1 = arith.constant 0 : i32
    return %c0_i32, %c0_i32_0 : i32, i32
  }
  func.func @transform_4(%arg0: i32, %arg1: i32) -> (i32, i32, i32, i32) {
    %c0_i32 = arith.constant 0 : i32
    %c0_i32_0 = arith.constant 0 : i32
    %c0_i32_1 = arith.constant 0 : i32
    return %arg0, %arg1, %c0_i32, %c0_i32_0 : i32, i32, i32, i32
  }
  func.func @transform_5(%arg0: i32, %arg1: i32) -> (i32, i32, i32, i32) {
    %c0_i32 = arith.constant 0 : i32
    %c0_i32_0 = arith.constant 0 : i32
    %c0_i32_1 = arith.constant 0 : i32
    return %arg0, %arg1, %c0_i32, %c0_i32_0 : i32, i32, i32, i32
  }
}

</mosaic_0001>

<llo_original>
// kernel: conv_block_forward.2
$region0: #{conv_block_forward.2}
  #allocation0 [shape = 'u32[]', space=smem, size = 0x4, offset = 0x4, fixed_abs, tag = 'smem constant byte address 0x4 - core index']
  #allocation1 [shape = 'u32[144,128]{1,0:T(1,128)}', space=vmem, size = 0x12000, scoped, tag = 'internal scratch']
  #allocation2 [shape = 'f32[18,18,128]{2,1,0:T(8,128)}', space=vmem, size = 0x36000, scoped, tag = 'scratch operand']
  %s0 = inlined_call_operand.vmem [shape: bf16[2,16,16,128], index: 0, kind: input, shape index: {}]
  %s1 = inlined_call_operand.vmem [shape: bf16[1152,128], index: 1, kind: input, shape index: {}]
  %s2 = inlined_call_operand.vmem [shape: f32[1,128], index: 2, kind: input, shape index: {}, may-alias: {2,3}]
  %s3 = inlined_call_operand.vmem [shape: f32[1,128], index: 3, kind: input, shape index: {}, may-alias: {2,3}]
  %s4 = inlined_call_operand.vmem [shape: bf16[2,16,16,128], index: 4, kind: output, shape index: {0}]
  %s5 = inlined_call_operand.vmem [shape: f32[2,4,2,128], index: 5, kind: output, shape index: {1}]
  %6 = xla_tuple %s4, %s5
  %s7 = sld [smem:[#allocation0]]
  $region61: #{conv_block_forward.2} parent=0
    _
  %s9 = ssub.s32 1, %s7
  %s10 = scalar_select 0, %s9, %s7
  loop: start=0, step=1, limit=10
  $region2: #{conv_block_forward.2} parent=0 // loop_pre_header
    _
  $region3: #{conv_block_forward.2} parent=0 // loop_header
    %s12 = sphi 0, %s16
    %p13 = scmp.ge.s32.totalorder %s12, 10
    %s19 = sphi 0, %s31
    %s20 = sphi 0, %s27
    %s21 = sphi 0, %s19
    %s22 = sphi 0, %s20
    %s23 = sphi 0, %s21
    %s24 = sphi 0, %s22
    %s34 = sphi 0, %s36
    %s37 = sphi 0, %s34
    %s38 = sphi 0, %s37
    %s54 = sphi 0, %s38
    %s58 = sphi 0, %s58
    %s60 = sphi 0, %s58
    %s61 = sphi 0, %s60
    %s75 = sphi 0, %s61
    %s79 = sphi 0, %s79
    %s81 = sphi 0, %s79
    %s82 = sphi 0, %s81
    %s96 = sphi 0, %s82
    %s100 = sphi 0, %s100
    %s102 = sphi 0, %s100
    %s103 = sphi 0, %s102
    %s117 = sphi 0, %s103
    %s125 = sphi 0, %s127
    %s128 = sphi 0, %s125
    %s129 = sphi 0, %s128
    %s145 = sphi 0, %s129
    %s153 = sphi 0, %s155
    %s156 = sphi 0, %s153
    %s157 = sphi 0, %s156
    %s173 = sphi 0, %s157
  $region4: #{conv_block_forward.2} parent=0 // loop_header_branch
    %15 = sbr.rel (%p13) target = $region8
  $region5: #{conv_block_forward.2} parent=0 // loop_body
    %s17 = ssub.s32 %s12, 1
    %s18 = ssub.s32 %s12, 2
    %s25 = sadd.s32 1, %s20
    %p26 = scmp.ge.s32.totalorder %s25, 4
    %s27 = scalar_select %p26, 0, %s25
    %s28 = sadd.s32 1, %s19
    %s29 = scalar_select %p26, %s28, %s19
    %p30 = scmp.ge.s32.totalorder %s29, 2
    %s31 = scalar_select %p30, 0, %s29
    %s32 = ssub.s32 %s19, %s31
    %p33 = scmp.eq.s32.totalorder %s32, 0
    %s35 = sadd.s32 %s34, 1
    %s36 = scalar_select %p33, %s34, %s35
    %p39 = pneg %p33
    %p40 = scmp.eq.s32.totalorder %s12, 7
    %p41 = por %p39, %p40
    %p42 = scmp.ne.s32.totalorder %s34, %s37
    %p43 = scmp.eq.s32.totalorder %s12, 0
    %p44 = por %p42, %p43
    %p45 = scmp.ne.s32.totalorder %s34, %s37
    %p46 = scmp.eq.s32.totalorder %s17, 7
    %p47 = por %p45, %p46
    %p48 = scmp.ne.s32.totalorder %s37, %s38
    %p49 = scmp.eq.s32.totalorder %s17, 0
    %p50 = por %p48, %p49
    %p51 = scmp.ne.s32.totalorder %s37, %s38
    %p52 = scmp.eq.s32.totalorder %s18, 7
    %p53 = por %p51, %p52
    %p55 = scmp.ne.s32.totalorder %s38, %s54
    %p56 = scmp.eq.s32.totalorder %s18, 0
    %p57 = por %p55, %p56
    %s59 = sadd.s32 %s58, 1
    %p62 = scmp.eq.s32.totalorder %s12, 7
    %p63 = scmp.ne.s32.totalorder %s58, %s60
    %p64 = scmp.eq.s32.totalorder %s12, 0
    %p65 = por %p63, %p64
    %p66 = scmp.ne.s32.totalorder %s58, %s60
    %p67 = scmp.eq.s32.totalorder %s17, 7
    %p68 = por %p66, %p67
    %p69 = scmp.ne.s32.totalorder %s60, %s61
    %p70 = scmp.eq.s32.totalorder %s17, 0
    %p71 = por %p69, %p70
    %p72 = scmp.ne.s32.totalorder %s60, %s61
    %p73 = scmp.eq.s32.totalorder %s18, 7
    %p74 = por %p72, %p73
    %p76 = scmp.ne.s32.totalorder %s61, %s75
    %p77 = scmp.eq.s32.totalorder %s18, 0
    %p78 = por %p76, %p77
    %s80 = sadd.s32 %s79, 1
    %p83 = scmp.eq.s32.totalorder %s12, 7
    %p84 = scmp.ne.s32.totalorder %s79, %s81
    %p85 = scmp.eq.s32.totalorder %s12, 0
    %p86 = por %p84, %p85
    %p87 = scmp.ne.s32.totalorder %s79, %s81
    %p88 = scmp.eq.s32.totalorder %s17, 7
    %p89 = por %p87, %p88
    %p90 = scmp.ne.s32.totalorder %s81, %s82
    %p91 = scmp.eq.s32.totalorder %s17, 0
    %p92 = por %p90, %p91
    %p93 = scmp.ne.s32.totalorder %s81, %s82
    %p94 = scmp.eq.s32.totalorder %s18, 7
    %p95 = por %p93, %p94
    %p97 = scmp.ne.s32.totalorder %s82, %s96
    %p98 = scmp.eq.s32.totalorder %s18, 0
    %p99 = por %p97, %p98
    %s101 = sadd.s32 %s100, 1
    %p104 = scmp.eq.s32.totalorder %s12, 7
    %p105 = scmp.ne.s32.totalorder %s100, %s102
    %p106 = scmp.eq.s32.totalorder %s12, 0
    %p107 = por %p105, %p106
    %p108 = scmp.ne.s32.totalorder %s100, %s102
    %p109 = scmp.eq.s32.totalorder %s17, 7
    %p110 = por %p108, %p109
    %p111 = scmp.ne.s32.totalorder %s102, %s103
    %p112 = scmp.eq.s32.totalorder %s17, 0
    %p113 = por %p111, %p112
    %p114 = scmp.ne.s32.totalorder %s102, %s103
    %p115 = scmp.eq.s32.totalorder %s18, 7
    %p116 = por %p114, %p115
    %p118 = scmp.ne.s32.totalorder %s103, %s117
    %p119 = scmp.eq.s32.totalorder %s18, 0
    %p120 = por %p118, %p119
    %s121 = ssub.s32 %s19, %s31
    %s122 = ssub.s32 %s20, %s27
    %s123 = sor.u32 %s121, %s122
    %p124 = scmp.eq.s32.totalorder %s123, 0
    %s126 = sadd.s32 %s125, 1
    %s127 = scalar_select %p124, %s125, %s126
    %p130 = pneg %p124
    %p131 = scmp.eq.s32.totalorder %s12, 7
    %p132 = por %p130, %p131
    %p133 = scmp.ne.s32.totalorder %s125, %s128
    %p134 = scmp.eq.s32.totalorder %s12, 0
    %p135 = por %p133, %p134
    %p136 = scmp.ne.s32.totalorder %s125, %s128
    %p137 = scmp.eq.s32.totalorder %s17, 7
    %p138 = por %p136, %p137
    %p139 = scmp.ne.s32.totalorder %s128, %s129
    %p140 = scmp.eq.s32.totalorder %s17, 0
    %p141 = por %p139, %p140
    %p142 = scmp.ne.s32.totalorder %s128, %s129
    %p143 = scmp.eq.s32.totalorder %s18, 7
    %p144 = por %p142, %p143
    %p146 = scmp.ne.s32.totalorder %s129, %s145
    %p147 = scmp.eq.s32.totalorder %s18, 0
    %p148 = por %p146, %p147
    %s149 = ssub.s32 %s19, %s31
    %s150 = ssub.s32 %s20, %s27
    %s151 = sor.u32 %s149, %s150
    %p152 = scmp.eq.s32.totalorder %s151, 0
    %s154 = sadd.s32 %s153, 1
    %s155 = scalar_select %p152, %s153, %s154
    %p158 = pneg %p152
    %p159 = scmp.eq.s32.totalorder %s12, 7
    %p160 = por %p158, %p159
    %p161 = scmp.ne.s32.totalorder %s153, %s156
    %p162 = scmp.eq.s32.totalorder %s12, 0
    %p163 = por %p161, %p162
    %p164 = scmp.ne.s32.totalorder %s153, %s156
    %p165 = scmp.eq.s32.totalorder %s17, 7
    %p166 = por %p164, %p165
    %p167 = scmp.ne.s32.totalorder %s156, %s157
    %p168 = scmp.eq.s32.totalorder %s17, 0
    %p169 = por %p167, %p168
    %p170 = scmp.ne.s32.totalorder %s156, %s157
    %p171 = scmp.eq.s32.totalorder %s18, 7
    %p172 = por %p170, %p171
    %p174 = scmp.ne.s32.totalorder %s157, %s173
    %p175 = scmp.eq.s32.totalorder %s18, 0
    %p176 = por %p174, %p175
    %p177 = scmp.le.s32.totalorder 1, %s12
    %p178 = scmp.lt.s32.totalorder %s12, 9
    %p179 = pnand %p177, %p178
    %p180 = pneg %p179
    // Predicated region
    $region9: #{conv_block_forward.2} parent=5 // pred_check
      _
    $region10: #{conv_block_forward.2} parent=5 // pred_check_branch
      %182 = sbr.rel (%p179) target = $region12
    $region11: #{conv_block_forward.2} parent=5 // pred_region
      %s183 = ssub.s32 %s12, 1
      // Predicated region
      $region13: #{conv_block_forward.2} parent=11 // pred_check
        %p184 = pneg %p71
      $region14: #{conv_block_forward.2} parent=11 // pred_check_branch
        %186 = sbr.rel (%p184) target = $region16
      $region15: #{conv_block_forward.2} parent=11 // pred_region
        _
      $region16: #{conv_block_forward.2} parent=11 // pred_fallthru
        _
      // Predicated region
      $region17: #{conv_block_forward.2} parent=11 // pred_check
        %p187 = pneg %p92
      $region18: #{conv_block_forward.2} parent=11 // pred_check_branch
        %189 = sbr.rel (%p187) target = $region20
      $region19: #{conv_block_forward.2} parent=11 // pred_region
        _
      $region20: #{conv_block_forward.2} parent=11 // pred_fallthru
        _
      // Predicated region
      $region21: #{conv_block_forward.2} parent=11 // pred_check
        %p190 = pneg %p113
      $region22: #{conv_block_forward.2} parent=11 // pred_check_branch
        %192 = sbr.rel (%p190) target = $region24
      $region23: #{conv_block_forward.2} parent=11 // pred_region
        _
      $region24: #{conv_block_forward.2} parent=11 // pred_fallthru
        _
    $region12: #{conv_block_forward.2} parent=5 // pred_fallthru
      _
    %p193 = scmp.lt.s32.totalorder %s12, 8
    // Predicated region
    $region25: #{conv_block_forward.2} parent=5 // pred_check
      %p194 = pneg %p193
    $region26: #{conv_block_forward.2} parent=5 // pred_check_branch
      %196 = sbr.rel (%p194) target = $region28
    $region27: #{conv_block_forward.2} parent=5 // pred_region
      // Predicated region
      $region29: #{conv_block_forward.2} parent=27 // pred_check
        %p197 = pneg %p44
      $region30: #{conv_block_forward.2} parent=27 // pred_check_branch
        %199 = sbr.rel (%p197) target = $region32
      $region31: #{conv_block_forward.2} parent=27 // pred_region
        %p200 = scmp.lt.s32.totalorder %s19, 1
        %s201 = scalar_select %p200, %s19, 1
        %s202 = smul.addr %s201, 32
        %s203 = smul.addr %s202, 4
        %s204 = scalar_lea.vmem %s0, %s203
      $region32: #{conv_block_forward.2} parent=27 // pred_fallthru
        _
    $region28: #{conv_block_forward.2} parent=5 // pred_fallthru
      _
    %p205 = scmp.le.s32.totalorder 1, %s12
    %p206 = scmp.lt.s32.totalorder %s12, 9
    %p207 = pnand %p205, %p206
    %p208 = pneg %p207
    // Predicated region
    $region33: #{conv_block_forward.2} parent=5 // pred_check
      _
    $region34: #{conv_block_forward.2} parent=5 // pred_check_branch
      %210 = sbr.rel (%p207) target = $region36
    $region35: #{conv_block_forward.2} parent=5 // pred_region
      %s211 = ssub.s32 %s12, 1
      %p212 = scmp.lt.s32.totalorder %s21, 1
      %s213 = scalar_select %p212, %s21, 1
      %s214 = smul.addr %s213, 32
      %s215 = smul.addr %s214, 4
      %s216 = scalar_lea.vmem %s0, %s215
      %p217 = pneg %p50
      %p218 = pneg %p47
      %p219 = pneg %p71
      %p220 = pneg %p68
      %p221 = pneg %p92
      %p222 = pneg %p89
      %p223 = pneg %p113
      %p224 = pneg %p110
      %p225 = pneg %p141
      %p226 = pneg %p138
      %s227 = smul.u32 4, %s22
      %p228 = scmp.lt.s32.totalorder %s21, 1
      %s229 = scalar_select %p228, %s21, 1
      %p230 = scmp.lt.s32.totalorder %s227, 15
      %s231 = scalar_select %p230, %s227, 15
      %s232 = smul.addr %s231, 2
      %s233 = smul.addr %s229, 32
      %s234 = sadd.s32 %s232, %s233
      %s235 = smul.addr %s234, 4
      %s236 = scalar_lea.vmem %s4, %s235
      %p237 = pneg %p169
      %p238 = pneg %p166
      %p239 = scmp.lt.s32.totalorder %s21, 1
      %s240 = scalar_select %p239, %s21, 1
      %p241 = scmp.lt.s32.totalorder %s22, 3
      %s242 = scalar_select %p241, %s22, 3
      %s243 = smul.addr %s240, 4
      %s244 = sadd.s32 %s242, %s243
      %s245 = smul.addr %s244, 2
      %s246 = scalar_lea.vmem %s5, %s245
      %p247 = scmp.lt.s32.totalorder %s21, 1
      %s248 = scalar_select %p247, %s21, 1
      %s249 = smul.addr %s248, 32
      %s250 = smul.addr %s249, 4
      %s251 = scalar_lea.vmem %s0, %s250
      %s252 = smul.u32 4, %s22
      %p253 = scmp.lt.s32.totalorder %s21, 1
      %s254 = scalar_select %p253, %s21, 1
      %p255 = scmp.lt.s32.totalorder %s252, 15
      %s256 = scalar_select %p255, %s252, 15
      %s257 = smul.addr %s256, 2
      %s258 = smul.addr %s254, 32
      %s259 = sadd.s32 %s257, %s258
      %s260 = smul.addr %s259, 4
      %s261 = scalar_lea.vmem %s4, %s260
      %s262 = smul.u32 4, %s22
      %p263 = scmp.lt.s32.totalorder %s21, 1
      %s264 = scalar_select %p263, %s21, 1
      %p265 = scmp.lt.s32.totalorder %s22, 3
      %s266 = scalar_select %p265, %s22, 3
      %s267 = smul.addr %s264, 4
      %s268 = sadd.s32 %s266, %s267
      %s269 = smul.addr %s268, 2
      %s270 = scalar_lea.vmem %s5, %s269
      %p272 = scmp.eq.s32.totalorder %s22, 0
      // Predicated region
      $region37: #{conv_block_forward.2} parent=35 // pred_check
        %p273 = pneg %p272
      $region38: #{conv_block_forward.2} parent=35 // pred_check_branch
        %275 = sbr.rel (%p273) target = $region40
      $region39: #{conv_block_forward.2} parent=35 // pred_region
        %v276 = vld [vmem:[%s251] sm:$0xf]
        %v277 = vld [vmem:[%s251 + $0x4] sm:$0xf]
        %v278 = vld [vmem:[%s251 + $0x8] sm:$0xf]
        %v279 = vld [vmem:[%s251 + $0xc] sm:$0xf]
        %v280 = vld [vmem:[%s251 + $0x10] sm:$0xf]
        %v281 = vld [vmem:[%s251 + $0x14] sm:$0xf]
        %v282 = vld [vmem:[%s251 + $0x18] sm:$0xf]
        %v283 = vld [vmem:[%s251 + $0x1c] sm:$0xf]
        %v284 = vld [vmem:[%s251 + $0x20] sm:$0xf]
        %v285 = vld [vmem:[%s251 + $0x24] sm:$0xf]
        %v286 = vld [vmem:[%s251 + $0x28] sm:$0xf]
        %v287 = vld [vmem:[%s251 + $0x2c] sm:$0xf]
        %v288 = vld [vmem:[%s251 + $0x30] sm:$0xf]
        %v289 = vld [vmem:[%s251 + $0x34] sm:$0xf]
        %v290 = vld [vmem:[%s251 + $0x38] sm:$0xf]
        %v291 = vld [vmem:[%s251 + $0x3c] sm:$0xf]
        %v292 = vld [vmem:[%s251 + $0x40] sm:$0xf]
        %v293 = vld [vmem:[%s251 + $0x44] sm:$0xf]
        %v294 = vld [vmem:[%s251 + $0x48] sm:$0xf]
        %v295 = vld [vmem:[%s251 + $0x4c] sm:$0xf]
        %v296 = vld [vmem:[%s251 + $0x50] sm:$0xf]
        %v297 = vld [vmem:[%s251 + $0x54] sm:$0xf]
        %v298 = vld [vmem:[%s251 + $0x58] sm:$0xf]
        %v299 = vld [vmem:[%s251 + $0x5c] sm:$0xf]
        %v300 = vld [vmem:[%s251 + $0x60] sm:$0xf]
        %v301 = vld [vmem:[%s251 + $0x64] sm:$0xf]
        %v302 = vld [vmem:[%s251 + $0x68] sm:$0xf]
        %v303 = vld [vmem:[%s251 + $0x6c] sm:$0xf]
        %v304 = vld [vmem:[%s251 + $0x70] sm:$0xf]
        %v305 = vld [vmem:[%s251 + $0x74] sm:$0xf]
        %v306 = vld [vmem:[%s251 + $0x78] sm:$0xf]
        %v307 = vld [vmem:[%s251 + $0x7c] sm:$0xf]
        %v308 = vunpack.c.l.bf16 %v276
        %v309 = vunpack.c.l.bf16 %v277
        %v310 = vunpack.c.l.bf16 %v278
        %v311 = vunpack.c.l.bf16 %v279
        %v312 = vunpack.c.l.bf16 %v280
        %v313 = vunpack.c.l.bf16 %v281
        %v314 = vunpack.c.l.bf16 %v282
        %v315 = vunpack.c.l.bf16 %v283
        %v316 = vunpack.c.l.bf16 %v284
        %v317 = vunpack.c.l.bf16 %v285
        %v318 = vunpack.c.l.bf16 %v286
        %v319 = vunpack.c.l.bf16 %v287
        %v320 = vunpack.c.l.bf16 %v288
        %v321 = vunpack.c.l.bf16 %v289
        %v322 = vunpack.c.l.bf16 %v290
        %v323 = vunpack.c.l.bf16 %v291
        %v324 = vunpack.c.l.bf16 %v292
        %v325 = vunpack.c.l.bf16 %v293
        %v326 = vunpack.c.l.bf16 %v294
        %v327 = vunpack.c.l.bf16 %v295
        %v328 = vunpack.c.l.bf16 %v296
        %v329 = vunpack.c.l.bf16 %v297
        %v330 = vunpack.c.l.bf16 %v298
        %v331 = vunpack.c.l.bf16 %v299
        %v332 = vunpack.c.l.bf16 %v300
        %v333 = vunpack.c.l.bf16 %v301
        %v334 = vunpack.c.l.bf16 %v302
        %v335 = vunpack.c.l.bf16 %v303
        %v336 = vunpack.c.l.bf16 %v304
        %v337 = vunpack.c.l.bf16 %v305
        %v338 = vunpack.c.l.bf16 %v306
        %v339 = vunpack.c.l.bf16 %v307
        %340 = vst [vmem:[#allocation2] sm:$0xff] 0.0
        %341 = vst [vmem:[#allocation2 + $0x8] sm:$0xff] 0.0
        %342 = vst [vmem:[#allocation2 + $0x10] sm:$0x3] 0.0
        %s343 = scalar_lea.vmem [#allocation2], 408
        %344 = vst [vmem:[%s343] sm:$0xff] 0.0
        %345 = vst [vmem:[%s343 + $0x8] sm:$0xff] 0.0
        %346 = vst [vmem:[%s343 + $0x10] sm:$0x3] 0.0
        %s347 = scalar_lea.vmem [#allocation2], 24
        %348 = vst [vmem:[%s347] sm:$0x1] 0.0
        %349 = vst [vmem:[%s347 + $0x18] sm:$0x1] 0.0
        %350 = vst [vmem:[%s347 + $0x30] sm:$0x1] 0.0
        %351 = vst [vmem:[%s347 + $0x48] sm:$0x1] 0.0
        %352 = vst [vmem:[%s347 + $0x60] sm:$0x1] 0.0
        %353 = vst [vmem:[%s347 + $0x78] sm:$0x1] 0.0
        %354 = vst [vmem:[%s347 + $0x90] sm:$0x1] 0.0
        %355 = vst [vmem:[%s347 + $0xa8] sm:$0x1] 0.0
        %356 = vst [vmem:[%s347 + $0xc0] sm:$0x1] 0.0
        %357 = vst [vmem:[%s347 + $0xd8] sm:$0x1] 0.0
        %358 = vst [vmem:[%s347 + $0xf0] sm:$0x1] 0.0
        %359 = vst [vmem:[%s347 + $0x108] sm:$0x1] 0.0
        %360 = vst [vmem:[%s347 + $0x120] sm:$0x1] 0.0
        %361 = vst [vmem:[%s347 + $0x138] sm:$0x1] 0.0
        %362 = vst [vmem:[%s347 + $0x150] sm:$0x1] 0.0
        %363 = vst [vmem:[%s347 + $0x168] sm:$0x1] 0.0
        %364 = vst [vmem:[%s347 + $0x11] sm:$0x1] 0.0
        %365 = vst [vmem:[%s347 + $0x29] sm:$0x1] 0.0
        %366 = vst [vmem:[%s347 + $0x41] sm:$0x1] 0.0
        %367 = vst [vmem:[%s347 + $0x59] sm:$0x1] 0.0
        %368 = vst [vmem:[%s347 + $0x71] sm:$0x1] 0.0
        %369 = vst [vmem:[%s347 + $0x89] sm:$0x1] 0.0
        %370 = vst [vmem:[%s347 + $0xa1] sm:$0x1] 0.0
        %371 = vst [vmem:[%s347 + $0xb9] sm:$0x1] 0.0
        %372 = vst [vmem:[%s347 + $0xd1] sm:$0x1] 0.0
        %373 = vst [vmem:[%s347 + $0xe9] sm:$0x1] 0.0
        %374 = vst [vmem:[%s347 + $0x101] sm:$0x1] 0.0
        %375 = vst [vmem:[%s347 + $0x119] sm:$0x1] 0.0
        %376 = vst [vmem:[%s347 + $0x131] sm:$0x1] 0.0
        %377 = vst [vmem:[%s347 + $0x149] sm:$0x1] 0.0
        %378 = vst [vmem:[%s347 + $0x161] sm:$0x1] 0.0
        %379 = vst [vmem:[%s347 + $0x179] sm:$0x1] 0.0
        %380 = vst [vmem:[%s347 + $0x1] sm:$0xff] %v308
        %381 = vst [vmem:[%s347 + $0x9] sm:$0xff] %v309
        %382 = vst [vmem:[%s347 + $0x19] sm:$0xff] %v310
        %383 = vst [vmem:[%s347 + $0x21] sm:$0xff] %v311
        %384 = vst [vmem:[%s347 + $0x31] sm:$0xff] %v312
        %385 = vst [vmem:[%s347 + $0x39] sm:$0xff] %v313
        %386 = vst [vmem:[%s347 + $0x49] sm:$0xff] %v314
        %387 = vst [vmem:[%s347 + $0x51] sm:$0xff] %v315
        %388 = vst [vmem:[%s347 + $0x61] sm:$0xff] %v316
        %389 = vst [vmem:[%s347 + $0x69] sm:$0xff] %v317
        %390 = vst [vmem:[%s347 + $0x79] sm:$0xff] %v318
        %391 = vst [vmem:[%s347 + $0x81] sm:$0xff] %v319
        %392 = vst [vmem:[%s347 + $0x91] sm:$0xff] %v320
        %393 = vst [vmem:[%s347 + $0x99] sm:$0xff] %v321
        %394 = vst [vmem:[%s347 + $0xa9] sm:$0xff] %v322
        %395 = vst [vmem:[%s347 + $0xb1] sm:$0xff] %v323
        %396 = vst [vmem:[%s347 + $0xc1] sm:$0xff] %v324
        %397 = vst [vmem:[%s347 + $0xc9] sm:$0xff] %v325
        %398 = vst [vmem:[%s347 + $0xd9] sm:$0xff] %v326
        %399 = vst [vmem:[%s347 + $0xe1] sm:$0xff] %v327
        %400 = vst [vmem:[%s347 + $0xf1] sm:$0xff] %v328
        %401 = vst [vmem:[%s347 + $0xf9] sm:$0xff] %v329
        %402 = vst [vmem:[%s347 + $0x109] sm:$0xff] %v330
        %403 = vst [vmem:[%s347 + $0x111] sm:$0xff] %v331
        %404 = vst [vmem:[%s347 + $0x121] sm:$0xff] %v332
        %405 = vst [vmem:[%s347 + $0x129] sm:$0xff] %v333
        %406 = vst [vmem:[%s347 + $0x139] sm:$0xff] %v334
        %407 = vst [vmem:[%s347 + $0x141] sm:$0xff] %v335
        %408 = vst [vmem:[%s347 + $0x151] sm:$0xff] %v336
        %409 = vst [vmem:[%s347 + $0x159] sm:$0xff] %v337
        %410 = vst [vmem:[%s347 + $0x169] sm:$0xff] %v338
        %411 = vst [vmem:[%s347 + $0x171] sm:$0xff] %v339
      $region40: #{conv_block_forward.2} parent=35 // pred_fallthru
        _
      %s412 = smul.u32 %s22, 4
      %s413 = smul.u32 %s412, 24
      %s414 = scalar_lea.vmem [#allocation2], %s413
      %v415 = vld [vmem:[%s414] sm:$0xff]
      %v416 = vld [vmem:[%s414 + $0x8] sm:$0xff]
      %v417 = vld [vmem:[%s414 + $0x10] sm:$0x3]
      %v418 = vld [vmem:[%s414 + $0x18] sm:$0xff]
      %v419 = vld [vmem:[%s414 + $0x20] sm:$0xff]
      %v420 = vld [vmem:[%s414 + $0x28] sm:$0x3]
      %v421 = vld [vmem:[%s414 + $0x30] sm:$0xff]
      %v422 = vld [vmem:[%s414 + $0x38] sm:$0xff]
      %v423 = vld [vmem:[%s414 + $0x40] sm:$0x3]
      %v424 = vld [vmem:[%s414 + $0x48] sm:$0xff]
      %v425 = vld [vmem:[%s414 + $0x50] sm:$0xff]
      %v426 = vld [vmem:[%s414 + $0x58] sm:$0x3]
      %v427 = vld [vmem:[%s414 + $0x60] sm:$0xff]
      %v428 = vld [vmem:[%s414 + $0x68] sm:$0xff]
      %v429 = vld [vmem:[%s414 + $0x70] sm:$0x3]
      %v430 = vld [vmem:[%s414 + $0x78] sm:$0xff]
      %v431 = vld [vmem:[%s414 + $0x80] sm:$0xff]
      %v432 = vld [vmem:[%s414 + $0x88] sm:$0x3]
      %v433 = vpack.c.bf16 %v416, %v415
      %v434 = vpack.c.bf16 %v417, %v417
      %v435 = vpack.c.bf16 %v419, %v418
      %v436 = vpack.c.bf16 %v420, %v420
      %v437 = vpack.c.bf16 %v422, %v421
      %v438 = vpack.c.bf16 %v423, %v423
      %v439 = vpack.c.bf16 %v425, %v424
      %v440 = vpack.c.bf16 %v426, %v426
      %v441 = vpack.c.bf16 %v428, %v427
      %v442 = vpack.c.bf16 %v429, %v429
      %v443 = vpack.c.bf16 %v431, %v430
      %v444 = vpack.c.bf16 %v432, %v432
      %vm445 = vsmask.f32 7424
      %v447 = vshrl.u32 %v433, 16
      %v449 = vshll.u32 %v433, 16
      %v451 = vrot.slane %v449, 1
      %v452 = vor.u32 %v447, %v451
      %v454 = vshll.u32 %v434, 16
      %v456 = vrot.slane %v454, 1
      %v457 = vsel %vm445, %v452, %v456
      %v459 = vshrl.u32 %v435, 16
      %v461 = vshll.u32 %v435, 16
      %v463 = vrot.slane %v461, 1
      %v464 = vor.u32 %v459, %v463
      %v466 = vshll.u32 %v436, 16
      %v468 = vrot.slane %v466, 1
      %v469 = vsel %vm445, %v464, %v468
      %v471 = vshrl.u32 %v437, 16
      %v473 = vshll.u32 %v437, 16
      %v475 = vrot.slane %v473, 1
      %v476 = vor.u32 %v471, %v475
      %v478 = vshll.u32 %v438, 16
      %v480 = vrot.slane %v478, 1
      %v481 = vsel %vm445, %v476, %v480
      %v483 = vshrl.u32 %v439, 16
      %v485 = vshll.u32 %v439, 16
      %v487 = vrot.slane %v485, 1
      %v488 = vor.u32 %v483, %v487
      %v490 = vshll.u32 %v440, 16
      %v492 = vrot.slane %v490, 1
      %v493 = vsel %vm445, %v488, %v492
      %vm506 = vcmask 1046528
      %v507 = vrot.slane %v433, 1
      %v508 = vrot.slane %v434, 1
      %v509 = vsel %vm506, %v507, %v508
      %v510 = vrot.slane %v435, 1
      %v511 = vrot.slane %v436, 1
      %v512 = vsel %vm506, %v510, %v511
      %v513 = vrot.slane %v437, 1
      %v514 = vrot.slane %v438, 1
      %v515 = vsel %vm506, %v513, %v514
      %v516 = vrot.slane %v439, 1
      %v517 = vrot.slane %v440, 1
      %v518 = vsel %vm506, %v516, %v517
      %v524 = vshrl.u32 %v441, 16
      %v526 = vshll.u32 %v441, 16
      %v528 = vrot.slane %v526, 1
      %v529 = vor.u32 %v524, %v528
      %v531 = vshll.u32 %v442, 16
      %v533 = vrot.slane %v531, 1
      %v534 = vsel %vm445, %v529, %v533
      %v538 = vrot.slane %v441, 1
      %v539 = vrot.slane %v442, 1
      %v540 = vsel %vm506, %v538, %v539
      %v543 = vshrl.u32 %v443, 16
      %v545 = vshll.u32 %v443, 16
      %v547 = vrot.slane %v545, 1
      %v548 = vor.u32 %v543, %v547
      %v550 = vshll.u32 %v444, 16
      %v552 = vrot.slane %v550, 1
      %v553 = vsel %vm445, %v548, %v552
      %v557 = vrot.slane %v443, 1
      %v558 = vrot.slane %v444, 1
      %v559 = vsel %vm506, %v557, %v558
      %v561 = vld [vmem:[%s1] sm:$0xf]
      %v562 = vld [vmem:[%s1 + $0x4] sm:$0xf]
      %v563 = vld [vmem:[%s1 + $0x8] sm:$0xf]
      %v564 = vld [vmem:[%s1 + $0xc] sm:$0xf]
      %v565 = vld [vmem:[%s1 + $0x10] sm:$0xf]
      %v566 = vld [vmem:[%s1 + $0x14] sm:$0xf]
      %v567 = vld [vmem:[%s1 + $0x18] sm:$0xf]
      %v568 = vld [vmem:[%s1 + $0x1c] sm:$0xf]
      %v569 = vld [vmem:[%s1 + $0x20] sm:$0xf]
      %v570 = vld [vmem:[%s1 + $0x24] sm:$0xf]
      %v571 = vld [vmem:[%s1 + $0x28] sm:$0xf]
      %v572 = vld [vmem:[%s1 + $0x2c] sm:$0xf]
      %v573 = vld [vmem:[%s1 + $0x30] sm:$0xf]
      %v574 = vld [vmem:[%s1 + $0x34] sm:$0xf]
      %v575 = vld [vmem:[%s1 + $0x38] sm:$0xf]
      %v576 = vld [vmem:[%s1 + $0x3c] sm:$0xf]
      %v577 = vld [vmem:[%s1 + $0x40] sm:$0xf]
      %v578 = vld [vmem:[%s1 + $0x44] sm:$0xf]
      %v579 = vld [vmem:[%s1 + $0x48] sm:$0xf]
      %v580 = vld [vmem:[%s1 + $0x4c] sm:$0xf]
      %v581 = vld [vmem:[%s1 + $0x50] sm:$0xf]
      %v582 = vld [vmem:[%s1 + $0x54] sm:$0xf]
      %v583 = vld [vmem:[%s1 + $0x58] sm:$0xf]
      %v584 = vld [vmem:[%s1 + $0x5c] sm:$0xf]
      %v585 = vld [vmem:[%s1 + $0x60] sm:$0xf]
      %v586 = vld [vmem:[%s1 + $0x64] sm:$0xf]
      %v587 = vld [vmem:[%s1 + $0x68] sm:$0xf]
      %v588 = vld [vmem:[%s1 + $0x6c] sm:$0xf]
      %v589 = vld [vmem:[%s1 + $0x70] sm:$0xf]
      %v590 = vld [vmem:[%s1 + $0x74] sm:$0xf]
      %v591 = vld [vmem:[%s1 + $0x78] sm:$0xf]
      %v592 = vld [vmem:[%s1 + $0x7c] sm:$0xf]
      %v593 = vld [vmem:[%s1 + $0x80] sm:$0xf]
      %v594 = vld [vmem:[%s1 + $0x84] sm:$0xf]
      %v595 = vld [vmem:[%s1 + $0x88] sm:$0xf]
      %v596 = vld [vmem:[%s1 + $0x8c] sm:$0xf]
      %v597 = vld [vmem:[%s1 + $0x90] sm:$0xf]
      %v598 = vld [vmem:[%s1 + $0x94] sm:$0xf]
      %v599 = vld [vmem:[%s1 + $0x98] sm:$0xf]
      %v600 = vld [vmem:[%s1 + $0x9c] sm:$0xf]
      %v601 = vld [vmem:[%s1 + $0xa0] sm:$0xf]
      %v602 = vld [vmem:[%s1 + $0xa4] sm:$0xf]
      %v603 = vld [vmem:[%s1 + $0xa8] sm:$0xf]
      %v604 = vld [vmem:[%s1 + $0xac] sm:$0xf]
      %v605 = vld [vmem:[%s1 + $0xb0] sm:$0xf]
      %v606 = vld [vmem:[%s1 + $0xb4] sm:$0xf]
      %v607 = vld [vmem:[%s1 + $0xb8] sm:$0xf]
      %v608 = vld [vmem:[%s1 + $0xbc] sm:$0xf]
      %v609 = vld [vmem:[%s1 + $0xc0] sm:$0xf]
      %v610 = vld [vmem:[%s1 + $0xc4] sm:$0xf]
      %v611 = vld [vmem:[%s1 + $0xc8] sm:$0xf]
      %v612 = vld [vmem:[%s1 + $0xcc] sm:$0xf]
      %v613 = vld [vmem:[%s1 + $0xd0] sm:$0xf]
      %v614 = vld [vmem:[%s1 + $0xd4] sm:$0xf]
      %v615 = vld [vmem:[%s1 + $0xd8] sm:$0xf]
      %v616 = vld [vmem:[%s1 + $0xdc] sm:$0xf]
      %v617 = vld [vmem:[%s1 + $0xe0] sm:$0xf]
      %v618 = vld [vmem:[%s1 + $0xe4] sm:$0xf]
      %v619 = vld [vmem:[%s1 + $0xe8] sm:$0xf]
      %v620 = vld [vmem:[%s1 + $0xec] sm:$0xf]
      %v621 = vld [vmem:[%s1 + $0xf0] sm:$0xf]
      %v622 = vld [vmem:[%s1 + $0xf4] sm:$0xf]
      %v623 = vld [vmem:[%s1 + $0xf8] sm:$0xf]
      %v624 = vld [vmem:[%s1 + $0xfc] sm:$0xf]
      %v625 = vld [vmem:[%s1 + $0x100] sm:$0xf]
      %v626 = vld [vmem:[%s1 + $0x104] sm:$0xf]
      %v627 = vld [vmem:[%s1 + $0x108] sm:$0xf]
      %v628 = vld [vmem:[%s1 + $0x10c] sm:$0xf]
      %v629 = vld [vmem:[%s1 + $0x110] sm:$0xf]
      %v630 = vld [vmem:[%s1 + $0x114] sm:$0xf]
      %v631 = vld [vmem:[%s1 + $0x118] sm:$0xf]
      %v632 = vld [vmem:[%s1 + $0x11c] sm:$0xf]
      %v633 = vld [vmem:[%s1 + $0x120] sm:$0xf]
      %v634 = vld [vmem:[%s1 + $0x124] sm:$0xf]
      %v635 = vld [vmem:[%s1 + $0x128] sm:$0xf]
      %v636 = vld [vmem:[%s1 + $0x12c] sm:$0xf]
      %v637 = vld [vmem:[%s1 + $0x130] sm:$0xf]
      %v638 = vld [vmem:[%s1 + $0x134] sm:$0xf]
      %v639 = vld [vmem:[%s1 + $0x138] sm:$0xf]
      %v640 = vld [vmem:[%s1 + $0x13c] sm:$0xf]
      %v641 = vld [vmem:[%s1 + $0x140] sm:$0xf]
      %v642 = vld [vmem:[%s1 + $0x144] sm:$0xf]
      %v643 = vld [vmem:[%s1 + $0x148] sm:$0xf]
      %v644 = vld [vmem:[%s1 + $0x14c] sm:$0xf]
      %v645 = vld [vmem:[%s1 + $0x150] sm:$0xf]
      %v646 = vld [vmem:[%s1 + $0x154] sm:$0xf]
      %v647 = vld [vmem:[%s1 + $0x158] sm:$0xf]
      %v648 = vld [vmem:[%s1 + $0x15c] sm:$0xf]
      %v649 = vld [vmem:[%s1 + $0x160] sm:$0xf]
      %v650 = vld [vmem:[%s1 + $0x164] sm:$0xf]
      %v651 = vld [vmem:[%s1 + $0x168] sm:$0xf]
      %v652 = vld [vmem:[%s1 + $0x16c] sm:$0xf]
      %v653 = vld [vmem:[%s1 + $0x170] sm:$0xf]
      %v654 = vld [vmem:[%s1 + $0x174] sm:$0xf]
      %v655 = vld [vmem:[%s1 + $0x178] sm:$0xf]
      %v656 = vld [vmem:[%s1 + $0x17c] sm:$0xf]
      %v657 = vld [vmem:[%s1 + $0x180] sm:$0xf]
      %v658 = vld [vmem:[%s1 + $0x184] sm:$0xf]
      %v659 = vld [vmem:[%s1 + $0x188] sm:$0xf]
      %v660 = vld [vmem:[%s1 + $0x18c] sm:$0xf]
      %v661 = vld [vmem:[%s1 + $0x190] sm:$0xf]
      %v662 = vld [vmem:[%s1 + $0x194] sm:$0xf]
      %v663 = vld [vmem:[%s1 + $0x198] sm:$0xf]
      %v664 = vld [vmem:[%s1 + $0x19c] sm:$0xf]
      %v665 = vld [vmem:[%s1 + $0x1a0] sm:$0xf]
      %v666 = vld [vmem:[%s1 + $0x1a4] sm:$0xf]
      %v667 = vld [vmem:[%s1 + $0x1a8] sm:$0xf]
      %v668 = vld [vmem:[%s1 + $0x1ac] sm:$0xf]
      %v669 = vld [vmem:[%s1 + $0x1b0] sm:$0xf]
      %v670 = vld [vmem:[%s1 + $0x1b4] sm:$0xf]
      %v671 = vld [vmem:[%s1 + $0x1b8] sm:$0xf]
      %v672 = vld [vmem:[%s1 + $0x1bc] sm:$0xf]
      %v673 = vld [vmem:[%s1 + $0x1c0] sm:$0xf]
      %v674 = vld [vmem:[%s1 + $0x1c4] sm:$0xf]
      %v675 = vld [vmem:[%s1 + $0x1c8] sm:$0xf]
      %v676 = vld [vmem:[%s1 + $0x1cc] sm:$0xf]
      %v677 = vld [vmem:[%s1 + $0x1d0] sm:$0xf]
      %v678 = vld [vmem:[%s1 + $0x1d4] sm:$0xf]
      %v679 = vld [vmem:[%s1 + $0x1d8] sm:$0xf]
      %v680 = vld [vmem:[%s1 + $0x1dc] sm:$0xf]
      %v681 = vld [vmem:[%s1 + $0x1e0] sm:$0xf]
      %v682 = vld [vmem:[%s1 + $0x1e4] sm:$0xf]
      %v683 = vld [vmem:[%s1 + $0x1e8] sm:$0xf]
      %v684 = vld [vmem:[%s1 + $0x1ec] sm:$0xf]
      %v685 = vld [vmem:[%s1 + $0x1f0] sm:$0xf]
      %v686 = vld [vmem:[%s1 + $0x1f4] sm:$0xf]
      %v687 = vld [vmem:[%s1 + $0x1f8] sm:$0xf]
      %v688 = vld [vmem:[%s1 + $0x1fc] sm:$0xf]
      %v689 = vld [vmem:[%s1 + $0x200] sm:$0xf]
      %v690 = vld [vmem:[%s1 + $0x204] sm:$0xf]
      %v691 = vld [vmem:[%s1 + $0x208] sm:$0xf]
      %v692 = vld [vmem:[%s1 + $0x20c] sm:$0xf]
      %v693 = vld [vmem:[%s1 + $0x210] sm:$0xf]
      %v694 = vld [vmem:[%s1 + $0x214] sm:$0xf]
      %v695 = vld [vmem:[%s1 + $0x218] sm:$0xf]
      %v696 = vld [vmem:[%s1 + $0x21c] sm:$0xf]
      %v697 = vld [vmem:[%s1 + $0x220] sm:$0xf]
      %v698 = vld [vmem:[%s1 + $0x224] sm:$0xf]
      %v699 = vld [vmem:[%s1 + $0x228] sm:$0xf]
      %v700 = vld [vmem:[%s1 + $0x22c] sm:$0xf]
      %v701 = vld [vmem:[%s1 + $0x230] sm:$0xf]
      %v702 = vld [vmem:[%s1 + $0x234] sm:$0xf]
      %v703 = vld [vmem:[%s1 + $0x238] sm:$0xf]
      %v704 = vld [vmem:[%s1 + $0x23c] sm:$0xf]
      %v849 = vunpack.c.l.b16 %v561
      %v850 = vunpack.c.l.b16 %v562
      %v851 = vunpack.c.l.b16 %v563
      %v852 = vunpack.c.l.b16 %v564
      %v853 = vunpack.c.l.b16 %v565
      %v854 = vunpack.c.l.b16 %v566
      %v855 = vunpack.c.l.b16 %v567
      %v856 = vunpack.c.l.b16 %v568
      %v857 = vunpack.c.l.b16 %v569
      %v858 = vunpack.c.l.b16 %v570
      %v859 = vunpack.c.l.b16 %v571
      %v860 = vunpack.c.l.b16 %v572
      %v861 = vunpack.c.l.b16 %v573
      %v862 = vunpack.c.l.b16 %v574
      %v863 = vunpack.c.l.b16 %v575
      %v864 = vunpack.c.l.b16 %v576
      %v865 = vunpack.c.l.b16 %v577
      %v866 = vunpack.c.l.b16 %v578
      %v867 = vunpack.c.l.b16 %v579
      %v868 = vunpack.c.l.b16 %v580
      %v869 = vunpack.c.l.b16 %v581
      %v870 = vunpack.c.l.b16 %v582
      %v871 = vunpack.c.l.b16 %v583
      %v872 = vunpack.c.l.b16 %v584
      %v873 = vunpack.c.l.b16 %v585
      %v874 = vunpack.c.l.b16 %v586
      %v875 = vunpack.c.l.b16 %v587
      %v876 = vunpack.c.l.b16 %v588
      %v877 = vunpack.c.l.b16 %v589
      %v878 = vunpack.c.l.b16 %v590
      %v879 = vunpack.c.l.b16 %v591
      %v880 = vunpack.c.l.b16 %v592
      %v881 = vunpack.c.l.b16 %v593
      %v882 = vunpack.c.l.b16 %v594
      %v883 = vunpack.c.l.b16 %v595
      %v884 = vunpack.c.l.b16 %v596
      %v885 = vunpack.c.l.b16 %v597
      %v886 = vunpack.c.l.b16 %v598
      %v887 = vunpack.c.l.b16 %v599
      %v888 = vunpack.c.l.b16 %v600
      %v889 = vunpack.c.l.b16 %v601
      %v890 = vunpack.c.l.b16 %v602
      %v891 = vunpack.c.l.b16 %v603
      %v892 = vunpack.c.l.b16 %v604
      %v893 = vunpack.c.l.b16 %v605
      %v894 = vunpack.c.l.b16 %v606
      %v895 = vunpack.c.l.b16 %v607
      %v896 = vunpack.c.l.b16 %v608
      %v897 = vunpack.c.l.b16 %v609
      %v898 = vunpack.c.l.b16 %v610
      %v899 = vunpack.c.l.b16 %v611
      %v900 = vunpack.c.l.b16 %v612
      %v901 = vunpack.c.l.b16 %v613
      %v902 = vunpack.c.l.b16 %v614
      %v903 = vunpack.c.l.b16 %v615
      %v904 = vunpack.c.l.b16 %v616
      %v905 = vunpack.c.l.b16 %v617
      %v906 = vunpack.c.l.b16 %v618
      %v907 = vunpack.c.l.b16 %v619
      %v908 = vunpack.c.l.b16 %v620
      %v909 = vunpack.c.l.b16 %v621
      %v910 = vunpack.c.l.b16 %v622
      %v911 = vunpack.c.l.b16 %v623
      %v912 = vunpack.c.l.b16 %v624
      %v913 = vunpack.c.l.b16 %v625
      %v914 = vunpack.c.l.b16 %v626
      %v915 = vunpack.c.l.b16 %v627
      %v916 = vunpack.c.l.b16 %v628
      %v917 = vunpack.c.l.b16 %v629
      %v918 = vunpack.c.l.b16 %v630
      %v919 = vunpack.c.l.b16 %v631
      %v920 = vunpack.c.l.b16 %v632
      %v921 = vunpack.c.l.b16 %v633
      %v922 = vunpack.c.l.b16 %v634
      %v923 = vunpack.c.l.b16 %v635
      %v924 = vunpack.c.l.b16 %v636
      %v925 = vunpack.c.l.b16 %v637
      %v926 = vunpack.c.l.b16 %v638
      %v927 = vunpack.c.l.b16 %v639
      %v928 = vunpack.c.l.b16 %v640
      %v929 = vunpack.c.l.b16 %v641
      %v930 = vunpack.c.l.b16 %v642
      %v931 = vunpack.c.l.b16 %v643
      %v932 = vunpack.c.l.b16 %v644
      %v933 = vunpack.c.l.b16 %v645
      %v934 = vunpack.c.l.b16 %v646
      %v935 = vunpack.c.l.b16 %v647
      %v936 = vunpack.c.l.b16 %v648
      %v937 = vunpack.c.l.b16 %v649
      %v938 = vunpack.c.l.b16 %v650
      %v939 = vunpack.c.l.b16 %v651
      %v940 = vunpack.c.l.b16 %v652
      %v941 = vunpack.c.l.b16 %v653
      %v942 = vunpack.c.l.b16 %v654
      %v943 = vunpack.c.l.b16 %v655
      %v944 = vunpack.c.l.b16 %v656
      %v945 = vunpack.c.l.b16 %v657
      %v946 = vunpack.c.l.b16 %v658
      %v947 = vunpack.c.l.b16 %v659
      %v948 = vunpack.c.l.b16 %v660
      %v949 = vunpack.c.l.b16 %v661
      %v950 = vunpack.c.l.b16 %v662
      %v951 = vunpack.c.l.b16 %v663
      %v952 = vunpack.c.l.b16 %v664
      %v953 = vunpack.c.l.b16 %v665
      %v954 = vunpack.c.l.b16 %v666
      %v955 = vunpack.c.l.b16 %v667
      %v956 = vunpack.c.l.b16 %v668
      %v957 = vunpack.c.l.b16 %v669
      %v958 = vunpack.c.l.b16 %v670
      %v959 = vunpack.c.l.b16 %v671
      %v960 = vunpack.c.l.b16 %v672
      %v961 = vunpack.c.l.b16 %v673
      %v962 = vunpack.c.l.b16 %v674
      %v963 = vunpack.c.l.b16 %v675
      %v964 = vunpack.c.l.b16 %v676
      %v965 = vunpack.c.l.b16 %v677
      %v966 = vunpack.c.l.b16 %v678
      %v967 = vunpack.c.l.b16 %v679
      %v968 = vunpack.c.l.b16 %v680
      %v969 = vunpack.c.l.b16 %v681
      %v970 = vunpack.c.l.b16 %v682
      %v971 = vunpack.c.l.b16 %v683
      %v972 = vunpack.c.l.b16 %v684
      %v973 = vunpack.c.l.b16 %v685
      %v974 = vunpack.c.l.b16 %v686
      %v975 = vunpack.c.l.b16 %v687
      %v976 = vunpack.c.l.b16 %v688
      %v977 = vunpack.c.l.b16 %v689
      %v978 = vunpack.c.l.b16 %v690
      %v979 = vunpack.c.l.b16 %v691
      %v980 = vunpack.c.l.b16 %v692
      %v981 = vunpack.c.l.b16 %v693
      %v982 = vunpack.c.l.b16 %v694
      %v983 = vunpack.c.l.b16 %v695
      %v984 = vunpack.c.l.b16 %v696
      %v985 = vunpack.c.l.b16 %v697
      %v986 = vunpack.c.l.b16 %v698
      %v987 = vunpack.c.l.b16 %v699
      %v988 = vunpack.c.l.b16 %v700
      %v989 = vunpack.c.l.b16 %v701
      %v990 = vunpack.c.l.b16 %v702
      %v991 = vunpack.c.l.b16 %v703
      %v992 = vunpack.c.l.b16 %v704
      %v993 = vpack.c.b16 %v850, %v849
      %v994 = vpack.c.b16 %v852, %v851
      %v995 = vpack.c.b16 %v854, %v853
      %v996 = vpack.c.b16 %v856, %v855
      %v997 = vpack.c.b16 %v858, %v857
      %v998 = vpack.c.b16 %v860, %v859
      %v999 = vpack.c.b16 %v862, %v861
      %v1000 = vpack.c.b16 %v864, %v863
      %v1001 = vpack.c.b16 %v866, %v865
      %v1002 = vpack.c.b16 %v868, %v867
      %v1003 = vpack.c.b16 %v870, %v869
      %v1004 = vpack.c.b16 %v872, %v871
      %v1005 = vpack.c.b16 %v874, %v873
      %v1006 = vpack.c.b16 %v876, %v875
      %v1007 = vpack.c.b16 %v878, %v877
      %v1008 = vpack.c.b16 %v880, %v879
      %v1009 = vpack.c.b16 %v882, %v881
      %v1010 = vpack.c.b16 %v884, %v883
      %v1011 = vpack.c.b16 %v886, %v885
      %v1012 = vpack.c.b16 %v888, %v887
      %v1013 = vpack.c.b16 %v890, %v889
      %v1014 = vpack.c.b16 %v892, %v891
      %v1015 = vpack.c.b16 %v894, %v893
      %v1016 = vpack.c.b16 %v896, %v895
      %v1017 = vpack.c.b16 %v898, %v897
      %v1018 = vpack.c.b16 %v900, %v899
      %v1019 = vpack.c.b16 %v902, %v901
      %v1020 = vpack.c.b16 %v904, %v903
      %v1021 = vpack.c.b16 %v906, %v905
      %v1022 = vpack.c.b16 %v908, %v907
      %v1023 = vpack.c.b16 %v910, %v909
      %v1024 = vpack.c.b16 %v912, %v911
      %v1025 = vpack.c.b16 %v914, %v913
      %v1026 = vpack.c.b16 %v916, %v915
      %v1027 = vpack.c.b16 %v918, %v917
      %v1028 = vpack.c.b16 %v920, %v919
      %v1029 = vpack.c.b16 %v922, %v921
      %v1030 = vpack.c.b16 %v924, %v923
      %v1031 = vpack.c.b16 %v926, %v925
      %v1032 = vpack.c.b16 %v928, %v927
      %v1033 = vpack.c.b16 %v930, %v929
      %v1034 = vpack.c.b16 %v932, %v931
      %v1035 = vpack.c.b16 %v934, %v933
      %v1036 = vpack.c.b16 %v936, %v935
      %v1037 = vpack.c.b16 %v938, %v937
      %v1038 = vpack.c.b16 %v940, %v939
      %v1039 = vpack.c.b16 %v942, %v941
      %v1040 = vpack.c.b16 %v944, %v943
      %v1041 = vpack.c.b16 %v946, %v945
      %v1042 = vpack.c.b16 %v948, %v947
      %v1043 = vpack.c.b16 %v950, %v949
      %v1044 = vpack.c.b16 %v952, %v951
      %v1045 = vpack.c.b16 %v954, %v953
      %v1046 = vpack.c.b16 %v956, %v955
      %v1047 = vpack.c.b16 %v958, %v957
      %v1048 = vpack.c.b16 %v960, %v959
      %v1049 = vpack.c.b16 %v962, %v961
      %v1050 = vpack.c.b16 %v964, %v963
      %v1051 = vpack.c.b16 %v966, %v965
      %v1052 = vpack.c.b16 %v968, %v967
      %v1053 = vpack.c.b16 %v970, %v969
      %v1054 = vpack.c.b16 %v972, %v971
      %v1055 = vpack.c.b16 %v974, %v973
      %v1056 = vpack.c.b16 %v976, %v975
      %v1057 = vpack.c.b16 %v978, %v977
      %v1058 = vpack.c.b16 %v980, %v979
      %v1059 = vpack.c.b16 %v982, %v981
      %v1060 = vpack.c.b16 %v984, %v983
      %v1061 = vpack.c.b16 %v986, %v985
      %v1062 = vpack.c.b16 %v988, %v987
      %v1063 = vpack.c.b16 %v990, %v989
      %v1064 = vpack.c.b16 %v992, %v991
      %1137 = vmatprep.subr.bf16.mxu0 0
      %1138 = vmatpush1.bf16.msra.mxu0 %v993
      %1139 = vmatprep.subr.bf16.mxu0 0
      %1140 = vmatpush1.bf16.msra.mxu0 %v994
      %1141 = vmatprep.subr.bf16.mxu0 0
      %1142 = vmatpush1.bf16.msra.mxu0 %v995
      %1143 = vmatprep.subr.bf16.mxu0 0
      %1144 = vmatpush1.bf16.msra.mxu0 %v996
      %1145 = vmatprep.subr.bf16.mxu0 0
      %1146 = vmatpush1.bf16.msra.mxu0 %v997
      %1147 = vmatprep.subr.bf16.mxu0 0
      %1148 = vmatpush1.bf16.msra.mxu0 %v998
      %1149 = vmatprep.subr.bf16.mxu0 0
      %1150 = vmatpush1.bf16.msra.mxu0 %v999
      %1151 = vmatprep.subr.bf16.mxu0 0
      %1152 = vmatpush1.bf16.msra.mxu0 %v1000
      %1153 = vmatprep.subr.bf16.mxu0 0
      %1154 = vmatpush1.bf16.msra.mxu0 %v1001
      %1155 = vmatprep.subr.bf16.mxu0 0
      %1156 = vmatpush1.bf16.msra.mxu0 %v1002
      %1157 = vmatprep.subr.bf16.mxu0 0
      %1158 = vmatpush1.bf16.msra.mxu0 %v1003
      %1159 = vmatprep.subr.bf16.mxu0 0
      %1160 = vmatpush1.bf16.msra.mxu0 %v1004
      %1161 = vmatprep.subr.bf16.mxu0 0
      %1162 = vmatpush1.bf16.msra.mxu0 %v1005
      %1163 = vmatprep.subr.bf16.mxu0 0
      %1164 = vmatpush1.bf16.msra.mxu0 %v1006
      %1165 = vmatprep.subr.bf16.mxu0 0
      %1166 = vmatpush1.bf16.msra.mxu0 %v1007
      %1167 = vmatprep.subr.bf16.mxu0 0
      %1168 = vmatpush1.bf16.msra.mxu0 %v1008
      %1169 = vmatprep.mubr.bf16.mxu0 %v457
      %1170 = vmatmul.mubr.bf16.gmra.mrb[0].mxu0 %v433
      %v1171 = vpop.f32.mrb[0].mxu0
      %v1172 = vadd.f32 0.0, %v1171
      %v1173 = vpop.f32.mrb[0].mxu0
      %v1174 = vpop.f32.mrb[0].mxu0
      %v1175 = vadd.f32 0.0, %v1174
      %v1176 = vpop.f32.mrb[0].mxu0
      %1177 = vmatprep.mubr.bf16.mxu0 %v469
      %1178 = vmatmul.mubr.bf16.gmra.mrb[0].mxu0 %v435
      %v1179 = vpop.f32.mrb[0].mxu0
      %v1180 = vadd.f32 0.0, %v1179
      %v1181 = vpop.f32.mrb[0].mxu0
      %v1182 = vpop.f32.mrb[0].mxu0
      %v1183 = vadd.f32 0.0, %v1182
      %v1184 = vpop.f32.mrb[0].mxu0
      %1185 = vmatprep.mubr.bf16.mxu0 %v481
      %1186 = vmatmul.mubr.bf16.gmra.mrb[0].mxu0 %v437
      %v1187 = vpop.f32.mrb[0].mxu0
      %v1188 = vadd.f32 0.0, %v1187
      %v1189 = vpop.f32.mrb[0].mxu0
      %v1190 = vpop.f32.mrb[0].mxu0
      %v1191 = vadd.f32 0.0, %v1190
      %v1192 = vpop.f32.mrb[0].mxu0
      %1193 = vmatprep.mubr.bf16.mxu0 %v493
      %1194 = vmatmul.mubr.bf16.gmra.mrb[0].mxu0 %v439
      %v1195 = vpop.f32.mrb[0].mxu0
      %v1196 = vadd.f32 0.0, %v1195
      %v1197 = vpop.f32.mrb[0].mxu0
      %v1198 = vpop.f32.mrb[0].mxu0
      %v1199 = vadd.f32 0.0, %v1198
      %v1200 = vpop.f32.mrb[0].mxu0
      %1201 = vdwg.mxu0
      %1202 = vmatprep.subr.bf16.mxu0 0
      %1203 = vmatpush1.bf16.msra.mxu0 %v1009
      %1204 = vmatprep.subr.bf16.mxu0 0
      %1205 = vmatpush1.bf16.msra.mxu0 %v1010
      %1206 = vmatprep.subr.bf16.mxu0 0
      %1207 = vmatpush1.bf16.msra.mxu0 %v1011
      %1208 = vmatprep.subr.bf16.mxu0 0
      %1209 = vmatpush1.bf16.msra.mxu0 %v1012
      %1210 = vmatprep.subr.bf16.mxu0 0
      %1211 = vmatpush1.bf16.msra.mxu0 %v1013
      %1212 = vmatprep.subr.bf16.mxu0 0
      %1213 = vmatpush1.bf16.msra.mxu0 %v1014
      %1214 = vmatprep.subr.bf16.mxu0 0
      %1215 = vmatpush1.bf16.msra.mxu0 %v1015
      %1216 = vmatprep.subr.bf16.mxu0 0
      %1217 = vmatpush1.bf16.msra.mxu0 %v1016
      %1218 = vmatprep.subr.bf16.mxu0 0
      %1219 = vmatpush1.bf16.msra.mxu0 %v1017
      %1220 = vmatprep.subr.bf16.mxu0 0
      %1221 = vmatpush1.bf16.msra.mxu0 %v1018
      %1222 = vmatprep.subr.bf16.mxu0 0
      %1223 = vmatpush1.bf16.msra.mxu0 %v1019
      %1224 = vmatprep.subr.bf16.mxu0 0
      %1225 = vmatpush1.bf16.msra.mxu0 %v1020
      %1226 = vmatprep.subr.bf16.mxu0 0
      %1227 = vmatpush1.bf16.msra.mxu0 %v1021
      %1228 = vmatprep.subr.bf16.mxu0 0
      %1229 = vmatpush1.bf16.msra.mxu0 %v1022
      %1230 = vmatprep.subr.bf16.mxu0 0
      %1231 = vmatpush1.bf16.msra.mxu0 %v1023
      %1232 = vmatprep.subr.bf16.mxu0 0
      %1233 = vmatpush1.bf16.msra.mxu0 %v1024
      %1234 = vmatprep.mubr.bf16.mxu0 %v435
      %1235 = vmatmul.mubr.bf16.gmra.mrb[0].mxu0 %v509
      %v1236 = vpop.f32.mrb[0].mxu0
      %v1237 = vadd.f32 %v1172, %v1236
      %v1238 = vpop.f32.mrb[0].mxu0
      %v1239 = vpop.f32.mrb[0].mxu0
      %v1240 = vadd.f32 %v1175, %v1239
      %v1241 = vpop.f32.mrb[0].mxu0
      %1242 = vmatprep.mubr.bf16.mxu0 %v437
      %1243 = vmatmul.mubr.bf16.gmra.mrb[0].mxu0 %v512
      %v1244 = vpop.f32.mrb[0].mxu0
      %v1245 = vadd.f32 %v1180, %v1244
      %v1246 = vpop.f32.mrb[0].mxu0
      %v1247 = vpop.f32.mrb[0].mxu0
      %v1248 = vadd.f32 %v1183, %v1247
      %v1249 = vpop.f32.mrb[0].mxu0
      %1250 = vmatprep.mubr.bf16.mxu0 %v439
      %1251 = vmatmul.mubr.bf16.gmra.mrb[0].mxu0 %v515
      %v1252 = vpop.f32.mrb[0].mxu0
      %v1253 = vadd.f32 %v1188, %v1252
      %v1254 = vpop.f32.mrb[0].mxu0
      %v1255 = vpop.f32.mrb[0].mxu0
      %v1256 = vadd.f32 %v1191, %v1255
      %v1257 = vpop.f32.mrb[0].mxu0
      %1258 = vmatprep.mubr.bf16.mxu0 %v441
      %1259 = vmatmul.mubr.bf16.gmra.mrb[0].mxu0 %v518
      %v1260 = vpop.f32.mrb[0].mxu0
      %v1261 = vadd.f32 %v1196, %v1260
      %v1262 = vpop.f32.mrb[0].mxu0
      %v1263 = vpop.f32.mrb[0].mxu0
      %v1264 = vadd.f32 %v1199, %v1263
      %v1265 = vpop.f32.mrb[0].mxu0
      %1266 = vdwg.mxu0
      %1267 = vmatprep.subr.bf16.mxu0 0
      %1268 = vmatpush1.bf16.msra.mxu0 %v1025
      %1269 = vmatprep.subr.bf16.mxu0 0
      %1270 = vmatpush1.bf16.msra.mxu0 %v1026
      %1271 = vmatprep.subr.bf16.mxu0 0
      %1272 = vmatpush1.bf16.msra.mxu0 %v1027
      %1273 = vmatprep.subr.bf16.mxu0 0
      %1274 = vmatpush1.bf16.msra.mxu0 %v1028
      %1275 = vmatprep.subr.bf16.mxu0 0
      %1276 = vmatpush1.bf16.msra.mxu0 %v1029
      %1277 = vmatprep.subr.bf16.mxu0 0
      %1278 = vmatpush1.bf16.msra.mxu0 %v1030
      %1279 = vmatprep.subr.bf16.mxu0 0
      %1280 = vmatpush1.bf16.msra.mxu0 %v1031
      %1281 = vmatprep.subr.bf16.mxu0 0
      %1282 = vmatpush1.bf16.msra.mxu0 %v1032
      %1283 = vmatprep.subr.bf16.mxu0 0
      %1284 = vmatpush1.bf16.msra.mxu0 %v1033
      %1285 = vmatprep.subr.bf16.mxu0 0
      %1286 = vmatpush1.bf16.msra.mxu0 %v1034
      %1287 = vmatprep.subr.bf16.mxu0 0
      %1288 = vmatpush1.bf16.msra.mxu0 %v1035
      %1289 = vmatprep.subr.bf16.mxu0 0
      %1290 = vmatpush1.bf16.msra.mxu0 %v1036
      %1291 = vmatprep.subr.bf16.mxu0 0
      %1292 = vmatpush1.bf16.msra.mxu0 %v1037
      %1293 = vmatprep.subr.bf16.mxu0 0
      %1294 = vmatpush1.bf16.msra.mxu0 %v1038
      %1295 = vmatprep.subr.bf16.mxu0 0
      %1296 = vmatpush1.bf16.msra.mxu0 %v1039
      %1297 = vmatprep.subr.bf16.mxu0 0
      %1298 = vmatpush1.bf16.msra.mxu0 %v1040
      %1299 = vmatprep.mubr.bf16.mxu0 %v512
      %1300 = vmatmul.mubr.bf16.gmra.mrb[0].mxu0 %v469
      %v1301 = vpop.f32.mrb[0].mxu0
      %v1302 = vadd.f32 %v1237, %v1301
      %v1303 = vpop.f32.mrb[0].mxu0
      %v1304 = vpop.f32.mrb[0].mxu0
      %v1305 = vadd.f32 %v1240, %v1304
      %v1306 = vpop.f32.mrb[0].mxu0
      %1307 = vmatprep.mubr.bf16.mxu0 %v515
      %1308 = vmatmul.mubr.bf16.gmra.mrb[0].mxu0 %v481
      %v1309 = vpop.f32.mrb[0].mxu0
      %v1310 = vadd.f32 %v1245, %v1309
      %v1311 = vpop.f32.mrb[0].mxu0
      %v1312 = vpop.f32.mrb[0].mxu0
      %v1313 = vadd.f32 %v1248, %v1312
      %v1314 = vpop.f32.mrb[0].mxu0
      %1315 = vmatprep.mubr.bf16.mxu0 %v518
      %1316 = vmatmul.mubr.bf16.gmra.mrb[0].mxu0 %v493
      %v1317 = vpop.f32.mrb[0].mxu0
      %v1318 = vadd.f32 %v1253, %v1317
      %v1319 = vpop.f32.mrb[0].mxu0
      %v1320 = vpop.f32.mrb[0].mxu0
      %v1321 = vadd.f32 %v1256, %v1320
      %v1322 = vpop.f32.mrb[0].mxu0
      %1323 = vmatprep.mubr.bf16.mxu0 %v540
      %1324 = vmatmul.mubr.bf16.gmra.mrb[0].mxu0 %v534
      %v1325 = vpop.f32.mrb[0].mxu0
      %v1326 = vadd.f32 %v1261, %v1325
      %v1327 = vpop.f32.mrb[0].mxu0
      %v1328 = vpop.f32.mrb[0].mxu0
      %v1329 = vadd.f32 %v1264, %v1328
      %v1330 = vpop.f32.mrb[0].mxu0
      %1331 = vdwg.mxu0
      %1332 = vmatprep.subr.bf16.mxu0 0
      %1333 = vmatpush1.bf16.msra.mxu0 %v1041
      %1334 = vmatprep.subr.bf16.mxu0 0
      %1335 = vmatpush1.bf16.msra.mxu0 %v1042
      %1336 = vmatprep.subr.bf16.mxu0 0
      %1337 = vmatpush1.bf16.msra.mxu0 %v1043
      %1338 = vmatprep.subr.bf16.mxu0 0
      %1339 = vmatpush1.bf16.msra.mxu0 %v1044
      %1340 = vmatprep.subr.bf16.mxu0 0
      %1341 = vmatpush1.bf16.msra.mxu0 %v1045
      %1342 = vmatprep.subr.bf16.mxu0 0
      %1343 = vmatpush1.bf16.msra.mxu0 %v1046
      %1344 = vmatprep.subr.bf16.mxu0 0
      %1345 = vmatpush1.bf16.msra.mxu0 %v1047
      %1346 = vmatprep.subr.bf16.mxu0 0
      %1347 = vmatpush1.bf16.msra.mxu0 %v1048
      %1348 = vmatprep.subr.bf16.mxu0 0
      %1349 = vmatpush1.bf16.msra.mxu0 %v1049
      %1350 = vmatprep.subr.bf16.mxu0 0
      %1351 = vmatpush1.bf16.msra.mxu0 %v1050
      %1352 = vmatprep.subr.bf16.mxu0 0
      %1353 = vmatpush1.bf16.msra.mxu0 %v1051
      %1354 = vmatprep.subr.bf16.mxu0 0
      %1355 = vmatpush1.bf16.msra.mxu0 %v1052
      %1356 = vmatprep.subr.bf16.mxu0 0
      %1357 = vmatpush1.bf16.msra.mxu0 %v1053
      %1358 = vmatprep.subr.bf16.mxu0 0
      %1359 = vmatpush1.bf16.msra.mxu0 %v1054
      %1360 = vmatprep.subr.bf16.mxu0 0
      %1361 = vmatpush1.bf16.msra.mxu0 %v1055
      %1362 = vmatprep.subr.bf16.mxu0 0
      %1363 = vmatpush1.bf16.msra.mxu0 %v1056
      %1364 = vmatprep.mubr.bf16.mxu0 %v481
      %1365 = vmatmul.mubr.bf16.gmra.mrb[0].mxu0 %v437
      %v1366 = vpop.f32.mrb[0].mxu0
      %v1367 = vadd.f32 %v1302, %v1366
      %v1368 = vpop.f32.mrb[0].mxu0
      %v1369 = vpop.f32.mrb[0].mxu0
      %v1370 = vadd.f32 %v1305, %v1369
      %v1371 = vpop.f32.mrb[0].mxu0
      %1372 = vmatprep.mubr.bf16.mxu0 %v493
      %1373 = vmatmul.mubr.bf16.gmra.mrb[0].mxu0 %v439
      %v1374 = vpop.f32.mrb[0].mxu0
      %v1375 = vadd.f32 %v1310, %v1374
      %v1376 = vpop.f32.mrb[0].mxu0
      %v1377 = vpop.f32.mrb[0].mxu0
      %v1378 = vadd.f32 %v1313, %v1377
      %v1379 = vpop.f32.mrb[0].mxu0
      %1380 = vmatprep.mubr.bf16.mxu0 %v534
      %1381 = vmatmul.mubr.bf16.gmra.mrb[0].mxu0 %v441
      %v1382 = vpop.f32.mrb[0].mxu0
      %v1383 = vadd.f32 %v1318, %v1382
      %v1384 = vpop.f32.mrb[0].mxu0
      %v1385 = vpop.f32.mrb[0].mxu0
      %v1386 = vadd.f32 %v1321, %v1385
      %v1387 = vpop.f32.mrb[0].mxu0
      %1388 = vmatprep.mubr.bf16.mxu0 %v553
      %1389 = vmatmul.mubr.bf16.gmra.mrb[0].mxu0 %v443
      %v1390 = vpop.f32.mrb[0].mxu0
      %v1391 = vadd.f32 %v1326, %v1390
      %v1392 = vpop.f32.mrb[0].mxu0
      %v1393 = vpop.f32.mrb[0].mxu0
      %v1394 = vadd.f32 %v1329, %v1393
      %v1395 = vpop.f32.mrb[0].mxu0
      %1396 = vdwg.mxu0
      %1397 = vmatprep.subr.bf16.mxu0 0
      %1398 = vmatpush1.bf16.msra.mxu0 %v1057
      %1399 = vmatprep.subr.bf16.mxu0 0
      %1400 = vmatpush1.bf16.msra.mxu0 %v1058
      %1401 = vmatprep.subr.bf16.mxu0 0
      %1402 = vmatpush1.bf16.msra.mxu0 %v1059
      %1403 = vmatprep.subr.bf16.mxu0 0
      %1404 = vmatpush1.bf16.msra.mxu0 %v1060
      %1405 = vmatprep.subr.bf16.mxu0 0
      %1406 = vmatpush1.bf16.msra.mxu0 %v1061
      %1407 = vmatprep.subr.bf16.mxu0 0
      %1408 = vmatpush1.bf16.msra.mxu0 %v1062
      %1409 = vmatprep.subr.bf16.mxu0 0
      %1410 = vmatpush1.bf16.msra.mxu0 %v1063
      %1411 = vmatprep.subr.bf16.mxu0 0
      %1412 = vmatpush1.bf16.msra.mxu0 %v1064
      %1413 = vmatprep.subr.bf16.mxu0 0
      %1414 = vmatpush1.bf16.msra.mxu0 0
      %1415 = vmatprep.subr.bf16.mxu0 0
      %1416 = vmatpush1.bf16.msra.mxu0 0
      %1417 = vmatprep.subr.bf16.mxu0 0
      %1418 = vmatpush1.bf16.msra.mxu0 0
      %1419 = vmatprep.subr.bf16.mxu0 0
      %1420 = vmatpush1.bf16.msra.mxu0 0
      %1421 = vmatprep.subr.bf16.mxu0 0
      %1422 = vmatpush1.bf16.msra.mxu0 0
      %1423 = vmatprep.subr.bf16.mxu0 0
      %1424 = vmatpush1.bf16.msra.mxu0 0
      %1425 = vmatprep.subr.bf16.mxu0 0
      %1426 = vmatpush1.bf16.msra.mxu0 0
      %1427 = vmatprep.subr.bf16.mxu0 0
      %1428 = vmatpush1.bf16.msra.mxu0 0
      %1429 = vmatprep.mubr.bf16.mxu0 0
      %1430 = vmatmul.mubr.bf16.gmra.mrb[0].mxu0 %v515
      %v1431 = vpop.f32.mrb[0].mxu0
      %v1432 = vadd.f32 %v1367, %v1431
      %v1433 = vpop.f32.mrb[0].mxu0
      %v1434 = vpop.f32.mrb[0].mxu0
      %v1435 = vadd.f32 %v1370, %v1434
      %v1436 = vpop.f32.mrb[0].mxu0
      %1437 = vmatprep.mubr.bf16.mxu0 0
      %1438 = vmatmul.mubr.bf16.gmra.mrb[0].mxu0 %v518
      %v1439 = vpop.f32.mrb[0].mxu0
      %v1440 = vadd.f32 %v1375, %v1439
      %v1441 = vpop.f32.mrb[0].mxu0
      %v1442 = vpop.f32.mrb[0].mxu0
      %v1443 = vadd.f32 %v1378, %v1442
      %v1444 = vpop.f32.mrb[0].mxu0
      %1445 = vmatprep.mubr.bf16.mxu0 0
      %1446 = vmatmul.mubr.bf16.gmra.mrb[0].mxu0 %v540
      %v1447 = vpop.f32.mrb[0].mxu0
      %v1448 = vadd.f32 %v1383, %v1447
      %v1449 = vpop.f32.mrb[0].mxu0
      %v1450 = vpop.f32.mrb[0].mxu0
      %v1451 = vadd.f32 %v1386, %v1450
      %v1452 = vpop.f32.mrb[0].mxu0
      %1453 = vmatprep.mubr.bf16.mxu0 0
      %1454 = vmatmul.mubr.bf16.gmra.mrb[0].mxu0 %v559
      %v1455 = vpop.f32.mrb[0].mxu0
      %v1456 = vadd.f32 %v1391, %v1455
      %v1457 = vpop.f32.mrb[0].mxu0
      %v1458 = vpop.f32.mrb[0].mxu0
      %v1459 = vadd.f32 %v1394, %v1458
      %v1460 = vpop.f32.mrb[0].mxu0
      %1461 = vdwg.mxu0
      %v1462 = vpack.c.bf16 %v1435, %v1432
      %v1463 = vpack.c.bf16 %v1443, %v1440
      %v1464 = vpack.c.bf16 %v1451, %v1448
      %v1465 = vpack.c.bf16 %v1459, %v1456
      %v1470 = vunpack.c.l.b16 %v1462
      %v1471 = vunpack.c.h.b16 %v1462
      %v1472 = vunpack.c.l.b16 %v1463
      %v1473 = vunpack.c.h.b16 %v1463
      %v1474 = vunpack.c.l.b16 %v1464
      %v1475 = vunpack.c.h.b16 %v1464
      %v1476 = vunpack.c.l.b16 %v1465
      %v1477 = vunpack.c.h.b16 %v1465
      %v1478 = vpack.c.b16 %v1470, %v1470
      %v1479 = vpack.c.b16 %v1471, %v1471
      %v1480 = vpack.c.b16 %v1472, %v1472
      %v1481 = vpack.c.b16 %v1473, %v1473
      %v1482 = vpack.c.b16 %v1474, %v1474
      %v1483 = vpack.c.b16 %v1475, %v1475
      %v1484 = vpack.c.b16 %v1476, %v1476
      %v1485 = vpack.c.b16 %v1477, %v1477
      %1494 = vst [vmem:[%s261] sm:$0xf] %v1478
      %1495 = vst [vmem:[%s261 + $0x4] sm:$0xf] %v1479
      %1496 = vst [vmem:[%s261 + $0x8] sm:$0xf] %v1480
      %1497 = vst [vmem:[%s261 + $0xc] sm:$0xf] %v1481
      %1498 = vst [vmem:[%s261 + $0x10] sm:$0xf] %v1482
      %1499 = vst [vmem:[%s261 + $0x14] sm:$0xf] %v1483
      %1500 = vst [vmem:[%s261 + $0x18] sm:$0xf] %v1484
      %1501 = vst [vmem:[%s261 + $0x1c] sm:$0xf] %v1485
      %v1502 = vadd.f32 %v1432, %v1435
      %v1503 = vadd.f32 %v1502, %v1440
      %v1504 = vadd.f32 %v1503, %v1443
      %v1505 = vadd.f32 %v1504, %v1448
      %v1506 = vadd.f32 %v1505, %v1451
      %v1507 = vadd.f32 %v1506, %v1456
      %v1508 = vadd.f32 %v1507, %v1459
      %v1509 = vrot.slane %v1508, 4
      %v1510 = vadd.f32 %v1508, %v1509
      %v1511 = vrot.slane %v1510, 2
      %v1512 = vadd.f32 %v1510, %v1511
      %v1513 = vrot.slane %v1512, 1
      %v1514 = vadd.f32 %v1512, %v1513
      %v1515 = vmul.f32 %v1432, %v1432
      %v1516 = vmul.f32 %v1435, %v1435
      %v1517 = vmul.f32 %v1440, %v1440
      %v1518 = vmul.f32 %v1443, %v1443
      %v1519 = vmul.f32 %v1448, %v1448
      %v1520 = vmul.f32 %v1451, %v1451
      %v1521 = vmul.f32 %v1456, %v1456
      %v1522 = vmul.f32 %v1459, %v1459
      %v1523 = vadd.f32 %v1515, %v1516
      %v1524 = vadd.f32 %v1523, %v1517
      %v1525 = vadd.f32 %v1524, %v1518
      %v1526 = vadd.f32 %v1525, %v1519
      %v1527 = vadd.f32 %v1526, %v1520
      %v1528 = vadd.f32 %v1527, %v1521
      %v1529 = vadd.f32 %v1528, %v1522
      %v1530 = vrot.slane %v1529, 4
      %v1531 = vadd.f32 %v1529, %v1530
      %v1532 = vrot.slane %v1531, 2
      %v1533 = vadd.f32 %v1531, %v1532
      %v1534 = vrot.slane %v1533, 1
      %v1535 = vadd.f32 %v1533, %v1534
      %vm1536 = vcmask 1040384
      %v1537 = vsel %vm1536, %v1514, %v1535
      %1538 = vst [vmem:[%s270] sm:$0x3] %v1537
      %s1539 = smul.u32 4, %s22
      %p1540 = scmp.lt.s32.totalorder %s21, 1
      %s1541 = scalar_select %p1540, %s21, 1
      %p1542 = scmp.lt.s32.totalorder %s1539, 15
      %s1543 = scalar_select %p1542, %s1539, 15
      %s1544 = smul.addr %s1543, 2
      %s1545 = smul.addr %s1541, 32
      %s1546 = sadd.s32 %s1544, %s1545
      %s1547 = smul.addr %s1546, 4
      %s1548 = scalar_lea.vmem %s4, %s1547
      %p1549 = scmp.lt.s32.totalorder %s21, 1
      %s1550 = scalar_select %p1549, %s21, 1
      %p1551 = scmp.lt.s32.totalorder %s22, 3
      %s1552 = scalar_select %p1551, %s22, 3
      %s1553 = smul.addr %s1550, 4
      %s1554 = sadd.s32 %s1552, %s1553
      %s1555 = smul.addr %s1554, 2
      %s1556 = scalar_lea.vmem %s5, %s1555
      // Predicated region
      $region41: #{conv_block_forward.2} parent=35 // pred_check
        %p1557 = pneg %p138
      $region42: #{conv_block_forward.2} parent=35 // pred_check_branch
        %1559 = sbr.rel (%p1557) target = $region44
      $region43: #{conv_block_forward.2} parent=35 // pred_region
        %s1560 = smul.u32 4, %s22
      $region44: #{conv_block_forward.2} parent=35 // pred_fallthru
        _
      // Predicated region
      $region45: #{conv_block_forward.2} parent=35 // pred_check
        %p1561 = pneg %p166
      $region46: #{conv_block_forward.2} parent=35 // pred_check_branch
        %1563 = sbr.rel (%p1561) target = $region48
      $region47: #{conv_block_forward.2} parent=35 // pred_region
        _
      $region48: #{conv_block_forward.2} parent=35 // pred_fallthru
        _
    $region36: #{conv_block_forward.2} parent=5 // pred_fallthru
      _
    %p1564 = scmp.le.s32.totalorder 2, %s12
    // Predicated region
    $region49: #{conv_block_forward.2} parent=5 // pred_check
      %p1565 = pneg %p1564
    $region50: #{conv_block_forward.2} parent=5 // pred_check_branch
      %1567 = sbr.rel (%p1565) target = $region52
    $region51: #{conv_block_forward.2} parent=5 // pred_region
      %s1568 = ssub.s32 %s12, 2
      // Predicated region
      $region53: #{conv_block_forward.2} parent=51 // pred_check
        %p1569 = pneg %p144
      $region54: #{conv_block_forward.2} parent=51 // pred_check_branch
        %1571 = sbr.rel (%p1569) target = $region56
      $region55: #{conv_block_forward.2} parent=51 // pred_region
        %s1572 = smul.u32 4, %s24
        %p1573 = scmp.lt.s32.totalorder %s23, 1
        %s1574 = scalar_select %p1573, %s23, 1
        %p1575 = scmp.lt.s32.totalorder %s1572, 15
        %s1576 = scalar_select %p1575, %s1572, 15
        %s1577 = smul.addr %s1576, 2
        %s1578 = smul.addr %s1574, 32
        %s1579 = sadd.s32 %s1577, %s1578
        %s1580 = smul.addr %s1579, 4
        %s1581 = scalar_lea.vmem %s4, %s1580
      $region56: #{conv_block_forward.2} parent=51 // pred_fallthru
        _
      // Predicated region
      $region57: #{conv_block_forward.2} parent=51 // pred_check
        %p1582 = pneg %p172
      $region58: #{conv_block_forward.2} parent=51 // pred_check_branch
        %1584 = sbr.rel (%p1582) target = $region60
      $region59: #{conv_block_forward.2} parent=51 // pred_region
        %p1585 = scmp.lt.s32.totalorder %s23, 1
        %s1586 = scalar_select %p1585, %s23, 1
        %p1587 = scmp.lt.s32.totalorder %s24, 3
        %s1588 = scalar_select %p1587, %s24, 3
        %s1589 = smul.addr %s1586, 4
        %s1590 = sadd.s32 %s1588, %s1589
        %s1591 = smul.addr %s1590, 2
        %s1592 = scalar_lea.vmem %s5, %s1591
      $region60: #{conv_block_forward.2} parent=51 // pred_fallthru
        _
    $region52: #{conv_block_forward.2} parent=5 // pred_fallthru
      _
  $region6: #{conv_block_forward.2} parent=0 // loop_footer
    %s16 = sadd.s32 1, %s12
  $region7: #{conv_block_forward.2} parent=0 // loop_footer_branch
    %11 = sbr.rel target = $region3
  $region8: #{conv_block_forward.2} parent=0 // loop_exit
    _

// kernel: conv_block_forward.3
$region0: #{conv_block_forward.3}
  #allocation0 [shape = 'u32[]', space=smem, size = 0x4, offset = 0x4, fixed_abs, tag = 'smem constant byte address 0x4 - core index']
  #allocation1 [shape = 'u32[144,128]{1,0:T(1,128)}', space=vmem, size = 0x12000, scoped, tag = 'internal scratch']
  #allocation2 [shape = 'f32[18,18,128]{2,1,0:T(8,128)}', space=vmem, size = 0x36000, scoped, tag = 'scratch operand']
  %s0 = inlined_call_operand.vmem [shape: bf16[2,16,16,128], index: 0, kind: input, shape index: {}]
  %s1 = inlined_call_operand.vmem [shape: bf16[1152,128], index: 1, kind: input, shape index: {}]
  %s2 = inlined_call_operand.vmem [shape: f32[1,128], index: 2, kind: input, shape index: {}]
  %s3 = inlined_call_operand.vmem [shape: f32[1,128], index: 3, kind: input, shape index: {}]
  %s4 = inlined_call_operand.vmem [shape: bf16[2,16,16,128], index: 4, kind: output, shape index: {0}]
  %s5 = inlined_call_operand.vmem [shape: f32[2,4,2,128], index: 5, kind: output, shape index: {1}]
  %6 = xla_tuple %s4, %s5
  %s7 = sld [smem:[#allocation0]]
  $region61: #{conv_block_forward.3} parent=0
    _
  %s9 = ssub.s32 1, %s7
  %s10 = scalar_select 0, %s9, %s7
  loop: start=0, step=1, limit=10
  $region2: #{conv_block_forward.3} parent=0 // loop_pre_header
    _
  $region3: #{conv_block_forward.3} parent=0 // loop_header
    %s12 = sphi 0, %s16
    %p13 = scmp.ge.s32.totalorder %s12, 10
    %s19 = sphi 0, %s31
    %s20 = sphi 0, %s27
    %s21 = sphi 0, %s19
    %s22 = sphi 0, %s20
    %s23 = sphi 0, %s21
    %s24 = sphi 0, %s22
    %s34 = sphi 0, %s36
    %s37 = sphi 0, %s34
    %s38 = sphi 0, %s37
    %s54 = sphi 0, %s38
    %s58 = sphi 0, %s58
    %s60 = sphi 0, %s58
    %s61 = sphi 0, %s60
    %s75 = sphi 0, %s61
    %s79 = sphi 0, %s79
    %s81 = sphi 0, %s79
    %s82 = sphi 0, %s81
    %s96 = sphi 0, %s82
    %s100 = sphi 0, %s100
    %s102 = sphi 0, %s100
    %s103 = sphi 0, %s102
    %s117 = sphi 0, %s103
    %s125 = sphi 0, %s127
    %s128 = sphi 0, %s125
    %s129 = sphi 0, %s128
    %s145 = sphi 0, %s129
    %s153 = sphi 0, %s155
    %s156 = sphi 0, %s153
    %s157 = sphi 0, %s156
    %s173 = sphi 0, %s157
  $region4: #{conv_block_forward.3} parent=0 // loop_header_branch
    %15 = sbr.rel (%p13) target = $region8
  $region5: #{conv_block_forward.3} parent=0 // loop_body
    %s17 = ssub.s32 %s12, 1
    %s18 = ssub.s32 %s12, 2
    %s25 = sadd.s32 1, %s20
    %p26 = scmp.ge.s32.totalorder %s25, 4
    %s27 = scalar_select %p26, 0, %s25
    %s28 = sadd.s32 1, %s19
    %s29 = scalar_select %p26, %s28, %s19
    %p30 = scmp.ge.s32.totalorder %s29, 2
    %s31 = scalar_select %p30, 0, %s29
    %s32 = ssub.s32 %s19, %s31
    %p33 = scmp.eq.s32.totalorder %s32, 0
    %s35 = sadd.s32 %s34, 1
    %s36 = scalar_select %p33, %s34, %s35
    %p39 = pneg %p33
    %p40 = scmp.eq.s32.totalorder %s12, 7
    %p41 = por %p39, %p40
    %p42 = scmp.ne.s32.totalorder %s34, %s37
    %p43 = scmp.eq.s32.totalorder %s12, 0
    %p44 = por %p42, %p43
    %p45 = scmp.ne.s32.totalorder %s34, %s37
    %p46 = scmp.eq.s32.totalorder %s17, 7
    %p47 = por %p45, %p46
    %p48 = scmp.ne.s32.totalorder %s37, %s38
    %p49 = scmp.eq.s32.totalorder %s17, 0
    %p50 = por %p48, %p49
    %p51 = scmp.ne.s32.totalorder %s37, %s38
    %p52 = scmp.eq.s32.totalorder %s18, 7
    %p53 = por %p51, %p52
    %p55 = scmp.ne.s32.totalorder %s38, %s54
    %p56 = scmp.eq.s32.totalorder %s18, 0
    %p57 = por %p55, %p56
    %s59 = sadd.s32 %s58, 1
    %p62 = scmp.eq.s32.totalorder %s12, 7
    %p63 = scmp.ne.s32.totalorder %s58, %s60
    %p64 = scmp.eq.s32.totalorder %s12, 0
    %p65 = por %p63, %p64
    %p66 = scmp.ne.s32.totalorder %s58, %s60
    %p67 = scmp.eq.s32.totalorder %s17, 7
    %p68 = por %p66, %p67
    %p69 = scmp.ne.s32.totalorder %s60, %s61
    %p70 = scmp.eq.s32.totalorder %s17, 0
    %p71 = por %p69, %p70
    %p72 = scmp.ne.s32.totalorder %s60, %s61
    %p73 = scmp.eq.s32.totalorder %s18, 7
    %p74 = por %p72, %p73
    %p76 = scmp.ne.s32.totalorder %s61, %s75
    %p77 = scmp.eq.s32.totalorder %s18, 0
    %p78 = por %p76, %p77
    %s80 = sadd.s32 %s79, 1
    %p83 = scmp.eq.s32.totalorder %s12, 7
    %p84 = scmp.ne.s32.totalorder %s79, %s81
    %p85 = scmp.eq.s32.totalorder %s12, 0
    %p86 = por %p84, %p85
    %p87 = scmp.ne.s32.totalorder %s79, %s81
    %p88 = scmp.eq.s32.totalorder %s17, 7
    %p89 = por %p87, %p88
    %p90 = scmp.ne.s32.totalorder %s81, %s82
    %p91 = scmp.eq.s32.totalorder %s17, 0
    %p92 = por %p90, %p91
    %p93 = scmp.ne.s32.totalorder %s81, %s82
    %p94 = scmp.eq.s32.totalorder %s18, 7
    %p95 = por %p93, %p94
    %p97 = scmp.ne.s32.totalorder %s82, %s96
    %p98 = scmp.eq.s32.totalorder %s18, 0
    %p99 = por %p97, %p98
    %s101 = sadd.s32 %s100, 1
    %p104 = scmp.eq.s32.totalorder %s12, 7
    %p105 = scmp.ne.s32.totalorder %s100, %s102
    %p106 = scmp.eq.s32.totalorder %s12, 0
    %p107 = por %p105, %p106
    %p108 = scmp.ne.s32.totalorder %s100, %s102
    %p109 = scmp.eq.s32.totalorder %s17, 7
    %p110 = por %p108, %p109
    %p111 = scmp.ne.s32.totalorder %s102, %s103
    %p112 = scmp.eq.s32.totalorder %s17, 0
    %p113 = por %p111, %p112
    %p114 = scmp.ne.s32.totalorder %s102, %s103
    %p115 = scmp.eq.s32.totalorder %s18, 7
    %p116 = por %p114, %p115
    %p118 = scmp.ne.s32.totalorder %s103, %s117
    %p119 = scmp.eq.s32.totalorder %s18, 0
    %p120 = por %p118, %p119
    %s121 = ssub.s32 %s19, %s31
    %s122 = ssub.s32 %s20, %s27
    %s123 = sor.u32 %s121, %s122
    %p124 = scmp.eq.s32.totalorder %s123, 0
    %s126 = sadd.s32 %s125, 1
    %s127 = scalar_select %p124, %s125, %s126
    %p130 = pneg %p124
    %p131 = scmp.eq.s32.totalorder %s12, 7
    %p132 = por %p130, %p131
    %p133 = scmp.ne.s32.totalorder %s125, %s128
    %p134 = scmp.eq.s32.totalorder %s12, 0
    %p135 = por %p133, %p134
    %p136 = scmp.ne.s32.totalorder %s125, %s128
    %p137 = scmp.eq.s32.totalorder %s17, 7
    %p138 = por %p136, %p137
    %p139 = scmp.ne.s32.totalorder %s128, %s129
    %p140 = scmp.eq.s32.totalorder %s17, 0
    %p141 = por %p139, %p140
    %p142 = scmp.ne.s32.totalorder %s128, %s129
    %p143 = scmp.eq.s32.totalorder %s18, 7
    %p144 = por %p142, %p143
    %p146 = scmp.ne.s32.totalorder %s129, %s145
    %p147 = scmp.eq.s32.totalorder %s18, 0
    %p148 = por %p146, %p147
    %s149 = ssub.s32 %s19, %s31
    %s150 = ssub.s32 %s20, %s27
    %s151 = sor.u32 %s149, %s150
    %p152 = scmp.eq.s32.totalorder %s151, 0
    %s154 = sadd.s32 %s153, 1
    %s155 = scalar_select %p152, %s153, %s154
    %p158 = pneg %p152
    %p159 = scmp.eq.s32.totalorder %s12, 7
    %p160 = por %p158, %p159
    %p161 = scmp.ne.s32.totalorder %s153, %s156
    %p162 = scmp.eq.s32.totalorder %s12, 0
    %p163 = por %p161, %p162
    %p164 = scmp.ne.s32.totalorder %s153, %s156
    %p165 = scmp.eq.s32.totalorder %s17, 7
    %p166 = por %p164, %p165
    %p167 = scmp.ne.s32.totalorder %s156, %s157
    %p168 = scmp.eq.s32.totalorder %s17, 0
    %p169 = por %p167, %p168
    %p170 = scmp.ne.s32.totalorder %s156, %s157
    %p171 = scmp.eq.s32.totalorder %s18, 7
    %p172 = por %p170, %p171
    %p174 = scmp.ne.s32.totalorder %s157, %s173
    %p175 = scmp.eq.s32.totalorder %s18, 0
    %p176 = por %p174, %p175
    %p177 = scmp.le.s32.totalorder 1, %s12
    %p178 = scmp.lt.s32.totalorder %s12, 9
    %p179 = pnand %p177, %p178
    %p180 = pneg %p179
    // Predicated region
    $region9: #{conv_block_forward.3} parent=5 // pred_check
      _
    $region10: #{conv_block_forward.3} parent=5 // pred_check_branch
      %182 = sbr.rel (%p179) target = $region12
    $region11: #{conv_block_forward.3} parent=5 // pred_region
      %s183 = ssub.s32 %s12, 1
      // Predicated region
      $region13: #{conv_block_forward.3} parent=11 // pred_check
        %p184 = pneg %p71
      $region14: #{conv_block_forward.3} parent=11 // pred_check_branch
        %186 = sbr.rel (%p184) target = $region16
      $region15: #{conv_block_forward.3} parent=11 // pred_region
        _
      $region16: #{conv_block_forward.3} parent=11 // pred_fallthru
        _
      // Predicated region
      $region17: #{conv_block_forward.3} parent=11 // pred_check
        %p187 = pneg %p92
      $region18: #{conv_block_forward.3} parent=11 // pred_check_branch
        %189 = sbr.rel (%p187) target = $region20
      $region19: #{conv_block_forward.3} parent=11 // pred_region
        _
      $region20: #{conv_block_forward.3} parent=11 // pred_fallthru
        _
      // Predicated region
      $region21: #{conv_block_forward.3} parent=11 // pred_check
        %p190 = pneg %p113
      $region22: #{conv_block_forward.3} parent=11 // pred_check_branch
        %192 = sbr.rel (%p190) target = $region24
      $region23: #{conv_block_forward.3} parent=11 // pred_region
        _
      $region24: #{conv_block_forward.3} parent=11 // pred_fallthru
        _
    $region12: #{conv_block_forward.3} parent=5 // pred_fallthru
      _
    %p193 = scmp.lt.s32.totalorder %s12, 8
    // Predicated region
    $region25: #{conv_block_forward.3} parent=5 // pred_check
      %p194 = pneg %p193
    $region26: #{conv_block_forward.3} parent=5 // pred_check_branch
      %196 = sbr.rel (%p194) target = $region28
    $region27: #{conv_block_forward.3} parent=5 // pred_region
      // Predicated region
      $region29: #{conv_block_forward.3} parent=27 // pred_check
        %p197 = pneg %p44
      $region30: #{conv_block_forward.3} parent=27 // pred_check_branch
        %199 = sbr.rel (%p197) target = $region32
      $region31: #{conv_block_forward.3} parent=27 // pred_region
        %p200 = scmp.lt.s32.totalorder %s19, 1
        %s201 = scalar_select %p200, %s19, 1
        %s202 = smul.addr %s201, 32
        %s203 = smul.addr %s202, 4
        %s204 = scalar_lea.vmem %s0, %s203
      $region32: #{conv_block_forward.3} parent=27 // pred_fallthru
        _
    $region28: #{conv_block_forward.3} parent=5 // pred_fallthru
      _
    %p205 = scmp.le.s32.totalorder 1, %s12
    %p206 = scmp.lt.s32.totalorder %s12, 9
    %p207 = pnand %p205, %p206
    %p208 = pneg %p207
    // Predicated region
    $region33: #{conv_block_forward.3} parent=5 // pred_check
      _
    $region34: #{conv_block_forward.3} parent=5 // pred_check_branch
      %210 = sbr.rel (%p207) target = $region36
    $region35: #{conv_block_forward.3} parent=5 // pred_region
      %s211 = ssub.s32 %s12, 1
      %p212 = scmp.lt.s32.totalorder %s21, 1
      %s213 = scalar_select %p212, %s21, 1
      %s214 = smul.addr %s213, 32
      %s215 = smul.addr %s214, 4
      %s216 = scalar_lea.vmem %s0, %s215
      %p217 = pneg %p50
      %p218 = pneg %p47
      %p219 = pneg %p71
      %p220 = pneg %p68
      %p221 = pneg %p92
      %p222 = pneg %p89
      %p223 = pneg %p113
      %p224 = pneg %p110
      %p225 = pneg %p141
      %p226 = pneg %p138
      %s227 = smul.u32 4, %s22
      %p228 = scmp.lt.s32.totalorder %s21, 1
      %s229 = scalar_select %p228, %s21, 1
      %p230 = scmp.lt.s32.totalorder %s227, 15
      %s231 = scalar_select %p230, %s227, 15
      %s232 = smul.addr %s231, 2
      %s233 = smul.addr %s229, 32
      %s234 = sadd.s32 %s232, %s233
      %s235 = smul.addr %s234, 4
      %s236 = scalar_lea.vmem %s4, %s235
      %p237 = pneg %p169
      %p238 = pneg %p166
      %p239 = scmp.lt.s32.totalorder %s21, 1
      %s240 = scalar_select %p239, %s21, 1
      %p241 = scmp.lt.s32.totalorder %s22, 3
      %s242 = scalar_select %p241, %s22, 3
      %s243 = smul.addr %s240, 4
      %s244 = sadd.s32 %s242, %s243
      %s245 = smul.addr %s244, 2
      %s246 = scalar_lea.vmem %s5, %s245
      %p247 = scmp.lt.s32.totalorder %s21, 1
      %s248 = scalar_select %p247, %s21, 1
      %s249 = smul.addr %s248, 32
      %s250 = smul.addr %s249, 4
      %s251 = scalar_lea.vmem %s0, %s250
      %s252 = smul.u32 4, %s22
      %p253 = scmp.lt.s32.totalorder %s21, 1
      %s254 = scalar_select %p253, %s21, 1
      %p255 = scmp.lt.s32.totalorder %s252, 15
      %s256 = scalar_select %p255, %s252, 15
      %s257 = smul.addr %s256, 2
      %s258 = smul.addr %s254, 32
      %s259 = sadd.s32 %s257, %s258
      %s260 = smul.addr %s259, 4
      %s261 = scalar_lea.vmem %s4, %s260
      %s262 = smul.u32 4, %s22
      %p263 = scmp.lt.s32.totalorder %s21, 1
      %s264 = scalar_select %p263, %s21, 1
      %p265 = scmp.lt.s32.totalorder %s22, 3
      %s266 = scalar_select %p265, %s22, 3
      %s267 = smul.addr %s264, 4
      %s268 = sadd.s32 %s266, %s267
      %s269 = smul.addr %s268, 2
      %s270 = scalar_lea.vmem %s5, %s269
      %p272 = scmp.eq.s32.totalorder %s22, 0
      // Predicated region
      $region37: #{conv_block_forward.3} parent=35 // pred_check
        %p273 = pneg %p272
      $region38: #{conv_block_forward.3} parent=35 // pred_check_branch
        %275 = sbr.rel (%p273) target = $region40
      $region39: #{conv_block_forward.3} parent=35 // pred_region
        %v276 = vld [vmem:[%s251] sm:$0xf]
        %v277 = vld [vmem:[%s251 + $0x4] sm:$0xf]
        %v278 = vld [vmem:[%s251 + $0x8] sm:$0xf]
        %v279 = vld [vmem:[%s251 + $0xc] sm:$0xf]
        %v280 = vld [vmem:[%s251 + $0x10] sm:$0xf]
        %v281 = vld [vmem:[%s251 + $0x14] sm:$0xf]
        %v282 = vld [vmem:[%s251 + $0x18] sm:$0xf]
        %v283 = vld [vmem:[%s251 + $0x1c] sm:$0xf]
        %v284 = vld [vmem:[%s251 + $0x20] sm:$0xf]
        %v285 = vld [vmem:[%s251 + $0x24] sm:$0xf]
        %v286 = vld [vmem:[%s251 + $0x28] sm:$0xf]
        %v287 = vld [vmem:[%s251 + $0x2c] sm:$0xf]
        %v288 = vld [vmem:[%s251 + $0x30] sm:$0xf]
        %v289 = vld [vmem:[%s251 + $0x34] sm:$0xf]
        %v290 = vld [vmem:[%s251 + $0x38] sm:$0xf]
        %v291 = vld [vmem:[%s251 + $0x3c] sm:$0xf]
        %v292 = vld [vmem:[%s251 + $0x40] sm:$0xf]
        %v293 = vld [vmem:[%s251 + $0x44] sm:$0xf]
        %v294 = vld [vmem:[%s251 + $0x48] sm:$0xf]
        %v295 = vld [vmem:[%s251 + $0x4c] sm:$0xf]
        %v296 = vld [vmem:[%s251 + $0x50] sm:$0xf]
        %v297 = vld [vmem:[%s251 + $0x54] sm:$0xf]
        %v298 = vld [vmem:[%s251 + $0x58] sm:$0xf]
        %v299 = vld [vmem:[%s251 + $0x5c] sm:$0xf]
        %v300 = vld [vmem:[%s251 + $0x60] sm:$0xf]
        %v301 = vld [vmem:[%s251 + $0x64] sm:$0xf]
        %v302 = vld [vmem:[%s251 + $0x68] sm:$0xf]
        %v303 = vld [vmem:[%s251 + $0x6c] sm:$0xf]
        %v304 = vld [vmem:[%s251 + $0x70] sm:$0xf]
        %v305 = vld [vmem:[%s251 + $0x74] sm:$0xf]
        %v306 = vld [vmem:[%s251 + $0x78] sm:$0xf]
        %v307 = vld [vmem:[%s251 + $0x7c] sm:$0xf]
        %v308 = vunpack.c.l.bf16 %v276
        %v309 = vunpack.c.l.bf16 %v277
        %v310 = vunpack.c.l.bf16 %v278
        %v311 = vunpack.c.l.bf16 %v279
        %v312 = vunpack.c.l.bf16 %v280
        %v313 = vunpack.c.l.bf16 %v281
        %v314 = vunpack.c.l.bf16 %v282
        %v315 = vunpack.c.l.bf16 %v283
        %v316 = vunpack.c.l.bf16 %v284
        %v317 = vunpack.c.l.bf16 %v285
        %v318 = vunpack.c.l.bf16 %v286
        %v319 = vunpack.c.l.bf16 %v287
        %v320 = vunpack.c.l.bf16 %v288
        %v321 = vunpack.c.l.bf16 %v289
        %v322 = vunpack.c.l.bf16 %v290
        %v323 = vunpack.c.l.bf16 %v291
        %v324 = vunpack.c.l.bf16 %v292
        %v325 = vunpack.c.l.bf16 %v293
        %v326 = vunpack.c.l.bf16 %v294
        %v327 = vunpack.c.l.bf16 %v295
        %v328 = vunpack.c.l.bf16 %v296
        %v329 = vunpack.c.l.bf16 %v297
        %v330 = vunpack.c.l.bf16 %v298
        %v331 = vunpack.c.l.bf16 %v299
        %v332 = vunpack.c.l.bf16 %v300
        %v333 = vunpack.c.l.bf16 %v301
        %v334 = vunpack.c.l.bf16 %v302
        %v335 = vunpack.c.l.bf16 %v303
        %v336 = vunpack.c.l.bf16 %v304
        %v337 = vunpack.c.l.bf16 %v305
        %v338 = vunpack.c.l.bf16 %v306
        %v339 = vunpack.c.l.bf16 %v307
        %v340 = vld [vmem:[%s2] sm:$0x1]
        %v342 = vlaneseq
        %v343 = vshrl.u32 %v342, 7
        %v344 = vsub.s32 0, %v343
        %v345 = vrot.slane %v340, %v344
        %v347 = vmul.f32 %v308, %v345
        %v348 = vmul.f32 %v309, %v345
        %v349 = vmul.f32 %v310, %v345
        %v350 = vmul.f32 %v311, %v345
        %v351 = vmul.f32 %v312, %v345
        %v352 = vmul.f32 %v313, %v345
        %v353 = vmul.f32 %v314, %v345
        %v354 = vmul.f32 %v315, %v345
        %v355 = vmul.f32 %v316, %v345
        %v356 = vmul.f32 %v317, %v345
        %v357 = vmul.f32 %v318, %v345
        %v358 = vmul.f32 %v319, %v345
        %v359 = vmul.f32 %v320, %v345
        %v360 = vmul.f32 %v321, %v345
        %v361 = vmul.f32 %v322, %v345
        %v362 = vmul.f32 %v323, %v345
        %v363 = vmul.f32 %v324, %v345
        %v364 = vmul.f32 %v325, %v345
        %v365 = vmul.f32 %v326, %v345
        %v366 = vmul.f32 %v327, %v345
        %v367 = vmul.f32 %v328, %v345
        %v368 = vmul.f32 %v329, %v345
        %v369 = vmul.f32 %v330, %v345
        %v370 = vmul.f32 %v331, %v345
        %v371 = vmul.f32 %v332, %v345
        %v372 = vmul.f32 %v333, %v345
        %v373 = vmul.f32 %v334, %v345
        %v374 = vmul.f32 %v335, %v345
        %v375 = vmul.f32 %v336, %v345
        %v376 = vmul.f32 %v337, %v345
        %v377 = vmul.f32 %v338, %v345
        %v378 = vmul.f32 %v339, %v345
        %v379 = vld [vmem:[%s3] sm:$0x1]
        %v381 = vlaneseq
        %v382 = vshrl.u32 %v381, 7
        %v383 = vsub.s32 0, %v382
        %v384 = vrot.slane %v379, %v383
        %v386 = vadd.f32 %v347, %v384
        %v387 = vadd.f32 %v348, %v384
        %v388 = vadd.f32 %v349, %v384
        %v389 = vadd.f32 %v350, %v384
        %v390 = vadd.f32 %v351, %v384
        %v391 = vadd.f32 %v352, %v384
        %v392 = vadd.f32 %v353, %v384
        %v393 = vadd.f32 %v354, %v384
        %v394 = vadd.f32 %v355, %v384
        %v395 = vadd.f32 %v356, %v384
        %v396 = vadd.f32 %v357, %v384
        %v397 = vadd.f32 %v358, %v384
        %v398 = vadd.f32 %v359, %v384
        %v399 = vadd.f32 %v360, %v384
        %v400 = vadd.f32 %v361, %v384
        %v401 = vadd.f32 %v362, %v384
        %v402 = vadd.f32 %v363, %v384
        %v403 = vadd.f32 %v364, %v384
        %v404 = vadd.f32 %v365, %v384
        %v405 = vadd.f32 %v366, %v384
        %v406 = vadd.f32 %v367, %v384
        %v407 = vadd.f32 %v368, %v384
        %v408 = vadd.f32 %v369, %v384
        %v409 = vadd.f32 %v370, %v384
        %v410 = vadd.f32 %v371, %v384
        %v411 = vadd.f32 %v372, %v384
        %v412 = vadd.f32 %v373, %v384
        %v413 = vadd.f32 %v374, %v384
        %v414 = vadd.f32 %v375, %v384
        %v415 = vadd.f32 %v376, %v384
        %v416 = vadd.f32 %v377, %v384
        %v417 = vadd.f32 %v378, %v384
        %v418 = vmax.f32 %v386, 0.0
        %v419 = vmax.f32 %v387, 0.0
        %v420 = vmax.f32 %v388, 0.0
        %v421 = vmax.f32 %v389, 0.0
        %v422 = vmax.f32 %v390, 0.0
        %v423 = vmax.f32 %v391, 0.0
        %v424 = vmax.f32 %v392, 0.0
        %v425 = vmax.f32 %v393, 0.0
        %v426 = vmax.f32 %v394, 0.0
        %v427 = vmax.f32 %v395, 0.0
        %v428 = vmax.f32 %v396, 0.0
        %v429 = vmax.f32 %v397, 0.0
        %v430 = vmax.f32 %v398, 0.0
        %v431 = vmax.f32 %v399, 0.0
        %v432 = vmax.f32 %v400, 0.0
        %v433 = vmax.f32 %v401, 0.0
        %v434 = vmax.f32 %v402, 0.0
        %v435 = vmax.f32 %v403, 0.0
        %v436 = vmax.f32 %v404, 0.0
        %v437 = vmax.f32 %v405, 0.0
        %v438 = vmax.f32 %v406, 0.0
        %v439 = vmax.f32 %v407, 0.0
        %v440 = vmax.f32 %v408, 0.0
        %v441 = vmax.f32 %v409, 0.0
        %v442 = vmax.f32 %v410, 0.0
        %v443 = vmax.f32 %v411, 0.0
        %v444 = vmax.f32 %v412, 0.0
        %v445 = vmax.f32 %v413, 0.0
        %v446 = vmax.f32 %v414, 0.0
        %v447 = vmax.f32 %v415, 0.0
        %v448 = vmax.f32 %v416, 0.0
        %v449 = vmax.f32 %v417, 0.0
        %450 = vst [vmem:[#allocation2] sm:$0xff] 0.0
        %451 = vst [vmem:[#allocation2 + $0x8] sm:$0xff] 0.0
        %452 = vst [vmem:[#allocation2 + $0x10] sm:$0x3] 0.0
        %s453 = scalar_lea.vmem [#allocation2], 408
        %454 = vst [vmem:[%s453] sm:$0xff] 0.0
        %455 = vst [vmem:[%s453 + $0x8] sm:$0xff] 0.0
        %456 = vst [vmem:[%s453 + $0x10] sm:$0x3] 0.0
        %s457 = scalar_lea.vmem [#allocation2], 24
        %458 = vst [vmem:[%s457] sm:$0x1] 0.0
        %459 = vst [vmem:[%s457 + $0x18] sm:$0x1] 0.0
        %460 = vst [vmem:[%s457 + $0x30] sm:$0x1] 0.0
        %461 = vst [vmem:[%s457 + $0x48] sm:$0x1] 0.0
        %462 = vst [vmem:[%s457 + $0x60] sm:$0x1] 0.0
        %463 = vst [vmem:[%s457 + $0x78] sm:$0x1] 0.0
        %464 = vst [vmem:[%s457 + $0x90] sm:$0x1] 0.0
        %465 = vst [vmem:[%s457 + $0xa8] sm:$0x1] 0.0
        %466 = vst [vmem:[%s457 + $0xc0] sm:$0x1] 0.0
        %467 = vst [vmem:[%s457 + $0xd8] sm:$0x1] 0.0
        %468 = vst [vmem:[%s457 + $0xf0] sm:$0x1] 0.0
        %469 = vst [vmem:[%s457 + $0x108] sm:$0x1] 0.0
        %470 = vst [vmem:[%s457 + $0x120] sm:$0x1] 0.0
        %471 = vst [vmem:[%s457 + $0x138] sm:$0x1] 0.0
        %472 = vst [vmem:[%s457 + $0x150] sm:$0x1] 0.0
        %473 = vst [vmem:[%s457 + $0x168] sm:$0x1] 0.0
        %474 = vst [vmem:[%s457 + $0x11] sm:$0x1] 0.0
        %475 = vst [vmem:[%s457 + $0x29] sm:$0x1] 0.0
        %476 = vst [vmem:[%s457 + $0x41] sm:$0x1] 0.0
        %477 = vst [vmem:[%s457 + $0x59] sm:$0x1] 0.0
        %478 = vst [vmem:[%s457 + $0x71] sm:$0x1] 0.0
        %479 = vst [vmem:[%s457 + $0x89] sm:$0x1] 0.0
        %480 = vst [vmem:[%s457 + $0xa1] sm:$0x1] 0.0
        %481 = vst [vmem:[%s457 + $0xb9] sm:$0x1] 0.0
        %482 = vst [vmem:[%s457 + $0xd1] sm:$0x1] 0.0
        %483 = vst [vmem:[%s457 + $0xe9] sm:$0x1] 0.0
        %484 = vst [vmem:[%s457 + $0x101] sm:$0x1] 0.0
        %485 = vst [vmem:[%s457 + $0x119] sm:$0x1] 0.0
        %486 = vst [vmem:[%s457 + $0x131] sm:$0x1] 0.0
        %487 = vst [vmem:[%s457 + $0x149] sm:$0x1] 0.0
        %488 = vst [vmem:[%s457 + $0x161] sm:$0x1] 0.0
        %489 = vst [vmem:[%s457 + $0x179] sm:$0x1] 0.0
        %490 = vst [vmem:[%s457 + $0x1] sm:$0xff] %v418
        %491 = vst [vmem:[%s457 + $0x9] sm:$0xff] %v419
        %492 = vst [vmem:[%s457 + $0x19] sm:$0xff] %v420
        %493 = vst [vmem:[%s457 + $0x21] sm:$0xff] %v421
        %494 = vst [vmem:[%s457 + $0x31] sm:$0xff] %v422
        %495 = vst [vmem:[%s457 + $0x39] sm:$0xff] %v423
        %496 = vst [vmem:[%s457 + $0x49] sm:$0xff] %v424
        %497 = vst [vmem:[%s457 + $0x51] sm:$0xff] %v425
        %498 = vst [vmem:[%s457 + $0x61] sm:$0xff] %v426
        %499 = vst [vmem:[%s457 + $0x69] sm:$0xff] %v427
        %500 = vst [vmem:[%s457 + $0x79] sm:$0xff] %v428
        %501 = vst [vmem:[%s457 + $0x81] sm:$0xff] %v429
        %502 = vst [vmem:[%s457 + $0x91] sm:$0xff] %v430
        %503 = vst [vmem:[%s457 + $0x99] sm:$0xff] %v431
        %504 = vst [vmem:[%s457 + $0xa9] sm:$0xff] %v432
        %505 = vst [vmem:[%s457 + $0xb1] sm:$0xff] %v433
        %506 = vst [vmem:[%s457 + $0xc1] sm:$0xff] %v434
        %507 = vst [vmem:[%s457 + $0xc9] sm:$0xff] %v435
        %508 = vst [vmem:[%s457 + $0xd9] sm:$0xff] %v436
        %509 = vst [vmem:[%s457 + $0xe1] sm:$0xff] %v437
        %510 = vst [vmem:[%s457 + $0xf1] sm:$0xff] %v438
        %511 = vst [vmem:[%s457 + $0xf9] sm:$0xff] %v439
        %512 = vst [vmem:[%s457 + $0x109] sm:$0xff] %v440
        %513 = vst [vmem:[%s457 + $0x111] sm:$0xff] %v441
        %514 = vst [vmem:[%s457 + $0x121] sm:$0xff] %v442
        %515 = vst [vmem:[%s457 + $0x129] sm:$0xff] %v443
        %516 = vst [vmem:[%s457 + $0x139] sm:$0xff] %v444
        %517 = vst [vmem:[%s457 + $0x141] sm:$0xff] %v445
        %518 = vst [vmem:[%s457 + $0x151] sm:$0xff] %v446
        %519 = vst [vmem:[%s457 + $0x159] sm:$0xff] %v447
        %520 = vst [vmem:[%s457 + $0x169] sm:$0xff] %v448
        %521 = vst [vmem:[%s457 + $0x171] sm:$0xff] %v449
      $region40: #{conv_block_forward.3} parent=35 // pred_fallthru
        _
      %s522 = smul.u32 %s22, 4
      %s523 = smul.u32 %s522, 24
      %s524 = scalar_lea.vmem [#allocation2], %s523
      %v525 = vld [vmem:[%s524] sm:$0xff]
      %v526 = vld [vmem:[%s524 + $0x8] sm:$0xff]
      %v527 = vld [vmem:[%s524 + $0x10] sm:$0x3]
      %v528 = vld [vmem:[%s524 + $0x18] sm:$0xff]
      %v529 = vld [vmem:[%s524 + $0x20] sm:$0xff]
      %v530 = vld [vmem:[%s524 + $0x28] sm:$0x3]
      %v531 = vld [vmem:[%s524 + $0x30] sm:$0xff]
      %v532 = vld [vmem:[%s524 + $0x38] sm:$0xff]
      %v533 = vld [vmem:[%s524 + $0x40] sm:$0x3]
      %v534 = vld [vmem:[%s524 + $0x48] sm:$0xff]
      %v535 = vld [vmem:[%s524 + $0x50] sm:$0xff]
      %v536 = vld [vmem:[%s524 + $0x58] sm:$0x3]
      %v537 = vld [vmem:[%s524 + $0x60] sm:$0xff]
      %v538 = vld [vmem:[%s524 + $0x68] sm:$0xff]
      %v539 = vld [vmem:[%s524 + $0x70] sm:$0x3]
      %v540 = vld [vmem:[%s524 + $0x78] sm:$0xff]
      %v541 = vld [vmem:[%s524 + $0x80] sm:$0xff]
      %v542 = vld [vmem:[%s524 + $0x88] sm:$0x3]
      %v543 = vpack.c.bf16 %v526, %v525
      %v544 = vpack.c.bf16 %v527, %v527
      %v545 = vpack.c.bf16 %v529, %v528
      %v546 = vpack.c.bf16 %v530, %v530
      %v547 = vpack.c.bf16 %v532, %v531
      %v548 = vpack.c.bf16 %v533, %v533
      %v549 = vpack.c.bf16 %v535, %v534
      %v550 = vpack.c.bf16 %v536, %v536
      %v551 = vpack.c.bf16 %v538, %v537
      %v552 = vpack.c.bf16 %v539, %v539
      %v553 = vpack.c.bf16 %v541, %v540
      %v554 = vpack.c.bf16 %v542, %v542
      %vm555 = vsmask.f32 7424
      %v557 = vshrl.u32 %v543, 16
      %v559 = vshll.u32 %v543, 16
      %v561 = vrot.slane %v559, 1
      %v562 = vor.u32 %v557, %v561
      %v564 = vshll.u32 %v544, 16
      %v566 = vrot.slane %v564, 1
      %v567 = vsel %vm555, %v562, %v566
      %v569 = vshrl.u32 %v545, 16
      %v571 = vshll.u32 %v545, 16
      %v573 = vrot.slane %v571, 1
      %v574 = vor.u32 %v569, %v573
      %v576 = vshll.u32 %v546, 16
      %v578 = vrot.slane %v576, 1
      %v579 = vsel %vm555, %v574, %v578
      %v581 = vshrl.u32 %v547, 16
      %v583 = vshll.u32 %v547, 16
      %v585 = vrot.slane %v583, 1
      %v586 = vor.u32 %v581, %v585
      %v588 = vshll.u32 %v548, 16
      %v590 = vrot.slane %v588, 1
      %v591 = vsel %vm555, %v586, %v590
      %v593 = vshrl.u32 %v549, 16
      %v595 = vshll.u32 %v549, 16
      %v597 = vrot.slane %v595, 1
      %v598 = vor.u32 %v593, %v597
      %v600 = vshll.u32 %v550, 16
      %v602 = vrot.slane %v600, 1
      %v603 = vsel %vm555, %v598, %v602
      %vm616 = vcmask 1046528
      %v617 = vrot.slane %v543, 1
      %v618 = vrot.slane %v544, 1
      %v619 = vsel %vm616, %v617, %v618
      %v620 = vrot.slane %v545, 1
      %v621 = vrot.slane %v546, 1
      %v622 = vsel %vm616, %v620, %v621
      %v623 = vrot.slane %v547, 1
      %v624 = vrot.slane %v548, 1
      %v625 = vsel %vm616, %v623, %v624
      %v626 = vrot.slane %v549, 1
      %v627 = vrot.slane %v550, 1
      %v628 = vsel %vm616, %v626, %v627
      %v634 = vshrl.u32 %v551, 16
      %v636 = vshll.u32 %v551, 16
      %v638 = vrot.slane %v636, 1
      %v639 = vor.u32 %v634, %v638
      %v641 = vshll.u32 %v552, 16
      %v643 = vrot.slane %v641, 1
      %v644 = vsel %vm555, %v639, %v643
      %v648 = vrot.slane %v551, 1
      %v649 = vrot.slane %v552, 1
      %v650 = vsel %vm616, %v648, %v649
      %v653 = vshrl.u32 %v553, 16
      %v655 = vshll.u32 %v553, 16
      %v657 = vrot.slane %v655, 1
      %v658 = vor.u32 %v653, %v657
      %v660 = vshll.u32 %v554, 16
      %v662 = vrot.slane %v660, 1
      %v663 = vsel %vm555, %v658, %v662
      %v667 = vrot.slane %v553, 1
      %v668 = vrot.slane %v554, 1
      %v669 = vsel %vm616, %v667, %v668
      %v671 = vld [vmem:[%s1] sm:$0xf]
      %v672 = vld [vmem:[%s1 + $0x4] sm:$0xf]
      %v673 = vld [vmem:[%s1 + $0x8] sm:$0xf]
      %v674 = vld [vmem:[%s1 + $0xc] sm:$0xf]
      %v675 = vld [vmem:[%s1 + $0x10] sm:$0xf]
      %v676 = vld [vmem:[%s1 + $0x14] sm:$0xf]
      %v677 = vld [vmem:[%s1 + $0x18] sm:$0xf]
      %v678 = vld [vmem:[%s1 + $0x1c] sm:$0xf]
      %v679 = vld [vmem:[%s1 + $0x20] sm:$0xf]
      %v680 = vld [vmem:[%s1 + $0x24] sm:$0xf]
      %v681 = vld [vmem:[%s1 + $0x28] sm:$0xf]
      %v682 = vld [vmem:[%s1 + $0x2c] sm:$0xf]
      %v683 = vld [vmem:[%s1 + $0x30] sm:$0xf]
      %v684 = vld [vmem:[%s1 + $0x34] sm:$0xf]
      %v685 = vld [vmem:[%s1 + $0x38] sm:$0xf]
      %v686 = vld [vmem:[%s1 + $0x3c] sm:$0xf]
      %v687 = vld [vmem:[%s1 + $0x40] sm:$0xf]
      %v688 = vld [vmem:[%s1 + $0x44] sm:$0xf]
      %v689 = vld [vmem:[%s1 + $0x48] sm:$0xf]
      %v690 = vld [vmem:[%s1 + $0x4c] sm:$0xf]
      %v691 = vld [vmem:[%s1 + $0x50] sm:$0xf]
      %v692 = vld [vmem:[%s1 + $0x54] sm:$0xf]
      %v693 = vld [vmem:[%s1 + $0x58] sm:$0xf]
      %v694 = vld [vmem:[%s1 + $0x5c] sm:$0xf]
      %v695 = vld [vmem:[%s1 + $0x60] sm:$0xf]
      %v696 = vld [vmem:[%s1 + $0x64] sm:$0xf]
      %v697 = vld [vmem:[%s1 + $0x68] sm:$0xf]
      %v698 = vld [vmem:[%s1 + $0x6c] sm:$0xf]
      %v699 = vld [vmem:[%s1 + $0x70] sm:$0xf]
      %v700 = vld [vmem:[%s1 + $0x74] sm:$0xf]
      %v701 = vld [vmem:[%s1 + $0x78] sm:$0xf]
      %v702 = vld [vmem:[%s1 + $0x7c] sm:$0xf]
      %v703 = vld [vmem:[%s1 + $0x80] sm:$0xf]
      %v704 = vld [vmem:[%s1 + $0x84] sm:$0xf]
      %v705 = vld [vmem:[%s1 + $0x88] sm:$0xf]
      %v706 = vld [vmem:[%s1 + $0x8c] sm:$0xf]
      %v707 = vld [vmem:[%s1 + $0x90] sm:$0xf]
      %v708 = vld [vmem:[%s1 + $0x94] sm:$0xf]
      %v709 = vld [vmem:[%s1 + $0x98] sm:$0xf]
      %v710 = vld [vmem:[%s1 + $0x9c] sm:$0xf]
      %v711 = vld [vmem:[%s1 + $0xa0] sm:$0xf]
      %v712 = vld [vmem:[%s1 + $0xa4] sm:$0xf]
      %v713 = vld [vmem:[%s1 + $0xa8] sm:$0xf]
      %v714 = vld [vmem:[%s1 + $0xac] sm:$0xf]
      %v715 = vld [vmem:[%s1 + $0xb0] sm:$0xf]
      %v716 = vld [vmem:[%s1 + $0xb4] sm:$0xf]
      %v717 = vld [vmem:[%s1 + $0xb8] sm:$0xf]
      %v718 = vld [vmem:[%s1 + $0xbc] sm:$0xf]
      %v719 = vld [vmem:[%s1 + $0xc0] sm:$0xf]
      %v720 = vld [vmem:[%s1 + $0xc4] sm:$0xf]
      %v721 = vld [vmem:[%s1 + $0xc8] sm:$0xf]
      %v722 = vld [vmem:[%s1 + $0xcc] sm:$0xf]
      %v723 = vld [vmem:[%s1 + $0xd0] sm:$0xf]
      %v724 = vld [vmem:[%s1 + $0xd4] sm:$0xf]
      %v725 = vld [vmem:[%s1 + $0xd8] sm:$0xf]
      %v726 = vld [vmem:[%s1 + $0xdc] sm:$0xf]
      %v727 = vld [vmem:[%s1 + $0xe0] sm:$0xf]
      %v728 = vld [vmem:[%s1 + $0xe4] sm:$0xf]
      %v729 = vld [vmem:[%s1 + $0xe8] sm:$0xf]
      %v730 = vld [vmem:[%s1 + $0xec] sm:$0xf]
      %v731 = vld [vmem:[%s1 + $0xf0] sm:$0xf]
      %v732 = vld [vmem:[%s1 + $0xf4] sm:$0xf]
      %v733 = vld [vmem:[%s1 + $0xf8] sm:$0xf]
      %v734 = vld [vmem:[%s1 + $0xfc] sm:$0xf]
      %v735 = vld [vmem:[%s1 + $0x100] sm:$0xf]
      %v736 = vld [vmem:[%s1 + $0x104] sm:$0xf]
      %v737 = vld [vmem:[%s1 + $0x108] sm:$0xf]
      %v738 = vld [vmem:[%s1 + $0x10c] sm:$0xf]
      %v739 = vld [vmem:[%s1 + $0x110] sm:$0xf]
      %v740 = vld [vmem:[%s1 + $0x114] sm:$0xf]
      %v741 = vld [vmem:[%s1 + $0x118] sm:$0xf]
      %v742 = vld [vmem:[%s1 + $0x11c] sm:$0xf]
      %v743 = vld [vmem:[%s1 + $0x120] sm:$0xf]
      %v744 = vld [vmem:[%s1 + $0x124] sm:$0xf]
      %v745 = vld [vmem:[%s1 + $0x128] sm:$0xf]
      %v746 = vld [vmem:[%s1 + $0x12c] sm:$0xf]
      %v747 = vld [vmem:[%s1 + $0x130] sm:$0xf]
      %v748 = vld [vmem:[%s1 + $0x134] sm:$0xf]
      %v749 = vld [vmem:[%s1 + $0x138] sm:$0xf]
      %v750 = vld [vmem:[%s1 + $0x13c] sm:$0xf]
      %v751 = vld [vmem:[%s1 + $0x140] sm:$0xf]
      %v752 = vld [vmem:[%s1 + $0x144] sm:$0xf]
      %v753 = vld [vmem:[%s1 + $0x148] sm:$0xf]
      %v754 = vld [vmem:[%s1 + $0x14c] sm:$0xf]
      %v755 = vld [vmem:[%s1 + $0x150] sm:$0xf]
      %v756 = vld [vmem:[%s1 + $0x154] sm:$0xf]
      %v757 = vld [vmem:[%s1 + $0x158] sm:$0xf]
      %v758 = vld [vmem:[%s1 + $0x15c] sm:$0xf]
      %v759 = vld [vmem:[%s1 + $0x160] sm:$0xf]
      %v760 = vld [vmem:[%s1 + $0x164] sm:$0xf]
      %v761 = vld [vmem:[%s1 + $0x168] sm:$0xf]
      %v762 = vld [vmem:[%s1 + $0x16c] sm:$0xf]
      %v763 = vld [vmem:[%s1 + $0x170] sm:$0xf]
      %v764 = vld [vmem:[%s1 + $0x174] sm:$0xf]
      %v765 = vld [vmem:[%s1 + $0x178] sm:$0xf]
      %v766 = vld [vmem:[%s1 + $0x17c] sm:$0xf]
      %v767 = vld [vmem:[%s1 + $0x180] sm:$0xf]
      %v768 = vld [vmem:[%s1 + $0x184] sm:$0xf]
      %v769 = vld [vmem:[%s1 + $0x188] sm:$0xf]
      %v770 = vld [vmem:[%s1 + $0x18c] sm:$0xf]
      %v771 = vld [vmem:[%s1 + $0x190] sm:$0xf]
      %v772 = vld [vmem:[%s1 + $0x194] sm:$0xf]
      %v773 = vld [vmem:[%s1 + $0x198] sm:$0xf]
      %v774 = vld [vmem:[%s1 + $0x19c] sm:$0xf]
      %v775 = vld [vmem:[%s1 + $0x1a0] sm:$0xf]
      %v776 = vld [vmem:[%s1 + $0x1a4] sm:$0xf]
      %v777 = vld [vmem:[%s1 + $0x1a8] sm:$0xf]
      %v778 = vld [vmem:[%s1 + $0x1ac] sm:$0xf]
      %v779 = vld [vmem:[%s1 + $0x1b0] sm:$0xf]
      %v780 = vld [vmem:[%s1 + $0x1b4] sm:$0xf]
      %v781 = vld [vmem:[%s1 + $0x1b8] sm:$0xf]
      %v782 = vld [vmem:[%s1 + $0x1bc] sm:$0xf]
      %v783 = vld [vmem:[%s1 + $0x1c0] sm:$0xf]
      %v784 = vld [vmem:[%s1 + $0x1c4] sm:$0xf]
      %v785 = vld [vmem:[%s1 + $0x1c8] sm:$0xf]
      %v786 = vld [vmem:[%s1 + $0x1cc] sm:$0xf]
      %v787 = vld [vmem:[%s1 + $0x1d0] sm:$0xf]
      %v788 = vld [vmem:[%s1 + $0x1d4] sm:$0xf]
      %v789 = vld [vmem:[%s1 + $0x1d8] sm:$0xf]
      %v790 = vld [vmem:[%s1 + $0x1dc] sm:$0xf]
      %v791 = vld [vmem:[%s1 + $0x1e0] sm:$0xf]
      %v792 = vld [vmem:[%s1 + $0x1e4] sm:$0xf]
      %v793 = vld [vmem:[%s1 + $0x1e8] sm:$0xf]
      %v794 = vld [vmem:[%s1 + $0x1ec] sm:$0xf]
      %v795 = vld [vmem:[%s1 + $0x1f0] sm:$0xf]
      %v796 = vld [vmem:[%s1 + $0x1f4] sm:$0xf]
      %v797 = vld [vmem:[%s1 + $0x1f8] sm:$0xf]
      %v798 = vld [vmem:[%s1 + $0x1fc] sm:$0xf]
      %v799 = vld [vmem:[%s1 + $0x200] sm:$0xf]
      %v800 = vld [vmem:[%s1 + $0x204] sm:$0xf]
      %v801 = vld [vmem:[%s1 + $0x208] sm:$0xf]
      %v802 = vld [vmem:[%s1 + $0x20c] sm:$0xf]
      %v803 = vld [vmem:[%s1 + $0x210] sm:$0xf]
      %v804 = vld [vmem:[%s1 + $0x214] sm:$0xf]
      %v805 = vld [vmem:[%s1 + $0x218] sm:$0xf]
      %v806 = vld [vmem:[%s1 + $0x21c] sm:$0xf]
      %v807 = vld [vmem:[%s1 + $0x220] sm:$0xf]
      %v808 = vld [vmem:[%s1 + $0x224] sm:$0xf]
      %v809 = vld [vmem:[%s1 + $0x228] sm:$0xf]
      %v810 = vld [vmem:[%s1 + $0x22c] sm:$0xf]
      %v811 = vld [vmem:[%s1 + $0x230] sm:$0xf]
      %v812 = vld [vmem:[%s1 + $0x234] sm:$0xf]
      %v813 = vld [vmem:[%s1 + $0x238] sm:$0xf]
      %v814 = vld [vmem:[%s1 + $0x23c] sm:$0xf]
      %v959 = vunpack.c.l.b16 %v671
      %v960 = vunpack.c.l.b16 %v672
      %v961 = vunpack.c.l.b16 %v673
      %v962 = vunpack.c.l.b16 %v674
      %v963 = vunpack.c.l.b16 %v675
      %v964 = vunpack.c.l.b16 %v676
      %v965 = vunpack.c.l.b16 %v677
      %v966 = vunpack.c.l.b16 %v678
      %v967 = vunpack.c.l.b16 %v679
      %v968 = vunpack.c.l.b16 %v680
      %v969 = vunpack.c.l.b16 %v681
      %v970 = vunpack.c.l.b16 %v682
      %v971 = vunpack.c.l.b16 %v683
      %v972 = vunpack.c.l.b16 %v684
      %v973 = vunpack.c.l.b16 %v685
      %v974 = vunpack.c.l.b16 %v686
      %v975 = vunpack.c.l.b16 %v687
      %v976 = vunpack.c.l.b16 %v688
      %v977 = vunpack.c.l.b16 %v689
      %v978 = vunpack.c.l.b16 %v690
      %v979 = vunpack.c.l.b16 %v691
      %v980 = vunpack.c.l.b16 %v692
      %v981 = vunpack.c.l.b16 %v693
      %v982 = vunpack.c.l.b16 %v694
      %v983 = vunpack.c.l.b16 %v695
      %v984 = vunpack.c.l.b16 %v696
      %v985 = vunpack.c.l.b16 %v697
      %v986 = vunpack.c.l.b16 %v698
      %v987 = vunpack.c.l.b16 %v699
      %v988 = vunpack.c.l.b16 %v700
      %v989 = vunpack.c.l.b16 %v701
      %v990 = vunpack.c.l.b16 %v702
      %v991 = vunpack.c.l.b16 %v703
      %v992 = vunpack.c.l.b16 %v704
      %v993 = vunpack.c.l.b16 %v705
      %v994 = vunpack.c.l.b16 %v706
      %v995 = vunpack.c.l.b16 %v707
      %v996 = vunpack.c.l.b16 %v708
      %v997 = vunpack.c.l.b16 %v709
      %v998 = vunpack.c.l.b16 %v710
      %v999 = vunpack.c.l.b16 %v711
      %v1000 = vunpack.c.l.b16 %v712
      %v1001 = vunpack.c.l.b16 %v713
      %v1002 = vunpack.c.l.b16 %v714
      %v1003 = vunpack.c.l.b16 %v715
      %v1004 = vunpack.c.l.b16 %v716
      %v1005 = vunpack.c.l.b16 %v717
      %v1006 = vunpack.c.l.b16 %v718
      %v1007 = vunpack.c.l.b16 %v719
      %v1008 = vunpack.c.l.b16 %v720
      %v1009 = vunpack.c.l.b16 %v721
      %v1010 = vunpack.c.l.b16 %v722
      %v1011 = vunpack.c.l.b16 %v723
      %v1012 = vunpack.c.l.b16 %v724
      %v1013 = vunpack.c.l.b16 %v725
      %v1014 = vunpack.c.l.b16 %v726
      %v1015 = vunpack.c.l.b16 %v727
      %v1016 = vunpack.c.l.b16 %v728
      %v1017 = vunpack.c.l.b16 %v729
      %v1018 = vunpack.c.l.b16 %v730
      %v1019 = vunpack.c.l.b16 %v731
      %v1020 = vunpack.c.l.b16 %v732
      %v1021 = vunpack.c.l.b16 %v733
      %v1022 = vunpack.c.l.b16 %v734
      %v1023 = vunpack.c.l.b16 %v735
      %v1024 = vunpack.c.l.b16 %v736
      %v1025 = vunpack.c.l.b16 %v737
      %v1026 = vunpack.c.l.b16 %v738
      %v1027 = vunpack.c.l.b16 %v739
      %v1028 = vunpack.c.l.b16 %v740
      %v1029 = vunpack.c.l.b16 %v741
      %v1030 = vunpack.c.l.b16 %v742
      %v1031 = vunpack.c.l.b16 %v743
      %v1032 = vunpack.c.l.b16 %v744
      %v1033 = vunpack.c.l.b16 %v745
      %v1034 = vunpack.c.l.b16 %v746
      %v1035 = vunpack.c.l.b16 %v747
      %v1036 = vunpack.c.l.b16 %v748
      %v1037 = vunpack.c.l.b16 %v749
      %v1038 = vunpack.c.l.b16 %v750
      %v1039 = vunpack.c.l.b16 %v751
      %v1040 = vunpack.c.l.b16 %v752
      %v1041 = vunpack.c.l.b16 %v753
      %v1042 = vunpack.c.l.b16 %v754
      %v1043 = vunpack.c.l.b16 %v755
      %v1044 = vunpack.c.l.b16 %v756
      %v1045 = vunpack.c.l.b16 %v757
      %v1046 = vunpack.c.l.b16 %v758
      %v1047 = vunpack.c.l.b16 %v759
      %v1048 = vunpack.c.l.b16 %v760
      %v1049 = vunpack.c.l.b16 %v761
      %v1050 = vunpack.c.l.b16 %v762
      %v1051 = vunpack.c.l.b16 %v763
      %v1052 = vunpack.c.l.b16 %v764
      %v1053 = vunpack.c.l.b16 %v765
      %v1054 = vunpack.c.l.b16 %v766
      %v1055 = vunpack.c.l.b16 %v767
      %v1056 = vunpack.c.l.b16 %v768
      %v1057 = vunpack.c.l.b16 %v769
      %v1058 = vunpack.c.l.b16 %v770
      %v1059 = vunpack.c.l.b16 %v771
      %v1060 = vunpack.c.l.b16 %v772
      %v1061 = vunpack.c.l.b16 %v773
      %v1062 = vunpack.c.l.b16 %v774
      %v1063 = vunpack.c.l.b16 %v775
      %v1064 = vunpack.c.l.b16 %v776
      %v1065 = vunpack.c.l.b16 %v777
      %v1066 = vunpack.c.l.b16 %v778
      %v1067 = vunpack.c.l.b16 %v779
      %v1068 = vunpack.c.l.b16 %v780
      %v1069 = vunpack.c.l.b16 %v781
      %v1070 = vunpack.c.l.b16 %v782
      %v1071 = vunpack.c.l.b16 %v783
      %v1072 = vunpack.c.l.b16 %v784
      %v1073 = vunpack.c.l.b16 %v785
      %v1074 = vunpack.c.l.b16 %v786
      %v1075 = vunpack.c.l.b16 %v787
      %v1076 = vunpack.c.l.b16 %v788
      %v1077 = vunpack.c.l.b16 %v789
      %v1078 = vunpack.c.l.b16 %v790
      %v1079 = vunpack.c.l.b16 %v791
      %v1080 = vunpack.c.l.b16 %v792
      %v1081 = vunpack.c.l.b16 %v793
      %v1082 = vunpack.c.l.b16 %v794
      %v1083 = vunpack.c.l.b16 %v795
      %v1084 = vunpack.c.l.b16 %v796
      %v1085 = vunpack.c.l.b16 %v797
      %v1086 = vunpack.c.l.b16 %v798
      %v1087 = vunpack.c.l.b16 %v799
      %v1088 = vunpack.c.l.b16 %v800
      %v1089 = vunpack.c.l.b16 %v801
      %v1090 = vunpack.c.l.b16 %v802
      %v1091 = vunpack.c.l.b16 %v803
      %v1092 = vunpack.c.l.b16 %v804
      %v1093 = vunpack.c.l.b16 %v805
      %v1094 = vunpack.c.l.b16 %v806
      %v1095 = vunpack.c.l.b16 %v807
      %v1096 = vunpack.c.l.b16 %v808
      %v1097 = vunpack.c.l.b16 %v809
      %v1098 = vunpack.c.l.b16 %v810
      %v1099 = vunpack.c.l.b16 %v811
      %v1100 = vunpack.c.l.b16 %v812
      %v1101 = vunpack.c.l.b16 %v813
      %v1102 = vunpack.c.l.b16 %v814
      %v1103 = vpack.c.b16 %v960, %v959
      %v1104 = vpack.c.b16 %v962, %v961
      %v1105 = vpack.c.b16 %v964, %v963
      %v1106 = vpack.c.b16 %v966, %v965
      %v1107 = vpack.c.b16 %v968, %v967
      %v1108 = vpack.c.b16 %v970, %v969
      %v1109 = vpack.c.b16 %v972, %v971
      %v1110 = vpack.c.b16 %v974, %v973
      %v1111 = vpack.c.b16 %v976, %v975
      %v1112 = vpack.c.b16 %v978, %v977
      %v1113 = vpack.c.b16 %v980, %v979
      %v1114 = vpack.c.b16 %v982, %v981
      %v1115 = vpack.c.b16 %v984, %v983
      %v1116 = vpack.c.b16 %v986, %v985
      %v1117 = vpack.c.b16 %v988, %v987
      %v1118 = vpack.c.b16 %v990, %v989
      %v1119 = vpack.c.b16 %v992, %v991
      %v1120 = vpack.c.b16 %v994, %v993
      %v1121 = vpack.c.b16 %v996, %v995
      %v1122 = vpack.c.b16 %v998, %v997
      %v1123 = vpack.c.b16 %v1000, %v999
      %v1124 = vpack.c.b16 %v1002, %v1001
      %v1125 = vpack.c.b16 %v1004, %v1003
      %v1126 = vpack.c.b16 %v1006, %v1005
      %v1127 = vpack.c.b16 %v1008, %v1007
      %v1128 = vpack.c.b16 %v1010, %v1009
      %v1129 = vpack.c.b16 %v1012, %v1011
      %v1130 = vpack.c.b16 %v1014, %v1013
      %v1131 = vpack.c.b16 %v1016, %v1015
      %v1132 = vpack.c.b16 %v1018, %v1017
      %v1133 = vpack.c.b16 %v1020, %v1019
      %v1134 = vpack.c.b16 %v1022, %v1021
      %v1135 = vpack.c.b16 %v1024, %v1023
      %v1136 = vpack.c.b16 %v1026, %v1025
      %v1137 = vpack.c.b16 %v1028, %v1027
      %v1138 = vpack.c.b16 %v1030, %v1029
      %v1139 = vpack.c.b16 %v1032, %v1031
      %v1140 = vpack.c.b16 %v1034, %v1033
      %v1141 = vpack.c.b16 %v1036, %v1035
      %v1142 = vpack.c.b16 %v1038, %v1037
      %v1143 = vpack.c.b16 %v1040, %v1039
      %v1144 = vpack.c.b16 %v1042, %v1041
      %v1145 = vpack.c.b16 %v1044, %v1043
      %v1146 = vpack.c.b16 %v1046, %v1045
      %v1147 = vpack.c.b16 %v1048, %v1047
      %v1148 = vpack.c.b16 %v1050, %v1049
      %v1149 = vpack.c.b16 %v1052, %v1051
      %v1150 = vpack.c.b16 %v1054, %v1053
      %v1151 = vpack.c.b16 %v1056, %v1055
      %v1152 = vpack.c.b16 %v1058, %v1057
      %v1153 = vpack.c.b16 %v1060, %v1059
      %v1154 = vpack.c.b16 %v1062, %v1061
      %v1155 = vpack.c.b16 %v1064, %v1063
      %v1156 = vpack.c.b16 %v1066, %v1065
      %v1157 = vpack.c.b16 %v1068, %v1067
      %v1158 = vpack.c.b16 %v1070, %v1069
      %v1159 = vpack.c.b16 %v1072, %v1071
      %v1160 = vpack.c.b16 %v1074, %v1073
      %v1161 = vpack.c.b16 %v1076, %v1075
      %v1162 = vpack.c.b16 %v1078, %v1077
      %v1163 = vpack.c.b16 %v1080, %v1079
      %v1164 = vpack.c.b16 %v1082, %v1081
      %v1165 = vpack.c.b16 %v1084, %v1083
      %v1166 = vpack.c.b16 %v1086, %v1085
      %v1167 = vpack.c.b16 %v1088, %v1087
      %v1168 = vpack.c.b16 %v1090, %v1089
      %v1169 = vpack.c.b16 %v1092, %v1091
      %v1170 = vpack.c.b16 %v1094, %v1093
      %v1171 = vpack.c.b16 %v1096, %v1095
      %v1172 = vpack.c.b16 %v1098, %v1097
      %v1173 = vpack.c.b16 %v1100, %v1099
      %v1174 = vpack.c.b16 %v1102, %v1101
      %1247 = vmatprep.subr.bf16.mxu0 0
      %1248 = vmatpush1.bf16.msra.mxu0 %v1103
      %1249 = vmatprep.subr.bf16.mxu0 0
      %1250 = vmatpush1.bf16.msra.mxu0 %v1104
      %1251 = vmatprep.subr.bf16.mxu0 0
      %1252 = vmatpush1.bf16.msra.mxu0 %v1105
      %1253 = vmatprep.subr.bf16.mxu0 0
      %1254 = vmatpush1.bf16.msra.mxu0 %v1106
      %1255 = vmatprep.subr.bf16.mxu0 0
      %1256 = vmatpush1.bf16.msra.mxu0 %v1107
      %1257 = vmatprep.subr.bf16.mxu0 0
      %1258 = vmatpush1.bf16.msra.mxu0 %v1108
      %1259 = vmatprep.subr.bf16.mxu0 0
      %1260 = vmatpush1.bf16.msra.mxu0 %v1109
      %1261 = vmatprep.subr.bf16.mxu0 0
      %1262 = vmatpush1.bf16.msra.mxu0 %v1110
      %1263 = vmatprep.subr.bf16.mxu0 0
      %1264 = vmatpush1.bf16.msra.mxu0 %v1111
      %1265 = vmatprep.subr.bf16.mxu0 0
      %1266 = vmatpush1.bf16.msra.mxu0 %v1112
      %1267 = vmatprep.subr.bf16.mxu0 0
      %1268 = vmatpush1.bf16.msra.mxu0 %v1113
      %1269 = vmatprep.subr.bf16.mxu0 0
      %1270 = vmatpush1.bf16.msra.mxu0 %v1114
      %1271 = vmatprep.subr.bf16.mxu0 0
      %1272 = vmatpush1.bf16.msra.mxu0 %v1115
      %1273 = vmatprep.subr.bf16.mxu0 0
      %1274 = vmatpush1.bf16.msra.mxu0 %v1116
      %1275 = vmatprep.subr.bf16.mxu0 0
      %1276 = vmatpush1.bf16.msra.mxu0 %v1117
      %1277 = vmatprep.subr.bf16.mxu0 0
      %1278 = vmatpush1.bf16.msra.mxu0 %v1118
      %1279 = vmatprep.mubr.bf16.mxu0 %v567
      %1280 = vmatmul.mubr.bf16.gmra.mrb[0].mxu0 %v543
      %v1281 = vpop.f32.mrb[0].mxu0
      %v1282 = vadd.f32 0.0, %v1281
      %v1283 = vpop.f32.mrb[0].mxu0
      %v1284 = vpop.f32.mrb[0].mxu0
      %v1285 = vadd.f32 0.0, %v1284
      %v1286 = vpop.f32.mrb[0].mxu0
      %1287 = vmatprep.mubr.bf16.mxu0 %v579
      %1288 = vmatmul.mubr.bf16.gmra.mrb[0].mxu0 %v545
      %v1289 = vpop.f32.mrb[0].mxu0
      %v1290 = vadd.f32 0.0, %v1289
      %v1291 = vpop.f32.mrb[0].mxu0
      %v1292 = vpop.f32.mrb[0].mxu0
      %v1293 = vadd.f32 0.0, %v1292
      %v1294 = vpop.f32.mrb[0].mxu0
      %1295 = vmatprep.mubr.bf16.mxu0 %v591
      %1296 = vmatmul.mubr.bf16.gmra.mrb[0].mxu0 %v547
      %v1297 = vpop.f32.mrb[0].mxu0
      %v1298 = vadd.f32 0.0, %v1297
      %v1299 = vpop.f32.mrb[0].mxu0
      %v1300 = vpop.f32.mrb[0].mxu0
      %v1301 = vadd.f32 0.0, %v1300
      %v1302 = vpop.f32.mrb[0].mxu0
      %1303 = vmatprep.mubr.bf16.mxu0 %v603
      %1304 = vmatmul.mubr.bf16.gmra.mrb[0].mxu0 %v549
      %v1305 = vpop.f32.mrb[0].mxu0
      %v1306 = vadd.f32 0.0, %v1305
      %v1307 = vpop.f32.mrb[0].mxu0
      %v1308 = vpop.f32.mrb[0].mxu0
      %v1309 = vadd.f32 0.0, %v1308
      %v1310 = vpop.f32.mrb[0].mxu0
      %1311 = vdwg.mxu0
      %1312 = vmatprep.subr.bf16.mxu0 0
      %1313 = vmatpush1.bf16.msra.mxu0 %v1119
      %1314 = vmatprep.subr.bf16.mxu0 0
      %1315 = vmatpush1.bf16.msra.mxu0 %v1120
      %1316 = vmatprep.subr.bf16.mxu0 0
      %1317 = vmatpush1.bf16.msra.mxu0 %v1121
      %1318 = vmatprep.subr.bf16.mxu0 0
      %1319 = vmatpush1.bf16.msra.mxu0 %v1122
      %1320 = vmatprep.subr.bf16.mxu0 0
      %1321 = vmatpush1.bf16.msra.mxu0 %v1123
      %1322 = vmatprep.subr.bf16.mxu0 0
      %1323 = vmatpush1.bf16.msra.mxu0 %v1124
      %1324 = vmatprep.subr.bf16.mxu0 0
      %1325 = vmatpush1.bf16.msra.mxu0 %v1125
      %1326 = vmatprep.subr.bf16.mxu0 0
      %1327 = vmatpush1.bf16.msra.mxu0 %v1126
      %1328 = vmatprep.subr.bf16.mxu0 0
      %1329 = vmatpush1.bf16.msra.mxu0 %v1127
      %1330 = vmatprep.subr.bf16.mxu0 0
      %1331 = vmatpush1.bf16.msra.mxu0 %v1128
      %1332 = vmatprep.subr.bf16.mxu0 0
      %1333 = vmatpush1.bf16.msra.mxu0 %v1129
      %1334 = vmatprep.subr.bf16.mxu0 0
      %1335 = vmatpush1.bf16.msra.mxu0 %v1130
      %1336 = vmatprep.subr.bf16.mxu0 0
      %1337 = vmatpush1.bf16.msra.mxu0 %v1131
      %1338 = vmatprep.subr.bf16.mxu0 0
      %1339 = vmatpush1.bf16.msra.mxu0 %v1132
      %1340 = vmatprep.subr.bf16.mxu0 0
      %1341 = vmatpush1.bf16.msra.mxu0 %v1133
      %1342 = vmatprep.subr.bf16.mxu0 0
      %1343 = vmatpush1.bf16.msra.mxu0 %v1134
      %1344 = vmatprep.mubr.bf16.mxu0 %v545
      %1345 = vmatmul.mubr.bf16.gmra.mrb[0].mxu0 %v619
      %v1346 = vpop.f32.mrb[0].mxu0
      %v1347 = vadd.f32 %v1282, %v1346
      %v1348 = vpop.f32.mrb[0].mxu0
      %v1349 = vpop.f32.mrb[0].mxu0
      %v1350 = vadd.f32 %v1285, %v1349
      %v1351 = vpop.f32.mrb[0].mxu0
      %1352 = vmatprep.mubr.bf16.mxu0 %v547
      %1353 = vmatmul.mubr.bf16.gmra.mrb[0].mxu0 %v622
      %v1354 = vpop.f32.mrb[0].mxu0
      %v1355 = vadd.f32 %v1290, %v1354
      %v1356 = vpop.f32.mrb[0].mxu0
      %v1357 = vpop.f32.mrb[0].mxu0
      %v1358 = vadd.f32 %v1293, %v1357
      %v1359 = vpop.f32.mrb[0].mxu0
      %1360 = vmatprep.mubr.bf16.mxu0 %v549
      %1361 = vmatmul.mubr.bf16.gmra.mrb[0].mxu0 %v625
      %v1362 = vpop.f32.mrb[0].mxu0
      %v1363 = vadd.f32 %v1298, %v1362
      %v1364 = vpop.f32.mrb[0].mxu0
      %v1365 = vpop.f32.mrb[0].mxu0
      %v1366 = vadd.f32 %v1301, %v1365
      %v1367 = vpop.f32.mrb[0].mxu0
      %1368 = vmatprep.mubr.bf16.mxu0 %v551
      %1369 = vmatmul.mubr.bf16.gmra.mrb[0].mxu0 %v628
      %v1370 = vpop.f32.mrb[0].mxu0
      %v1371 = vadd.f32 %v1306, %v1370
      %v1372 = vpop.f32.mrb[0].mxu0
      %v1373 = vpop.f32.mrb[0].mxu0
      %v1374 = vadd.f32 %v1309, %v1373
      %v1375 = vpop.f32.mrb[0].mxu0
      %1376 = vdwg.mxu0
      %1377 = vmatprep.subr.bf16.mxu0 0
      %1378 = vmatpush1.bf16.msra.mxu0 %v1135
      %1379 = vmatprep.subr.bf16.mxu0 0
      %1380 = vmatpush1.bf16.msra.mxu0 %v1136
      %1381 = vmatprep.subr.bf16.mxu0 0
      %1382 = vmatpush1.bf16.msra.mxu0 %v1137
      %1383 = vmatprep.subr.bf16.mxu0 0
      %1384 = vmatpush1.bf16.msra.mxu0 %v1138
      %1385 = vmatprep.subr.bf16.mxu0 0
      %1386 = vmatpush1.bf16.msra.mxu0 %v1139
      %1387 = vmatprep.subr.bf16.mxu0 0
      %1388 = vmatpush1.bf16.msra.mxu0 %v1140
      %1389 = vmatprep.subr.bf16.mxu0 0
      %1390 = vmatpush1.bf16.msra.mxu0 %v1141
      %1391 = vmatprep.subr.bf16.mxu0 0
      %1392 = vmatpush1.bf16.msra.mxu0 %v1142
      %1393 = vmatprep.subr.bf16.mxu0 0
      %1394 = vmatpush1.bf16.msra.mxu0 %v1143
      %1395 = vmatprep.subr.bf16.mxu0 0
      %1396 = vmatpush1.bf16.msra.mxu0 %v1144
      %1397 = vmatprep.subr.bf16.mxu0 0
      %1398 = vmatpush1.bf16.msra.mxu0 %v1145
      %1399 = vmatprep.subr.bf16.mxu0 0
      %1400 = vmatpush1.bf16.msra.mxu0 %v1146
      %1401 = vmatprep.subr.bf16.mxu0 0
      %1402 = vmatpush1.bf16.msra.mxu0 %v1147
      %1403 = vmatprep.subr.bf16.mxu0 0
      %1404 = vmatpush1.bf16.msra.mxu0 %v1148
      %1405 = vmatprep.subr.bf16.mxu0 0
      %1406 = vmatpush1.bf16.msra.mxu0 %v1149
      %1407 = vmatprep.subr.bf16.mxu0 0
      %1408 = vmatpush1.bf16.msra.mxu0 %v1150
      %1409 = vmatprep.mubr.bf16.mxu0 %v622
      %1410 = vmatmul.mubr.bf16.gmra.mrb[0].mxu0 %v579
      %v1411 = vpop.f32.mrb[0].mxu0
      %v1412 = vadd.f32 %v1347, %v1411
      %v1413 = vpop.f32.mrb[0].mxu0
      %v1414 = vpop.f32.mrb[0].mxu0
      %v1415 = vadd.f32 %v1350, %v1414
      %v1416 = vpop.f32.mrb[0].mxu0
      %1417 = vmatprep.mubr.bf16.mxu0 %v625
      %1418 = vmatmul.mubr.bf16.gmra.mrb[0].mxu0 %v591
      %v1419 = vpop.f32.mrb[0].mxu0
      %v1420 = vadd.f32 %v1355, %v1419
      %v1421 = vpop.f32.mrb[0].mxu0
      %v1422 = vpop.f32.mrb[0].mxu0
      %v1423 = vadd.f32 %v1358, %v1422
      %v1424 = vpop.f32.mrb[0].mxu0
      %1425 = vmatprep.mubr.bf16.mxu0 %v628
      %1426 = vmatmul.mubr.bf16.gmra.mrb[0].mxu0 %v603
      %v1427 = vpop.f32.mrb[0].mxu0
      %v1428 = vadd.f32 %v1363, %v1427
      %v1429 = vpop.f32.mrb[0].mxu0
      %v1430 = vpop.f32.mrb[0].mxu0
      %v1431 = vadd.f32 %v1366, %v1430
      %v1432 = vpop.f32.mrb[0].mxu0
      %1433 = vmatprep.mubr.bf16.mxu0 %v650
      %1434 = vmatmul.mubr.bf16.gmra.mrb[0].mxu0 %v644
      %v1435 = vpop.f32.mrb[0].mxu0
      %v1436 = vadd.f32 %v1371, %v1435
      %v1437 = vpop.f32.mrb[0].mxu0
      %v1438 = vpop.f32.mrb[0].mxu0
      %v1439 = vadd.f32 %v1374, %v1438
      %v1440 = vpop.f32.mrb[0].mxu0
      %1441 = vdwg.mxu0
      %1442 = vmatprep.subr.bf16.mxu0 0
      %1443 = vmatpush1.bf16.msra.mxu0 %v1151
      %1444 = vmatprep.subr.bf16.mxu0 0
      %1445 = vmatpush1.bf16.msra.mxu0 %v1152
      %1446 = vmatprep.subr.bf16.mxu0 0
      %1447 = vmatpush1.bf16.msra.mxu0 %v1153
      %1448 = vmatprep.subr.bf16.mxu0 0
      %1449 = vmatpush1.bf16.msra.mxu0 %v1154
      %1450 = vmatprep.subr.bf16.mxu0 0
      %1451 = vmatpush1.bf16.msra.mxu0 %v1155
      %1452 = vmatprep.subr.bf16.mxu0 0
      %1453 = vmatpush1.bf16.msra.mxu0 %v1156
      %1454 = vmatprep.subr.bf16.mxu0 0
      %1455 = vmatpush1.bf16.msra.mxu0 %v1157
      %1456 = vmatprep.subr.bf16.mxu0 0
      %1457 = vmatpush1.bf16.msra.mxu0 %v1158
      %1458 = vmatprep.subr.bf16.mxu0 0
      %1459 = vmatpush1.bf16.msra.mxu0 %v1159
      %1460 = vmatprep.subr.bf16.mxu0 0
      %1461 = vmatpush1.bf16.msra.mxu0 %v1160
      %1462 = vmatprep.subr.bf16.mxu0 0
      %1463 = vmatpush1.bf16.msra.mxu0 %v1161
      %1464 = vmatprep.subr.bf16.mxu0 0
      %1465 = vmatpush1.bf16.msra.mxu0 %v1162
      %1466 = vmatprep.subr.bf16.mxu0 0
      %1467 = vmatpush1.bf16.msra.mxu0 %v1163
      %1468 = vmatprep.subr.bf16.mxu0 0
      %1469 = vmatpush1.bf16.msra.mxu0 %v1164
      %1470 = vmatprep.subr.bf16.mxu0 0
      %1471 = vmatpush1.bf16.msra.mxu0 %v1165
      %1472 = vmatprep.subr.bf16.mxu0 0
      %1473 = vmatpush1.bf16.msra.mxu0 %v1166
      %1474 = vmatprep.mubr.bf16.mxu0 %v591
      %1475 = vmatmul.mubr.bf16.gmra.mrb[0].mxu0 %v547
      %v1476 = vpop.f32.mrb[0].mxu0
      %v1477 = vadd.f32 %v1412, %v1476
      %v1478 = vpop.f32.mrb[0].mxu0
      %v1479 = vpop.f32.mrb[0].mxu0
      %v1480 = vadd.f32 %v1415, %v1479
      %v1481 = vpop.f32.mrb[0].mxu0
      %1482 = vmatprep.mubr.bf16.mxu0 %v603
      %1483 = vmatmul.mubr.bf16.gmra.mrb[0].mxu0 %v549
      %v1484 = vpop.f32.mrb[0].mxu0
      %v1485 = vadd.f32 %v1420, %v1484
      %v1486 = vpop.f32.mrb[0].mxu0
      %v1487 = vpop.f32.mrb[0].mxu0
      %v1488 = vadd.f32 %v1423, %v1487
      %v1489 = vpop.f32.mrb[0].mxu0
      %1490 = vmatprep.mubr.bf16.mxu0 %v644
      %1491 = vmatmul.mubr.bf16.gmra.mrb[0].mxu0 %v551
      %v1492 = vpop.f32.mrb[0].mxu0
      %v1493 = vadd.f32 %v1428, %v1492
      %v1494 = vpop.f32.mrb[0].mxu0
      %v1495 = vpop.f32.mrb[0].mxu0
      %v1496 = vadd.f32 %v1431, %v1495
      %v1497 = vpop.f32.mrb[0].mxu0
      %1498 = vmatprep.mubr.bf16.mxu0 %v663
      %1499 = vmatmul.mubr.bf16.gmra.mrb[0].mxu0 %v553
      %v1500 = vpop.f32.mrb[0].mxu0
      %v1501 = vadd.f32 %v1436, %v1500
      %v1502 = vpop.f32.mrb[0].mxu0
      %v1503 = vpop.f32.mrb[0].mxu0
      %v1504 = vadd.f32 %v1439, %v1503
      %v1505 = vpop.f32.mrb[0].mxu0
      %1506 = vdwg.mxu0
      %1507 = vmatprep.subr.bf16.mxu0 0
      %1508 = vmatpush1.bf16.msra.mxu0 %v1167
      %1509 = vmatprep.subr.bf16.mxu0 0
      %1510 = vmatpush1.bf16.msra.mxu0 %v1168
      %1511 = vmatprep.subr.bf16.mxu0 0
      %1512 = vmatpush1.bf16.msra.mxu0 %v1169
      %1513 = vmatprep.subr.bf16.mxu0 0
      %1514 = vmatpush1.bf16.msra.mxu0 %v1170
      %1515 = vmatprep.subr.bf16.mxu0 0
      %1516 = vmatpush1.bf16.msra.mxu0 %v1171
      %1517 = vmatprep.subr.bf16.mxu0 0
      %1518 = vmatpush1.bf16.msra.mxu0 %v1172
      %1519 = vmatprep.subr.bf16.mxu0 0
      %1520 = vmatpush1.bf16.msra.mxu0 %v1173
      %1521 = vmatprep.subr.bf16.mxu0 0
      %1522 = vmatpush1.bf16.msra.mxu0 %v1174
      %1523 = vmatprep.subr.bf16.mxu0 0
      %1524 = vmatpush1.bf16.msra.mxu0 0
      %1525 = vmatprep.subr.bf16.mxu0 0
      %1526 = vmatpush1.bf16.msra.mxu0 0
      %1527 = vmatprep.subr.bf16.mxu0 0
      %1528 = vmatpush1.bf16.msra.mxu0 0
      %1529 = vmatprep.subr.bf16.mxu0 0
      %1530 = vmatpush1.bf16.msra.mxu0 0
      %1531 = vmatprep.subr.bf16.mxu0 0
      %1532 = vmatpush1.bf16.msra.mxu0 0
      %1533 = vmatprep.subr.bf16.mxu0 0
      %1534 = vmatpush1.bf16.msra.mxu0 0
      %1535 = vmatprep.subr.bf16.mxu0 0
      %1536 = vmatpush1.bf16.msra.mxu0 0
      %1537 = vmatprep.subr.bf16.mxu0 0
      %1538 = vmatpush1.bf16.msra.mxu0 0
      %1539 = vmatprep.mubr.bf16.mxu0 0
      %1540 = vmatmul.mubr.bf16.gmra.mrb[0].mxu0 %v625
      %v1541 = vpop.f32.mrb[0].mxu0
      %v1542 = vadd.f32 %v1477, %v1541
      %v1543 = vpop.f32.mrb[0].mxu0
      %v1544 = vpop.f32.mrb[0].mxu0
      %v1545 = vadd.f32 %v1480, %v1544
      %v1546 = vpop.f32.mrb[0].mxu0
      %1547 = vmatprep.mubr.bf16.mxu0 0
      %1548 = vmatmul.mubr.bf16.gmra.mrb[0].mxu0 %v628
      %v1549 = vpop.f32.mrb[0].mxu0
      %v1550 = vadd.f32 %v1485, %v1549
      %v1551 = vpop.f32.mrb[0].mxu0
      %v1552 = vpop.f32.mrb[0].mxu0
      %v1553 = vadd.f32 %v1488, %v1552
      %v1554 = vpop.f32.mrb[0].mxu0
      %1555 = vmatprep.mubr.bf16.mxu0 0
      %1556 = vmatmul.mubr.bf16.gmra.mrb[0].mxu0 %v650
      %v1557 = vpop.f32.mrb[0].mxu0
      %v1558 = vadd.f32 %v1493, %v1557
      %v1559 = vpop.f32.mrb[0].mxu0
      %v1560 = vpop.f32.mrb[0].mxu0
      %v1561 = vadd.f32 %v1496, %v1560
      %v1562 = vpop.f32.mrb[0].mxu0
      %1563 = vmatprep.mubr.bf16.mxu0 0
      %1564 = vmatmul.mubr.bf16.gmra.mrb[0].mxu0 %v669
      %v1565 = vpop.f32.mrb[0].mxu0
      %v1566 = vadd.f32 %v1501, %v1565
      %v1567 = vpop.f32.mrb[0].mxu0
      %v1568 = vpop.f32.mrb[0].mxu0
      %v1569 = vadd.f32 %v1504, %v1568
      %v1570 = vpop.f32.mrb[0].mxu0
      %1571 = vdwg.mxu0
      %v1572 = vpack.c.bf16 %v1545, %v1542
      %v1573 = vpack.c.bf16 %v1553, %v1550
      %v1574 = vpack.c.bf16 %v1561, %v1558
      %v1575 = vpack.c.bf16 %v1569, %v1566
      %v1580 = vunpack.c.l.b16 %v1572
      %v1581 = vunpack.c.h.b16 %v1572
      %v1582 = vunpack.c.l.b16 %v1573
      %v1583 = vunpack.c.h.b16 %v1573
      %v1584 = vunpack.c.l.b16 %v1574
      %v1585 = vunpack.c.h.b16 %v1574
      %v1586 = vunpack.c.l.b16 %v1575
      %v1587 = vunpack.c.h.b16 %v1575
      %v1588 = vpack.c.b16 %v1580, %v1580
      %v1589 = vpack.c.b16 %v1581, %v1581
      %v1590 = vpack.c.b16 %v1582, %v1582
      %v1591 = vpack.c.b16 %v1583, %v1583
      %v1592 = vpack.c.b16 %v1584, %v1584
      %v1593 = vpack.c.b16 %v1585, %v1585
      %v1594 = vpack.c.b16 %v1586, %v1586
      %v1595 = vpack.c.b16 %v1587, %v1587
      %1604 = vst [vmem:[%s261] sm:$0xf] %v1588
      %1605 = vst [vmem:[%s261 + $0x4] sm:$0xf] %v1589
      %1606 = vst [vmem:[%s261 + $0x8] sm:$0xf] %v1590
      %1607 = vst [vmem:[%s261 + $0xc] sm:$0xf] %v1591
      %1608 = vst [vmem:[%s261 + $0x10] sm:$0xf] %v1592
      %1609 = vst [vmem:[%s261 + $0x14] sm:$0xf] %v1593
      %1610 = vst [vmem:[%s261 + $0x18] sm:$0xf] %v1594
      %1611 = vst [vmem:[%s261 + $0x1c] sm:$0xf] %v1595
      %v1612 = vadd.f32 %v1542, %v1545
      %v1613 = vadd.f32 %v1612, %v1550
      %v1614 = vadd.f32 %v1613, %v1553
      %v1615 = vadd.f32 %v1614, %v1558
      %v1616 = vadd.f32 %v1615, %v1561
      %v1617 = vadd.f32 %v1616, %v1566
      %v1618 = vadd.f32 %v1617, %v1569
      %v1619 = vrot.slane %v1618, 4
      %v1620 = vadd.f32 %v1618, %v1619
      %v1621 = vrot.slane %v1620, 2
      %v1622 = vadd.f32 %v1620, %v1621
      %v1623 = vrot.slane %v1622, 1
      %v1624 = vadd.f32 %v1622, %v1623
      %v1625 = vmul.f32 %v1542, %v1542
      %v1626 = vmul.f32 %v1545, %v1545
      %v1627 = vmul.f32 %v1550, %v1550
      %v1628 = vmul.f32 %v1553, %v1553
      %v1629 = vmul.f32 %v1558, %v1558
      %v1630 = vmul.f32 %v1561, %v1561
      %v1631 = vmul.f32 %v1566, %v1566
      %v1632 = vmul.f32 %v1569, %v1569
      %v1633 = vadd.f32 %v1625, %v1626
      %v1634 = vadd.f32 %v1633, %v1627
      %v1635 = vadd.f32 %v1634, %v1628
      %v1636 = vadd.f32 %v1635, %v1629
      %v1637 = vadd.f32 %v1636, %v1630
      %v1638 = vadd.f32 %v1637, %v1631
      %v1639 = vadd.f32 %v1638, %v1632
      %v1640 = vrot.slane %v1639, 4
      %v1641 = vadd.f32 %v1639, %v1640
      %v1642 = vrot.slane %v1641, 2
      %v1643 = vadd.f32 %v1641, %v1642
      %v1644 = vrot.slane %v1643, 1
      %v1645 = vadd.f32 %v1643, %v1644
      %vm1646 = vcmask 1040384
      %v1647 = vsel %vm1646, %v1624, %v1645
      %1648 = vst [vmem:[%s270] sm:$0x3] %v1647
      %s1649 = smul.u32 4, %s22
      %p1650 = scmp.lt.s32.totalorder %s21, 1
      %s1651 = scalar_select %p1650, %s21, 1
      %p1652 = scmp.lt.s32.totalorder %s1649, 15
      %s1653 = scalar_select %p1652, %s1649, 15
      %s1654 = smul.addr %s1653, 2
      %s1655 = smul.addr %s1651, 32
      %s1656 = sadd.s32 %s1654, %s1655
      %s1657 = smul.addr %s1656, 4
      %s1658 = scalar_lea.vmem %s4, %s1657
      %p1659 = scmp.lt.s32.totalorder %s21, 1
      %s1660 = scalar_select %p1659, %s21, 1
      %p1661 = scmp.lt.s32.totalorder %s22, 3
      %s1662 = scalar_select %p1661, %s22, 3
      %s1663 = smul.addr %s1660, 4
      %s1664 = sadd.s32 %s1662, %s1663
      %s1665 = smul.addr %s1664, 2
      %s1666 = scalar_lea.vmem %s5, %s1665
      // Predicated region
      $region41: #{conv_block_forward.3} parent=35 // pred_check
        %p1667 = pneg %p138
      $region42: #{conv_block_forward.3} parent=35 // pred_check_branch
        %1669 = sbr.rel (%p1667) target = $region44
      $region43: #{conv_block_forward.3} parent=35 // pred_region
        %s1670 = smul.u32 4, %s22
      $region44: #{conv_block_forward.3} parent=35 // pred_fallthru
        _
      // Predicated region
      $region45: #{conv_block_forward.3} parent=35 // pred_check
        %p1671 = pneg %p166
      $region46: #{conv_block_forward.3} parent=35 // pred_check_branch
        %1673 = sbr.rel (%p1671) target = $region48
      $region47: #{conv_block_forward.3} parent=35 // pred_region
        _
      $region48: #{conv_block_forward.3} parent=35 // pred_fallthru
        _
    $region36: #{conv_block_forward.3} parent=5 // pred_fallthru
      _
    %p1674 = scmp.le.s32.totalorder 2, %s12
    // Predicated region
    $region49: #{conv_block_forward.3} parent=5 // pred_check
      %p1675 = pneg %p1674
    $region50: #{conv_block_forward.3} parent=5 // pred_check_branch
      %1677 = sbr.rel (%p1675) target = $region52
    $region51: #{conv_block_forward.3} parent=5 // pred_region
      %s1678 = ssub.s32 %s12, 2
      // Predicated region
      $region53: #{conv_block_forward.3} parent=51 // pred_check
        %p1679 = pneg %p144
      $region54: #{conv_block_forward.3} parent=51 // pred_check_branch
        %1681 = sbr.rel (%p1679) target = $region56
      $region55: #{conv_block_forward.3} parent=51 // pred_region
        %s1682 = smul.u32 4, %s24
        %p1683 = scmp.lt.s32.totalorder %s23, 1
        %s1684 = scalar_select %p1683, %s23, 1
        %p1685 = scmp.lt.s32.totalorder %s1682, 15
        %s1686 = scalar_select %p1685, %s1682, 15
        %s1687 = smul.addr %s1686, 2
        %s1688 = smul.addr %s1684, 32
        %s1689 = sadd.s32 %s1687, %s1688
        %s1690 = smul.addr %s1689, 4
        %s1691 = scalar_lea.vmem %s4, %s1690
      $region56: #{conv_block_forward.3} parent=51 // pred_fallthru
        _
      // Predicated region
      $region57: #{conv_block_forward.3} parent=51 // pred_check
        %p1692 = pneg %p172
      $region58: #{conv_block_forward.3} parent=51 // pred_check_branch
        %1694 = sbr.rel (%p1692) target = $region60
      $region59: #{conv_block_forward.3} parent=51 // pred_region
        %p1695 = scmp.lt.s32.totalorder %s23, 1
        %s1696 = scalar_select %p1695, %s23, 1
        %p1697 = scmp.lt.s32.totalorder %s24, 3
        %s1698 = scalar_select %p1697, %s24, 3
        %s1699 = smul.addr %s1696, 4
        %s1700 = sadd.s32 %s1698, %s1699
        %s1701 = smul.addr %s1700, 2
        %s1702 = scalar_lea.vmem %s5, %s1701
      $region60: #{conv_block_forward.3} parent=51 // pred_fallthru
        _
    $region52: #{conv_block_forward.3} parent=5 // pred_fallthru
      _
  $region6: #{conv_block_forward.3} parent=0 // loop_footer
    %s16 = sadd.s32 1, %s12
  $region7: #{conv_block_forward.3} parent=0 // loop_footer_branch
    %11 = sbr.rel target = $region3
  $region8: #{conv_block_forward.3} parent=0 // loop_exit
    _

</llo_original>
